<compile_context>
chip_gen: v6e
topology: v6e:2x2x1
jax: 0.10.0
libtpu: 0.0.40
codegen_flags: <defaults>
</compile_context>

<pallas_src>
import math
import jax
import jax.numpy as jnp
from jax.experimental import pallas as pl
from jax.experimental.pallas import tpu as pltpu

# ------------------------- small-scale BERT config -------------------------
CFG = dict(vocab=100, hidden=32, heads=4, layers=2, inter=64, max_pos=16)
VPAD = 128  # vocab padded to a lane-friendly multiple for the one-hot matmul


# ------------------------------ helpers (in-kernel) ------------------------------

def _ln(x, g, b):
    # f32 LayerNorm statistics (BERT eps = 1e-12).
    mean = jnp.mean(x, axis=-1, keepdims=True)
    var = jnp.mean(jnp.square(x - mean), axis=-1, keepdims=True)
    return (x - mean) * jax.lax.rsqrt(var + 1e-12) * g + b


# ------------------------------ fused encoder kernel ------------------------------

def _encoder_kernel(ids_ref, word_ref, pos_ref, type_ref, eg_ref, eb_ref,
                    wqkv_ref, bqkv_ref, wo_ref, bo_ref, ln1g_ref, ln1b_ref,
                    w1_ref, b1_ref, w2_ref, b2_ref, ln2g_ref, ln2b_ref,
                    fcw_ref, fcb_ref, out_ref):
    """One grid step = one full sequence: embeddings -> L layers -> CLS -> fc1."""
    S = pos_ref.shape[0]
    Vp, D = word_ref.shape
    H = CFG['heads']
    dh = D // H
    L = wqkv_ref.shape[0]
    bf16 = jnp.bfloat16
    f32 = jnp.float32

    # ---- embedding lookup (one-hot on MXU) + position/type add + LayerNorm ----
    ids = ids_ref[0]                                        # [S, 1] int32
    onehot = (jax.lax.broadcasted_iota(jnp.int32, (S, Vp), 1) == ids).astype(f32)
    x = jnp.dot(onehot, word_ref[...], preferred_element_type=f32)   # [S, D]
    x = x + pos_ref[...] + type_ref[...]
    x = _ln(x, eg_ref[...], eb_ref[...])

    scale = 1.0 / math.sqrt(dh)

    for l in range(L):                                      # static unroll (L=2)
        # ---- fused QKV projection (bf16 matmul, f32 accumulate) ----
        qkv = jnp.dot(x.astype(bf16), wqkv_ref[l],
                      preferred_element_type=f32) + bqkv_ref[l]       # [S, 3D]

        # ---- multi-head attention; merge-heads fused into output projection ----
        wo_l = wo_ref[l]                                    # [D, D] bf16
        attn = jnp.zeros((S, D), f32) + bo_ref[l]           # start from out-proj bias
        for hd in range(H):                                 # static unroll (H=4)
            lo = hd * dh
            qh = qkv[:, lo:lo + dh].astype(bf16)            # [S, dh]
            kh = qkv[:, D + lo:D + lo + dh].astype(bf16)    # [S, dh]
            vh = qkv[:, 2 * D + lo:2 * D + lo + dh].astype(bf16)
            s = jax.lax.dot_general(qh, kh, (((1,), (1,)), ((), ())),
                                    preferred_element_type=f32) * scale   # [S, S]
            s = s - jnp.max(s, axis=-1, keepdims=True)
            e = jnp.exp(s)
            p = e * pl.reciprocal(jnp.sum(e, axis=-1, keepdims=True), approx=True)
            ctx_h = jnp.dot(p.astype(bf16), vh, preferred_element_type=f32)  # [S, dh]
            attn = attn + jnp.dot(ctx_h.astype(bf16), wo_l[lo:lo + dh, :],
                                  preferred_element_type=f32)
        x = _ln(x + attn, ln1g_ref[l], ln1b_ref[l])

        # ---- feed-forward ----
        ff = jnp.dot(x.astype(bf16), w1_ref[l], preferred_element_type=f32) + b1_ref[l]
        ff = jax.nn.gelu(ff, approximate=True)   # TODO(synk): BERT uses exact erf-GELU
        ff = jnp.dot(ff.astype(bf16), w2_ref[l], preferred_element_type=f32) + b2_ref[l]
        x = _ln(x + ff, ln2g_ref[l], ln2b_ref[l])

    # ---- CLS (token 0) -> fc1 ----
    cls = x[0:1, :]                                         # [1, D]
    out = jnp.dot(cls.astype(bf16), fcw_ref[...], preferred_element_type=f32) + fcb_ref[...]
    out_ref[...] = out[None]                                # [1, 1, D]


def roberta_fc_forward(p, ids):
    """ids: [N, S] int32 -> fc1(CLS(BERT(ids))) : [N, D].  One fused pallas_call."""
    N, S = ids.shape
    D = CFG['hidden']
    I = CFG['inter']
    L = CFG['layers']
    Vp = p['word'].shape[0]

    ids3 = ids.reshape(N, S, 1).astype(jnp.int32)
    pos_s = p['pos'][:S]                                    # [S, D]

    def full(shape):
        return pl.BlockSpec(shape, lambda i, _s=shape: (0,) * len(_s))

    in_specs = [
        pl.BlockSpec((1, S, 1), lambda i: (i, 0, 0)),       # token ids per sequence
        full((Vp, D)),                                      # word table (padded vocab)
        full((S, D)),                                       # position embeddings
        full((1, D)),                                       # token-type-0 embedding
        full((1, D)), full((1, D)),                         # embedding LN gamma/beta
        full((L, D, 3 * D)), full((L, 1, 3 * D)),           # fused QKV weight / bias
        full((L, D, D)), full((L, 1, D)),                   # attention out proj
        full((L, 1, D)), full((L, 1, D)),                   # LN1
        full((L, D, I)), full((L, 1, I)),                   # FFN in
        full((L, I, D)), full((L, 1, D)),                   # FFN out
        full((L, 1, D)), full((L, 1, D)),                   # LN2
        full((D, D)), full((1, D)),                         # fc1
    ]

    out = pl.pallas_call(
        _encoder_kernel,
        out_shape=jax.ShapeDtypeStruct((N, 1, D), jnp.float32),
        grid=(N,),
        in_specs=in_specs,
        out_specs=pl.BlockSpec((1, 1, D), lambda i: (i, 0, 0)),
        compiler_params=pltpu.CompilerParams(dimension_semantics=("parallel",)),
    )(ids3, p['word'], pos_s, p['type0'], p['emb_ln_g'], p['emb_ln_b'],
      p['wqkv'], p['bqkv'], p['wo'], p['bo'], p['ln1_g'], p['ln1_b'],
      p['w1'], p['b1'], p['w2'], p['b2'], p['ln2_g'], p['ln2_b'],
      p['fc1_w'], p['fc1_b'])
    return out.reshape(N, D)


# ------------------------------ similarity kernel ------------------------------

def _similarity_kernel(q_ref, c_ref, o_ref):
    # q:[B,D], c:[B,P,D] -> o[b,p] = dot(q[b], c[b,p]) / sqrt(D)  (MXU contraction)
    q = q_ref[...]
    c = c_ref[...]
    B = q.shape[0]
    inv = 1.0 / math.sqrt(q.shape[-1])
    for b in range(B):                                      # static unroll (B=2)
        row = jax.lax.dot_general(q[b:b + 1, :], c[b], (((1,), (1,)), ((), ())),
                                  preferred_element_type=jnp.float32)   # [1, P]
        o_ref[pl.ds(b, 1), :] = row * inv


def similarity(q_rep, c_rep):
    B, P, _ = c_rep.shape
    vmem = pl.BlockSpec(memory_space=pltpu.MemorySpace.VMEM)
    return pl.pallas_call(
        _similarity_kernel,
        out_shape=jax.ShapeDtypeStruct((B, P), jnp.float32),
        in_specs=[vmem, vmem],
        out_specs=vmem,
    )(q_rep, c_rep)


# ------------------------- parameter initialization -------------------------

def _init_dense(key, fan_in, fan_out):
    kw, kb = jax.random.split(key)
    w = jax.random.normal(kw, (fan_in, fan_out), jnp.float32) * 0.02
    b = jax.random.normal(kb, (fan_out,), jnp.float32) * 0.02
    return w, b


def init_roberta_fc(key):
    D, V, I, L, MP = CFG['hidden'], CFG['vocab'], CFG['inter'], CFG['layers'], CFG['max_pos']
    keys = jax.random.split(key, 4 + L)
    word = jax.random.normal(keys[0], (V, D), jnp.float32) * 0.02
    pos = jax.random.normal(keys[1], (MP, D), jnp.float32) * 0.02
    typ = jax.random.normal(keys[2], (2, D), jnp.float32) * 0.02

    wqkv, bqkv, wo, bo, w1, b1, w2, b2 = ([] for _ in range(8))
    for l in range(L):
        lk = jax.random.split(keys[3 + l], 6)
        wq_, bq_ = _init_dense(lk[0], D, D)
        wk_, bk_ = _init_dense(lk[1], D, D)
        wv_, bv_ = _init_dense(lk[2], D, D)
        wo_, bo_ = _init_dense(lk[3], D, D)
        w1_, b1_ = _init_dense(lk[4], D, I)
        w2_, b2_ = _init_dense(lk[5], I, D)
        wqkv.append(jnp.concatenate([wq_, wk_, wv_], axis=1))   # [D, 3D]
        bqkv.append(jnp.concatenate([bq_, bk_, bv_], axis=0))   # [3D]
        wo.append(wo_); bo.append(bo_)
        w1.append(w1_); b1.append(b1_)
        w2.append(w2_); b2.append(b2_)

    fc1_w, fc1_b = _init_dense(keys[3 + L], D, D)

    word_p = jnp.zeros((VPAD, D), jnp.float32).at[:V, :].set(word)

    return {
        'word': word_p,                                     # f32 (pure gather)
        'pos': pos,
        'type0': typ[0:1, :],
        'emb_ln_g': jnp.ones((1, D), jnp.float32),
        'emb_ln_b': jnp.zeros((1, D), jnp.float32),
        'wqkv': jnp.stack(wqkv).astype(jnp.bfloat16),       # [L, D, 3D]
        'bqkv': jnp.stack(bqkv)[:, None, :],                # [L, 1, 3D]
        'wo': jnp.stack(wo).astype(jnp.bfloat16),           # [L, D, D]
        'bo': jnp.stack(bo)[:, None, :],                    # [L, 1, D]
        'ln1_g': jnp.ones((L, 1, D), jnp.float32),
        'ln1_b': jnp.zeros((L, 1, D), jnp.float32),
        'w1': jnp.stack(w1).astype(jnp.bfloat16),           # [L, D, I]
        'b1': jnp.stack(b1)[:, None, :],                    # [L, 1, I]
        'w2': jnp.stack(w2).astype(jnp.bfloat16),           # [L, I, D]
        'b2': jnp.stack(b2)[:, None, :],                    # [L, 1, D]
        'ln2_g': jnp.ones((L, 1, D), jnp.float32),
        'ln2_b': jnp.zeros((L, 1, D), jnp.float32),
        'fc1_w': fc1_w.astype(jnp.bfloat16),                # [D, D]
        'fc1_b': fc1_b[None, :],                            # [1, D]
    }


def init_biencoder(key):
    kq, kc = jax.random.split(key)
    return {'question': init_roberta_fc(kq), 'context': init_roberta_fc(kc)}


# ------------------------------- forward pass -------------------------------

def biencoder_forward(params, query, context):
    """query: [B, S] int32; context: [B, P, S] int32 -> similarity [B, P]."""
    B, P, S = context.shape
    q_rep = roberta_fc_forward(params['question'], query)                      # [B, D]
    c_rep = roberta_fc_forward(params['context'], context.reshape(B * P, S))   # [B*P, D]
    return similarity(q_rep, c_rep.reshape(B, P, -1))                          # [B, P]


# ----------------------------------- main ------------------------------------

if __name__ == "__main__":
    key = jax.random.PRNGKey(0)
    kp, kq, kc = jax.random.split(key, 3)

    params = init_biencoder(kp)

    B, P, S = 2, 3, 8
    query = jax.random.randint(kq, (B, S), 0, CFG['vocab'], dtype=jnp.int32)
    context = jax.random.randint(kc, (B, P, S), 0, CFG['vocab'], dtype=jnp.int32)

    sim = biencoder_forward(params, query, context)
    sim = jax.block_until_ready(sim)
    assert sim.shape == (B, P) and sim.dtype == jnp.float32
    print("KERNEL_OK")
</pallas_src>

<mosaic_0001>
module attributes {stable_mosaic.version = 11 : i64} {
  func.func @_encoder_kernel(%arg0: i32, %arg1: memref<1x8x1xi32, #tpu.memory_space<vmem>>, %arg2: memref<128x32xf32, #tpu.memory_space<vmem>>, %arg3: memref<8x32xf32, #tpu.memory_space<vmem>>, %arg4: memref<1x32xf32, #tpu.memory_space<vmem>>, %arg5: memref<1x32xf32, #tpu.memory_space<vmem>>, %arg6: memref<1x32xf32, #tpu.memory_space<vmem>>, %arg7: memref<2x32x96xbf16, #tpu.memory_space<vmem>>, %arg8: memref<2x1x96xf32, #tpu.memory_space<vmem>>, %arg9: memref<2x32x32xbf16, #tpu.memory_space<vmem>>, %arg10: memref<2x1x32xf32, #tpu.memory_space<vmem>>, %arg11: memref<2x1x32xf32, #tpu.memory_space<vmem>>, %arg12: memref<2x1x32xf32, #tpu.memory_space<vmem>>, %arg13: memref<2x32x64xbf16, #tpu.memory_space<vmem>>, %arg14: memref<2x1x64xf32, #tpu.memory_space<vmem>>, %arg15: memref<2x64x32xbf16, #tpu.memory_space<vmem>>, %arg16: memref<2x1x32xf32, #tpu.memory_space<vmem>>, %arg17: memref<2x1x32xf32, #tpu.memory_space<vmem>>, %arg18: memref<2x1x32xf32, #tpu.memory_space<vmem>>, %arg19: memref<32x32xbf16, #tpu.memory_space<vmem>>, %arg20: memref<1x32xf32, #tpu.memory_space<vmem>>, %arg21: memref<1x1x32xf32, #tpu.memory_space<vmem>>) attributes {dimension_semantics = [#tpu.dimension_semantics<parallel>], iteration_bounds = array<i64: 2>, scalar_prefetch = 0 : i64, scratch_operands = 0 : i64, tpu.core_type = #tpu.core_type<tc>, window_params = [{transform_indices = @transform_0, window_bounds = array<i64: 1, 8, 1>}, {pipeline_mode = #tpu.pipeline_mode<synchronous>, transform_indices = @transform_1, window_bounds = array<i64: 128, 32>}, {pipeline_mode = #tpu.pipeline_mode<synchronous>, transform_indices = @transform_2, window_bounds = array<i64: 8, 32>}, {pipeline_mode = #tpu.pipeline_mode<synchronous>, transform_indices = @transform_3, window_bounds = array<i64: 1, 32>}, {pipeline_mode = #tpu.pipeline_mode<synchronous>, transform_indices = @transform_4, window_bounds = array<i64: 1, 32>}, {pipeline_mode = #tpu.pipeline_mode<synchronous>, transform_indices = @transform_5, window_bounds = array<i64: 1, 32>}, {pipeline_mode = #tpu.pipeline_mode<synchronous>, transform_indices = @transform_6, window_bounds = array<i64: 2, 32, 96>}, {pipeline_mode = #tpu.pipeline_mode<synchronous>, transform_indices = @transform_7, window_bounds = array<i64: 2, 1, 96>}, {pipeline_mode = #tpu.pipeline_mode<synchronous>, transform_indices = @transform_8, window_bounds = array<i64: 2, 32, 32>}, {pipeline_mode = #tpu.pipeline_mode<synchronous>, transform_indices = @transform_9, window_bounds = array<i64: 2, 1, 32>}, {pipeline_mode = #tpu.pipeline_mode<synchronous>, transform_indices = @transform_10, window_bounds = array<i64: 2, 1, 32>}, {pipeline_mode = #tpu.pipeline_mode<synchronous>, transform_indices = @transform_11, window_bounds = array<i64: 2, 1, 32>}, {pipeline_mode = #tpu.pipeline_mode<synchronous>, transform_indices = @transform_12, window_bounds = array<i64: 2, 32, 64>}, {pipeline_mode = #tpu.pipeline_mode<synchronous>, transform_indices = @transform_13, window_bounds = array<i64: 2, 1, 64>}, {pipeline_mode = #tpu.pipeline_mode<synchronous>, transform_indices = @transform_14, window_bounds = array<i64: 2, 64, 32>}, {pipeline_mode = #tpu.pipeline_mode<synchronous>, transform_indices = @transform_15, window_bounds = array<i64: 2, 1, 32>}, {pipeline_mode = #tpu.pipeline_mode<synchronous>, transform_indices = @transform_16, window_bounds = array<i64: 2, 1, 32>}, {pipeline_mode = #tpu.pipeline_mode<synchronous>, transform_indices = @transform_17, window_bounds = array<i64: 2, 1, 32>}, {pipeline_mode = #tpu.pipeline_mode<synchronous>, transform_indices = @transform_18, window_bounds = array<i64: 32, 32>}, {pipeline_mode = #tpu.pipeline_mode<synchronous>, transform_indices = @transform_19, window_bounds = array<i64: 1, 32>}, {transform_indices = @transform_20, window_bounds = array<i64: 1, 1, 32>}]} {
    %c0 = arith.constant 0 : index
    %c0_0 = arith.constant 0 : index
    %c0_1 = arith.constant 0 : index
    %0 = vector.load %arg1[%c0, %c0_0, %c0_1] : memref<1x8x1xi32, #tpu.memory_space<vmem>>, vector<1x8x1xi32>
    %1 = vector.shape_cast %0 : vector<1x8x1xi32> to vector<8x1xi32>
    %2 = tpu.iota {dimensions = array<i32: 1>} : vector<8x128xi32>
    %3 = vector.broadcast %1 : vector<8x1xi32> to vector<8x128xi32>
    %4 = arith.cmpi eq, %2, %3 : vector<8x128xi32>
    %5 = arith.extui %4 : vector<8x128xi1> to vector<8x128xi32>
    %6 = arith.sitofp %5 : vector<8x128xi32> to vector<8x128xf32>
    %c0_2 = arith.constant 0 : index
    %c0_3 = arith.constant 0 : index
    %7 = vector.load %arg2[%c0_2, %c0_3] : memref<128x32xf32, #tpu.memory_space<vmem>>, vector<128x32xf32>
    %cst = arith.constant dense<0.000000e+00> : vector<8x32xf32>
    %8 = tpu.matmul %6, %7, %cst {dimension_numbers = #tpu.dot_dimension_numbers<[1], [0], [0], [1], [0, 0, 1, 1], [], []>} : vector<8x128xf32>, vector<128x32xf32>, vector<8x32xf32> -> vector<8x32xf32>
    %c0_4 = arith.constant 0 : index
    %c0_5 = arith.constant 0 : index
    %9 = vector.load %arg3[%c0_4, %c0_5] : memref<8x32xf32, #tpu.memory_space<vmem>>, vector<8x32xf32>
    %10 = arith.addf %8, %9 : vector<8x32xf32>
    %c0_6 = arith.constant 0 : index
    %c0_7 = arith.constant 0 : index
    %11 = vector.load %arg4[%c0_6, %c0_7] : memref<1x32xf32, #tpu.memory_space<vmem>>, vector<1x32xf32>
    %12 = vector.broadcast %11 : vector<1x32xf32> to vector<8x32xf32>
    %13 = arith.addf %10, %12 : vector<8x32xf32>
    %c0_8 = arith.constant 0 : index
    %c0_9 = arith.constant 0 : index
    %14 = vector.load %arg5[%c0_8, %c0_9] : memref<1x32xf32, #tpu.memory_space<vmem>>, vector<1x32xf32>
    %c0_10 = arith.constant 0 : index
    %c0_11 = arith.constant 0 : index
    %15 = vector.load %arg6[%c0_10, %c0_11] : memref<1x32xf32, #tpu.memory_space<vmem>>, vector<1x32xf32>
    %cst_12 = arith.constant dense<0.000000e+00> : vector<8xf32>
    %16 = vector.multi_reduction <add>, %13, %cst_12 [1] : vector<8x32xf32> to vector<8xf32>
    %17 = vector.shape_cast %16 : vector<8xf32> to vector<8x1xf32>
    %cst_13 = arith.constant 3.200000e+01 : f32
    %18 = vector.broadcast %cst_13 : f32 to vector<8x1xf32>
    %19 = arith.divf %17, %18 : vector<8x1xf32>
    %20 = vector.broadcast %19 : vector<8x1xf32> to vector<8x32xf32>
    %21 = arith.subf %13, %20 : vector<8x32xf32>
    %22 = arith.mulf %21, %21 : vector<8x32xf32>
    %cst_14 = arith.constant dense<0.000000e+00> : vector<8xf32>
    %23 = vector.multi_reduction <add>, %22, %cst_14 [1] : vector<8x32xf32> to vector<8xf32>
    %24 = vector.shape_cast %23 : vector<8xf32> to vector<8x1xf32>
    %cst_15 = arith.constant 3.200000e+01 : f32
    %25 = vector.broadcast %cst_15 : f32 to vector<8x1xf32>
    %26 = arith.divf %24, %25 : vector<8x1xf32>
    %27 = vector.broadcast %19 : vector<8x1xf32> to vector<8x32xf32>
    %28 = arith.subf %13, %27 : vector<8x32xf32>
    %cst_16 = arith.constant 9.99999996E-13 : f32
    %29 = vector.broadcast %cst_16 : f32 to vector<8x1xf32>
    %30 = arith.addf %26, %29 : vector<8x1xf32>
    %31 = math.rsqrt %30 : vector<8x1xf32>
    %32 = vector.broadcast %31 : vector<8x1xf32> to vector<8x32xf32>
    %33 = arith.mulf %28, %32 : vector<8x32xf32>
    %34 = vector.broadcast %14 : vector<1x32xf32> to vector<8x32xf32>
    %35 = arith.mulf %33, %34 : vector<8x32xf32>
    %36 = vector.broadcast %15 : vector<1x32xf32> to vector<8x32xf32>
    %37 = arith.addf %35, %36 : vector<8x32xf32>
    %38 = arith.truncf %37 : vector<8x32xf32> to vector<8x32xbf16>
    %c0_17 = arith.constant 0 : index
    %c0_18 = arith.constant 0 : index
    %c0_19 = arith.constant 0 : index
    %39 = vector.load %arg7[%c0_17, %c0_18, %c0_19] : memref<2x32x96xbf16, #tpu.memory_space<vmem>>, vector<1x32x96xbf16>
    %40 = vector.shape_cast %39 : vector<1x32x96xbf16> to vector<32x96xbf16>
    %cst_20 = arith.constant dense<0.000000e+00> : vector<8x96xf32>
    %41 = tpu.matmul %38, %40, %cst_20 {dimension_numbers = #tpu.dot_dimension_numbers<[1], [0], [0], [1], [0, 0, 1, 1], [], []>} : vector<8x32xbf16>, vector<32x96xbf16>, vector<8x96xf32> -> vector<8x96xf32>
    %c0_21 = arith.constant 0 : index
    %c0_22 = arith.constant 0 : index
    %c0_23 = arith.constant 0 : index
    %42 = vector.load %arg8[%c0_21, %c0_22, %c0_23] : memref<2x1x96xf32, #tpu.memory_space<vmem>>, vector<1x1x96xf32>
    %43 = vector.shape_cast %42 : vector<1x1x96xf32> to vector<1x96xf32>
    %44 = vector.broadcast %43 : vector<1x96xf32> to vector<8x96xf32>
    %45 = arith.addf %41, %44 : vector<8x96xf32>
    %c0_24 = arith.constant 0 : index
    %c0_25 = arith.constant 0 : index
    %c0_26 = arith.constant 0 : index
    %46 = vector.load %arg9[%c0_24, %c0_25, %c0_26] : memref<2x32x32xbf16, #tpu.memory_space<vmem>>, vector<1x32x32xbf16>
    %47 = vector.shape_cast %46 : vector<1x32x32xbf16> to vector<32x32xbf16>
    %cst_27 = arith.constant 0.000000e+00 : f32
    %48 = vector.broadcast %cst_27 : f32 to vector<8x32xf32>
    %c0_28 = arith.constant 0 : index
    %c0_29 = arith.constant 0 : index
    %c0_30 = arith.constant 0 : index
    %49 = vector.load %arg10[%c0_28, %c0_29, %c0_30] : memref<2x1x32xf32, #tpu.memory_space<vmem>>, vector<1x1x32xf32>
    %50 = vector.shape_cast %49 : vector<1x1x32xf32> to vector<1x32xf32>
    %51 = vector.broadcast %50 : vector<1x32xf32> to vector<8x32xf32>
    %52 = arith.addf %48, %51 : vector<8x32xf32>
    %53 = vector.extract_strided_slice %45 {offsets = [0, 0], sizes = [8, 8], strides = [1, 1]} : vector<8x96xf32> to vector<8x8xf32>
    %54 = arith.truncf %53 : vector<8x8xf32> to vector<8x8xbf16>
    %55 = vector.extract_strided_slice %45 {offsets = [0, 32], sizes = [8, 8], strides = [1, 1]} : vector<8x96xf32> to vector<8x8xf32>
    %56 = arith.truncf %55 : vector<8x8xf32> to vector<8x8xbf16>
    %57 = vector.extract_strided_slice %45 {offsets = [0, 64], sizes = [8, 8], strides = [1, 1]} : vector<8x96xf32> to vector<8x8xf32>
    %58 = arith.truncf %57 : vector<8x8xf32> to vector<8x8xbf16>
    %cst_31 = arith.constant dense<0.000000e+00> : vector<8x8xf32>
    %59 = tpu.matmul %54, %56, %cst_31 {dimension_numbers = #tpu.dot_dimension_numbers<[1], [1], [0], [0], [0, 0, 1, 0], [], []>} : vector<8x8xbf16>, vector<8x8xbf16>, vector<8x8xf32> -> vector<8x8xf32>
    %cst_32 = arith.constant 0.353553385 : f32
    %60 = vector.broadcast %cst_32 : f32 to vector<8x8xf32>
    %61 = arith.mulf %59, %60 : vector<8x8xf32>
    %cst_33 = arith.constant dense<0xFF800000> : vector<8xf32>
    %62 = vector.multi_reduction <maximumf>, %61, %cst_33 [1] : vector<8x8xf32> to vector<8xf32>
    %63 = vector.shape_cast %62 : vector<8xf32> to vector<8x1xf32>
    %64 = vector.broadcast %63 : vector<8x1xf32> to vector<8x8xf32>
    %65 = arith.subf %61, %64 : vector<8x8xf32>
    %66 = math.exp %65 : vector<8x8xf32>
    %cst_34 = arith.constant dense<0.000000e+00> : vector<8xf32>
    %67 = vector.multi_reduction <add>, %66, %cst_34 [1] : vector<8x8xf32> to vector<8xf32>
    %68 = vector.shape_cast %67 : vector<8xf32> to vector<8x1xf32>
    %69 = tpu.reciprocal %68 {approx = true} : vector<8x1xf32> -> vector<8x1xf32>
    %70 = vector.broadcast %69 : vector<8x1xf32> to vector<8x8xf32>
    %71 = arith.mulf %66, %70 : vector<8x8xf32>
    %72 = arith.truncf %71 : vector<8x8xf32> to vector<8x8xbf16>
    %cst_35 = arith.constant dense<0.000000e+00> : vector<8x8xf32>
    %73 = tpu.matmul %72, %58, %cst_35 {dimension_numbers = #tpu.dot_dimension_numbers<[1], [0], [0], [1], [0, 0, 1, 1], [], []>} : vector<8x8xbf16>, vector<8x8xbf16>, vector<8x8xf32> -> vector<8x8xf32>
    %74 = arith.truncf %73 : vector<8x8xf32> to vector<8x8xbf16>
    %75 = vector.extract_strided_slice %47 {offsets = [0, 0], sizes = [8, 32], strides = [1, 1]} : vector<32x32xbf16> to vector<8x32xbf16>
    %cst_36 = arith.constant dense<0.000000e+00> : vector<8x32xf32>
    %76 = tpu.matmul %74, %75, %cst_36 {dimension_numbers = #tpu.dot_dimension_numbers<[1], [0], [0], [1], [0, 0, 1, 1], [], []>} : vector<8x8xbf16>, vector<8x32xbf16>, vector<8x32xf32> -> vector<8x32xf32>
    %77 = arith.addf %52, %76 : vector<8x32xf32>
    %78 = vector.extract_strided_slice %45 {offsets = [0, 8], sizes = [8, 8], strides = [1, 1]} : vector<8x96xf32> to vector<8x8xf32>
    %79 = arith.truncf %78 : vector<8x8xf32> to vector<8x8xbf16>
    %80 = vector.extract_strided_slice %45 {offsets = [0, 40], sizes = [8, 8], strides = [1, 1]} : vector<8x96xf32> to vector<8x8xf32>
    %81 = arith.truncf %80 : vector<8x8xf32> to vector<8x8xbf16>
    %82 = vector.extract_strided_slice %45 {offsets = [0, 72], sizes = [8, 8], strides = [1, 1]} : vector<8x96xf32> to vector<8x8xf32>
    %83 = arith.truncf %82 : vector<8x8xf32> to vector<8x8xbf16>
    %cst_37 = arith.constant dense<0.000000e+00> : vector<8x8xf32>
    %84 = tpu.matmul %79, %81, %cst_37 {dimension_numbers = #tpu.dot_dimension_numbers<[1], [1], [0], [0], [0, 0, 1, 0], [], []>} : vector<8x8xbf16>, vector<8x8xbf16>, vector<8x8xf32> -> vector<8x8xf32>
    %cst_38 = arith.constant 0.353553385 : f32
    %85 = vector.broadcast %cst_38 : f32 to vector<8x8xf32>
    %86 = arith.mulf %84, %85 : vector<8x8xf32>
    %cst_39 = arith.constant dense<0xFF800000> : vector<8xf32>
    %87 = vector.multi_reduction <maximumf>, %86, %cst_39 [1] : vector<8x8xf32> to vector<8xf32>
    %88 = vector.shape_cast %87 : vector<8xf32> to vector<8x1xf32>
    %89 = vector.broadcast %88 : vector<8x1xf32> to vector<8x8xf32>
    %90 = arith.subf %86, %89 : vector<8x8xf32>
    %91 = math.exp %90 : vector<8x8xf32>
    %cst_40 = arith.constant dense<0.000000e+00> : vector<8xf32>
    %92 = vector.multi_reduction <add>, %91, %cst_40 [1] : vector<8x8xf32> to vector<8xf32>
    %93 = vector.shape_cast %92 : vector<8xf32> to vector<8x1xf32>
    %94 = tpu.reciprocal %93 {approx = true} : vector<8x1xf32> -> vector<8x1xf32>
    %95 = vector.broadcast %94 : vector<8x1xf32> to vector<8x8xf32>
    %96 = arith.mulf %91, %95 : vector<8x8xf32>
    %97 = arith.truncf %96 : vector<8x8xf32> to vector<8x8xbf16>
    %cst_41 = arith.constant dense<0.000000e+00> : vector<8x8xf32>
    %98 = tpu.matmul %97, %83, %cst_41 {dimension_numbers = #tpu.dot_dimension_numbers<[1], [0], [0], [1], [0, 0, 1, 1], [], []>} : vector<8x8xbf16>, vector<8x8xbf16>, vector<8x8xf32> -> vector<8x8xf32>
    %99 = arith.truncf %98 : vector<8x8xf32> to vector<8x8xbf16>
    %100 = vector.extract_strided_slice %47 {offsets = [8, 0], sizes = [8, 32], strides = [1, 1]} : vector<32x32xbf16> to vector<8x32xbf16>
    %cst_42 = arith.constant dense<0.000000e+00> : vector<8x32xf32>
    %101 = tpu.matmul %99, %100, %cst_42 {dimension_numbers = #tpu.dot_dimension_numbers<[1], [0], [0], [1], [0, 0, 1, 1], [], []>} : vector<8x8xbf16>, vector<8x32xbf16>, vector<8x32xf32> -> vector<8x32xf32>
    %102 = arith.addf %77, %101 : vector<8x32xf32>
    %103 = vector.extract_strided_slice %45 {offsets = [0, 16], sizes = [8, 8], strides = [1, 1]} : vector<8x96xf32> to vector<8x8xf32>
    %104 = arith.truncf %103 : vector<8x8xf32> to vector<8x8xbf16>
    %105 = vector.extract_strided_slice %45 {offsets = [0, 48], sizes = [8, 8], strides = [1, 1]} : vector<8x96xf32> to vector<8x8xf32>
    %106 = arith.truncf %105 : vector<8x8xf32> to vector<8x8xbf16>
    %107 = vector.extract_strided_slice %45 {offsets = [0, 80], sizes = [8, 8], strides = [1, 1]} : vector<8x96xf32> to vector<8x8xf32>
    %108 = arith.truncf %107 : vector<8x8xf32> to vector<8x8xbf16>
    %cst_43 = arith.constant dense<0.000000e+00> : vector<8x8xf32>
    %109 = tpu.matmul %104, %106, %cst_43 {dimension_numbers = #tpu.dot_dimension_numbers<[1], [1], [0], [0], [0, 0, 1, 0], [], []>} : vector<8x8xbf16>, vector<8x8xbf16>, vector<8x8xf32> -> vector<8x8xf32>
    %cst_44 = arith.constant 0.353553385 : f32
    %110 = vector.broadcast %cst_44 : f32 to vector<8x8xf32>
    %111 = arith.mulf %109, %110 : vector<8x8xf32>
    %cst_45 = arith.constant dense<0xFF800000> : vector<8xf32>
    %112 = vector.multi_reduction <maximumf>, %111, %cst_45 [1] : vector<8x8xf32> to vector<8xf32>
    %113 = vector.shape_cast %112 : vector<8xf32> to vector<8x1xf32>
    %114 = vector.broadcast %113 : vector<8x1xf32> to vector<8x8xf32>
    %115 = arith.subf %111, %114 : vector<8x8xf32>
    %116 = math.exp %115 : vector<8x8xf32>
    %cst_46 = arith.constant dense<0.000000e+00> : vector<8xf32>
    %117 = vector.multi_reduction <add>, %116, %cst_46 [1] : vector<8x8xf32> to vector<8xf32>
    %118 = vector.shape_cast %117 : vector<8xf32> to vector<8x1xf32>
    %119 = tpu.reciprocal %118 {approx = true} : vector<8x1xf32> -> vector<8x1xf32>
    %120 = vector.broadcast %119 : vector<8x1xf32> to vector<8x8xf32>
    %121 = arith.mulf %116, %120 : vector<8x8xf32>
    %122 = arith.truncf %121 : vector<8x8xf32> to vector<8x8xbf16>
    %cst_47 = arith.constant dense<0.000000e+00> : vector<8x8xf32>
    %123 = tpu.matmul %122, %108, %cst_47 {dimension_numbers = #tpu.dot_dimension_numbers<[1], [0], [0], [1], [0, 0, 1, 1], [], []>} : vector<8x8xbf16>, vector<8x8xbf16>, vector<8x8xf32> -> vector<8x8xf32>
    %124 = arith.truncf %123 : vector<8x8xf32> to vector<8x8xbf16>
    %125 = vector.extract_strided_slice %47 {offsets = [16, 0], sizes = [8, 32], strides = [1, 1]} : vector<32x32xbf16> to vector<8x32xbf16>
    %cst_48 = arith.constant dense<0.000000e+00> : vector<8x32xf32>
    %126 = tpu.matmul %124, %125, %cst_48 {dimension_numbers = #tpu.dot_dimension_numbers<[1], [0], [0], [1], [0, 0, 1, 1], [], []>} : vector<8x8xbf16>, vector<8x32xbf16>, vector<8x32xf32> -> vector<8x32xf32>
    %127 = arith.addf %102, %126 : vector<8x32xf32>
    %128 = vector.extract_strided_slice %45 {offsets = [0, 24], sizes = [8, 8], strides = [1, 1]} : vector<8x96xf32> to vector<8x8xf32>
    %129 = arith.truncf %128 : vector<8x8xf32> to vector<8x8xbf16>
    %130 = vector.extract_strided_slice %45 {offsets = [0, 56], sizes = [8, 8], strides = [1, 1]} : vector<8x96xf32> to vector<8x8xf32>
    %131 = arith.truncf %130 : vector<8x8xf32> to vector<8x8xbf16>
    %132 = vector.extract_strided_slice %45 {offsets = [0, 88], sizes = [8, 8], strides = [1, 1]} : vector<8x96xf32> to vector<8x8xf32>
    %133 = arith.truncf %132 : vector<8x8xf32> to vector<8x8xbf16>
    %cst_49 = arith.constant dense<0.000000e+00> : vector<8x8xf32>
    %134 = tpu.matmul %129, %131, %cst_49 {dimension_numbers = #tpu.dot_dimension_numbers<[1], [1], [0], [0], [0, 0, 1, 0], [], []>} : vector<8x8xbf16>, vector<8x8xbf16>, vector<8x8xf32> -> vector<8x8xf32>
    %cst_50 = arith.constant 0.353553385 : f32
    %135 = vector.broadcast %cst_50 : f32 to vector<8x8xf32>
    %136 = arith.mulf %134, %135 : vector<8x8xf32>
    %cst_51 = arith.constant dense<0xFF800000> : vector<8xf32>
    %137 = vector.multi_reduction <maximumf>, %136, %cst_51 [1] : vector<8x8xf32> to vector<8xf32>
    %138 = vector.shape_cast %137 : vector<8xf32> to vector<8x1xf32>
    %139 = vector.broadcast %138 : vector<8x1xf32> to vector<8x8xf32>
    %140 = arith.subf %136, %139 : vector<8x8xf32>
    %141 = math.exp %140 : vector<8x8xf32>
    %cst_52 = arith.constant dense<0.000000e+00> : vector<8xf32>
    %142 = vector.multi_reduction <add>, %141, %cst_52 [1] : vector<8x8xf32> to vector<8xf32>
    %143 = vector.shape_cast %142 : vector<8xf32> to vector<8x1xf32>
    %144 = tpu.reciprocal %143 {approx = true} : vector<8x1xf32> -> vector<8x1xf32>
    %145 = vector.broadcast %144 : vector<8x1xf32> to vector<8x8xf32>
    %146 = arith.mulf %141, %145 : vector<8x8xf32>
    %147 = arith.truncf %146 : vector<8x8xf32> to vector<8x8xbf16>
    %cst_53 = arith.constant dense<0.000000e+00> : vector<8x8xf32>
    %148 = tpu.matmul %147, %133, %cst_53 {dimension_numbers = #tpu.dot_dimension_numbers<[1], [0], [0], [1], [0, 0, 1, 1], [], []>} : vector<8x8xbf16>, vector<8x8xbf16>, vector<8x8xf32> -> vector<8x8xf32>
    %149 = arith.truncf %148 : vector<8x8xf32> to vector<8x8xbf16>
    %150 = vector.extract_strided_slice %47 {offsets = [24, 0], sizes = [8, 32], strides = [1, 1]} : vector<32x32xbf16> to vector<8x32xbf16>
    %cst_54 = arith.constant dense<0.000000e+00> : vector<8x32xf32>
    %151 = tpu.matmul %149, %150, %cst_54 {dimension_numbers = #tpu.dot_dimension_numbers<[1], [0], [0], [1], [0, 0, 1, 1], [], []>} : vector<8x8xbf16>, vector<8x32xbf16>, vector<8x32xf32> -> vector<8x32xf32>
    %152 = arith.addf %127, %151 : vector<8x32xf32>
    %153 = arith.addf %37, %152 : vector<8x32xf32>
    %c0_55 = arith.constant 0 : index
    %c0_56 = arith.constant 0 : index
    %c0_57 = arith.constant 0 : index
    %154 = vector.load %arg11[%c0_55, %c0_56, %c0_57] : memref<2x1x32xf32, #tpu.memory_space<vmem>>, vector<1x1x32xf32>
    %155 = vector.shape_cast %154 : vector<1x1x32xf32> to vector<1x32xf32>
    %c0_58 = arith.constant 0 : index
    %c0_59 = arith.constant 0 : index
    %c0_60 = arith.constant 0 : index
    %156 = vector.load %arg12[%c0_58, %c0_59, %c0_60] : memref<2x1x32xf32, #tpu.memory_space<vmem>>, vector<1x1x32xf32>
    %157 = vector.shape_cast %156 : vector<1x1x32xf32> to vector<1x32xf32>
    %cst_61 = arith.constant dense<0.000000e+00> : vector<8xf32>
    %158 = vector.multi_reduction <add>, %153, %cst_61 [1] : vector<8x32xf32> to vector<8xf32>
    %159 = vector.shape_cast %158 : vector<8xf32> to vector<8x1xf32>
    %cst_62 = arith.constant 3.200000e+01 : f32
    %160 = vector.broadcast %cst_62 : f32 to vector<8x1xf32>
    %161 = arith.divf %159, %160 : vector<8x1xf32>
    %162 = vector.broadcast %161 : vector<8x1xf32> to vector<8x32xf32>
    %163 = arith.subf %153, %162 : vector<8x32xf32>
    %164 = arith.mulf %163, %163 : vector<8x32xf32>
    %cst_63 = arith.constant dense<0.000000e+00> : vector<8xf32>
    %165 = vector.multi_reduction <add>, %164, %cst_63 [1] : vector<8x32xf32> to vector<8xf32>
    %166 = vector.shape_cast %165 : vector<8xf32> to vector<8x1xf32>
    %cst_64 = arith.constant 3.200000e+01 : f32
    %167 = vector.broadcast %cst_64 : f32 to vector<8x1xf32>
    %168 = arith.divf %166, %167 : vector<8x1xf32>
    %169 = vector.broadcast %161 : vector<8x1xf32> to vector<8x32xf32>
    %170 = arith.subf %153, %169 : vector<8x32xf32>
    %cst_65 = arith.constant 9.99999996E-13 : f32
    %171 = vector.broadcast %cst_65 : f32 to vector<8x1xf32>
    %172 = arith.addf %168, %171 : vector<8x1xf32>
    %173 = math.rsqrt %172 : vector<8x1xf32>
    %174 = vector.broadcast %173 : vector<8x1xf32> to vector<8x32xf32>
    %175 = arith.mulf %170, %174 : vector<8x32xf32>
    %176 = vector.broadcast %155 : vector<1x32xf32> to vector<8x32xf32>
    %177 = arith.mulf %175, %176 : vector<8x32xf32>
    %178 = vector.broadcast %157 : vector<1x32xf32> to vector<8x32xf32>
    %179 = arith.addf %177, %178 : vector<8x32xf32>
    %180 = arith.truncf %179 : vector<8x32xf32> to vector<8x32xbf16>
    %c0_66 = arith.constant 0 : index
    %c0_67 = arith.constant 0 : index
    %c0_68 = arith.constant 0 : index
    %181 = vector.load %arg13[%c0_66, %c0_67, %c0_68] : memref<2x32x64xbf16, #tpu.memory_space<vmem>>, vector<1x32x64xbf16>
    %182 = vector.shape_cast %181 : vector<1x32x64xbf16> to vector<32x64xbf16>
    %cst_69 = arith.constant dense<0.000000e+00> : vector<8x64xf32>
    %183 = tpu.matmul %180, %182, %cst_69 {dimension_numbers = #tpu.dot_dimension_numbers<[1], [0], [0], [1], [0, 0, 1, 1], [], []>} : vector<8x32xbf16>, vector<32x64xbf16>, vector<8x64xf32> -> vector<8x64xf32>
    %c0_70 = arith.constant 0 : index
    %c0_71 = arith.constant 0 : index
    %c0_72 = arith.constant 0 : index
    %184 = vector.load %arg14[%c0_70, %c0_71, %c0_72] : memref<2x1x64xf32, #tpu.memory_space<vmem>>, vector<1x1x64xf32>
    %185 = vector.shape_cast %184 : vector<1x1x64xf32> to vector<1x64xf32>
    %186 = vector.broadcast %185 : vector<1x64xf32> to vector<8x64xf32>
    %187 = arith.addf %183, %186 : vector<8x64xf32>
    %188 = arith.mulf %187, %187 : vector<8x64xf32>
    %189 = arith.mulf %187, %188 : vector<8x64xf32>
    %cst_73 = arith.constant 4.471500e-02 : f32
    %190 = vector.broadcast %cst_73 : f32 to vector<8x64xf32>
    %191 = arith.mulf %190, %189 : vector<8x64xf32>
    %192 = arith.addf %187, %191 : vector<8x64xf32>
    %cst_74 = arith.constant 0.797884583 : f32
    %193 = vector.broadcast %cst_74 : f32 to vector<8x64xf32>
    %194 = arith.mulf %193, %192 : vector<8x64xf32>
    %195 = math.tanh %194 : vector<8x64xf32>
    %cst_75 = arith.constant 1.000000e+00 : f32
    %196 = vector.broadcast %cst_75 : f32 to vector<8x64xf32>
    %197 = arith.addf %196, %195 : vector<8x64xf32>
    %cst_76 = arith.constant 5.000000e-01 : f32
    %198 = vector.broadcast %cst_76 : f32 to vector<8x64xf32>
    %199 = arith.mulf %198, %197 : vector<8x64xf32>
    %200 = arith.mulf %187, %199 : vector<8x64xf32>
    %201 = arith.truncf %200 : vector<8x64xf32> to vector<8x64xbf16>
    %c0_77 = arith.constant 0 : index
    %c0_78 = arith.constant 0 : index
    %c0_79 = arith.constant 0 : index
    %202 = vector.load %arg15[%c0_77, %c0_78, %c0_79] : memref<2x64x32xbf16, #tpu.memory_space<vmem>>, vector<1x64x32xbf16>
    %203 = vector.shape_cast %202 : vector<1x64x32xbf16> to vector<64x32xbf16>
    %cst_80 = arith.constant dense<0.000000e+00> : vector<8x32xf32>
    %204 = tpu.matmul %201, %203, %cst_80 {dimension_numbers = #tpu.dot_dimension_numbers<[1], [0], [0], [1], [0, 0, 1, 1], [], []>} : vector<8x64xbf16>, vector<64x32xbf16>, vector<8x32xf32> -> vector<8x32xf32>
    %c0_81 = arith.constant 0 : index
    %c0_82 = arith.constant 0 : index
    %c0_83 = arith.constant 0 : index
    %205 = vector.load %arg16[%c0_81, %c0_82, %c0_83] : memref<2x1x32xf32, #tpu.memory_space<vmem>>, vector<1x1x32xf32>
    %206 = vector.shape_cast %205 : vector<1x1x32xf32> to vector<1x32xf32>
    %207 = vector.broadcast %206 : vector<1x32xf32> to vector<8x32xf32>
    %208 = arith.addf %204, %207 : vector<8x32xf32>
    %209 = arith.addf %179, %208 : vector<8x32xf32>
    %c0_84 = arith.constant 0 : index
    %c0_85 = arith.constant 0 : index
    %c0_86 = arith.constant 0 : index
    %210 = vector.load %arg17[%c0_84, %c0_85, %c0_86] : memref<2x1x32xf32, #tpu.memory_space<vmem>>, vector<1x1x32xf32>
    %211 = vector.shape_cast %210 : vector<1x1x32xf32> to vector<1x32xf32>
    %c0_87 = arith.constant 0 : index
    %c0_88 = arith.constant 0 : index
    %c0_89 = arith.constant 0 : index
    %212 = vector.load %arg18[%c0_87, %c0_88, %c0_89] : memref<2x1x32xf32, #tpu.memory_space<vmem>>, vector<1x1x32xf32>
    %213 = vector.shape_cast %212 : vector<1x1x32xf32> to vector<1x32xf32>
    %cst_90 = arith.constant dense<0.000000e+00> : vector<8xf32>
    %214 = vector.multi_reduction <add>, %209, %cst_90 [1] : vector<8x32xf32> to vector<8xf32>
    %215 = vector.shape_cast %214 : vector<8xf32> to vector<8x1xf32>
    %cst_91 = arith.constant 3.200000e+01 : f32
    %216 = vector.broadcast %cst_91 : f32 to vector<8x1xf32>
    %217 = arith.divf %215, %216 : vector<8x1xf32>
    %218 = vector.broadcast %217 : vector<8x1xf32> to vector<8x32xf32>
    %219 = arith.subf %209, %218 : vector<8x32xf32>
    %220 = arith.mulf %219, %219 : vector<8x32xf32>
    %cst_92 = arith.constant dense<0.000000e+00> : vector<8xf32>
    %221 = vector.multi_reduction <add>, %220, %cst_92 [1] : vector<8x32xf32> to vector<8xf32>
    %222 = vector.shape_cast %221 : vector<8xf32> to vector<8x1xf32>
    %cst_93 = arith.constant 3.200000e+01 : f32
    %223 = vector.broadcast %cst_93 : f32 to vector<8x1xf32>
    %224 = arith.divf %222, %223 : vector<8x1xf32>
    %225 = vector.broadcast %217 : vector<8x1xf32> to vector<8x32xf32>
    %226 = arith.subf %209, %225 : vector<8x32xf32>
    %cst_94 = arith.constant 9.99999996E-13 : f32
    %227 = vector.broadcast %cst_94 : f32 to vector<8x1xf32>
    %228 = arith.addf %224, %227 : vector<8x1xf32>
    %229 = math.rsqrt %228 : vector<8x1xf32>
    %230 = vector.broadcast %229 : vector<8x1xf32> to vector<8x32xf32>
    %231 = arith.mulf %226, %230 : vector<8x32xf32>
    %232 = vector.broadcast %211 : vector<1x32xf32> to vector<8x32xf32>
    %233 = arith.mulf %231, %232 : vector<8x32xf32>
    %234 = vector.broadcast %213 : vector<1x32xf32> to vector<8x32xf32>
    %235 = arith.addf %233, %234 : vector<8x32xf32>
    %236 = arith.truncf %235 : vector<8x32xf32> to vector<8x32xbf16>
    %c1 = arith.constant 1 : index
    %c0_95 = arith.constant 0 : index
    %c0_96 = arith.constant 0 : index
    %237 = vector.load %arg7[%c1, %c0_95, %c0_96] : memref<2x32x96xbf16, #tpu.memory_space<vmem>>, vector<1x32x96xbf16>
    %238 = vector.shape_cast %237 : vector<1x32x96xbf16> to vector<32x96xbf16>
    %cst_97 = arith.constant dense<0.000000e+00> : vector<8x96xf32>
    %239 = tpu.matmul %236, %238, %cst_97 {dimension_numbers = #tpu.dot_dimension_numbers<[1], [0], [0], [1], [0, 0, 1, 1], [], []>} : vector<8x32xbf16>, vector<32x96xbf16>, vector<8x96xf32> -> vector<8x96xf32>
    %c1_98 = arith.constant 1 : index
    %c0_99 = arith.constant 0 : index
    %c0_100 = arith.constant 0 : index
    %240 = vector.load %arg8[%c1_98, %c0_99, %c0_100] : memref<2x1x96xf32, #tpu.memory_space<vmem>>, vector<1x1x96xf32>
    %241 = vector.shape_cast %240 : vector<1x1x96xf32> to vector<1x96xf32>
    %242 = vector.broadcast %241 : vector<1x96xf32> to vector<8x96xf32>
    %243 = arith.addf %239, %242 : vector<8x96xf32>
    %c1_101 = arith.constant 1 : index
    %c0_102 = arith.constant 0 : index
    %c0_103 = arith.constant 0 : index
    %244 = vector.load %arg9[%c1_101, %c0_102, %c0_103] : memref<2x32x32xbf16, #tpu.memory_space<vmem>>, vector<1x32x32xbf16>
    %245 = vector.shape_cast %244 : vector<1x32x32xbf16> to vector<32x32xbf16>
    %cst_104 = arith.constant 0.000000e+00 : f32
    %246 = vector.broadcast %cst_104 : f32 to vector<8x32xf32>
    %c1_105 = arith.constant 1 : index
    %c0_106 = arith.constant 0 : index
    %c0_107 = arith.constant 0 : index
    %247 = vector.load %arg10[%c1_105, %c0_106, %c0_107] : memref<2x1x32xf32, #tpu.memory_space<vmem>>, vector<1x1x32xf32>
    %248 = vector.shape_cast %247 : vector<1x1x32xf32> to vector<1x32xf32>
    %249 = vector.broadcast %248 : vector<1x32xf32> to vector<8x32xf32>
    %250 = arith.addf %246, %249 : vector<8x32xf32>
    %251 = vector.extract_strided_slice %243 {offsets = [0, 0], sizes = [8, 8], strides = [1, 1]} : vector<8x96xf32> to vector<8x8xf32>
    %252 = arith.truncf %251 : vector<8x8xf32> to vector<8x8xbf16>
    %253 = vector.extract_strided_slice %243 {offsets = [0, 32], sizes = [8, 8], strides = [1, 1]} : vector<8x96xf32> to vector<8x8xf32>
    %254 = arith.truncf %253 : vector<8x8xf32> to vector<8x8xbf16>
    %255 = vector.extract_strided_slice %243 {offsets = [0, 64], sizes = [8, 8], strides = [1, 1]} : vector<8x96xf32> to vector<8x8xf32>
    %256 = arith.truncf %255 : vector<8x8xf32> to vector<8x8xbf16>
    %cst_108 = arith.constant dense<0.000000e+00> : vector<8x8xf32>
    %257 = tpu.matmul %252, %254, %cst_108 {dimension_numbers = #tpu.dot_dimension_numbers<[1], [1], [0], [0], [0, 0, 1, 0], [], []>} : vector<8x8xbf16>, vector<8x8xbf16>, vector<8x8xf32> -> vector<8x8xf32>
    %cst_109 = arith.constant 0.353553385 : f32
    %258 = vector.broadcast %cst_109 : f32 to vector<8x8xf32>
    %259 = arith.mulf %257, %258 : vector<8x8xf32>
    %cst_110 = arith.constant dense<0xFF800000> : vector<8xf32>
    %260 = vector.multi_reduction <maximumf>, %259, %cst_110 [1] : vector<8x8xf32> to vector<8xf32>
    %261 = vector.shape_cast %260 : vector<8xf32> to vector<8x1xf32>
    %262 = vector.broadcast %261 : vector<8x1xf32> to vector<8x8xf32>
    %263 = arith.subf %259, %262 : vector<8x8xf32>
    %264 = math.exp %263 : vector<8x8xf32>
    %cst_111 = arith.constant dense<0.000000e+00> : vector<8xf32>
    %265 = vector.multi_reduction <add>, %264, %cst_111 [1] : vector<8x8xf32> to vector<8xf32>
    %266 = vector.shape_cast %265 : vector<8xf32> to vector<8x1xf32>
    %267 = tpu.reciprocal %266 {approx = true} : vector<8x1xf32> -> vector<8x1xf32>
    %268 = vector.broadcast %267 : vector<8x1xf32> to vector<8x8xf32>
    %269 = arith.mulf %264, %268 : vector<8x8xf32>
    %270 = arith.truncf %269 : vector<8x8xf32> to vector<8x8xbf16>
    %cst_112 = arith.constant dense<0.000000e+00> : vector<8x8xf32>
    %271 = tpu.matmul %270, %256, %cst_112 {dimension_numbers = #tpu.dot_dimension_numbers<[1], [0], [0], [1], [0, 0, 1, 1], [], []>} : vector<8x8xbf16>, vector<8x8xbf16>, vector<8x8xf32> -> vector<8x8xf32>
    %272 = arith.truncf %271 : vector<8x8xf32> to vector<8x8xbf16>
    %273 = vector.extract_strided_slice %245 {offsets = [0, 0], sizes = [8, 32], strides = [1, 1]} : vector<32x32xbf16> to vector<8x32xbf16>
    %cst_113 = arith.constant dense<0.000000e+00> : vector<8x32xf32>
    %274 = tpu.matmul %272, %273, %cst_113 {dimension_numbers = #tpu.dot_dimension_numbers<[1], [0], [0], [1], [0, 0, 1, 1], [], []>} : vector<8x8xbf16>, vector<8x32xbf16>, vector<8x32xf32> -> vector<8x32xf32>
    %275 = arith.addf %250, %274 : vector<8x32xf32>
    %276 = vector.extract_strided_slice %243 {offsets = [0, 8], sizes = [8, 8], strides = [1, 1]} : vector<8x96xf32> to vector<8x8xf32>
    %277 = arith.truncf %276 : vector<8x8xf32> to vector<8x8xbf16>
    %278 = vector.extract_strided_slice %243 {offsets = [0, 40], sizes = [8, 8], strides = [1, 1]} : vector<8x96xf32> to vector<8x8xf32>
    %279 = arith.truncf %278 : vector<8x8xf32> to vector<8x8xbf16>
    %280 = vector.extract_strided_slice %243 {offsets = [0, 72], sizes = [8, 8], strides = [1, 1]} : vector<8x96xf32> to vector<8x8xf32>
    %281 = arith.truncf %280 : vector<8x8xf32> to vector<8x8xbf16>
    %cst_114 = arith.constant dense<0.000000e+00> : vector<8x8xf32>
    %282 = tpu.matmul %277, %279, %cst_114 {dimension_numbers = #tpu.dot_dimension_numbers<[1], [1], [0], [0], [0, 0, 1, 0], [], []>} : vector<8x8xbf16>, vector<8x8xbf16>, vector<8x8xf32> -> vector<8x8xf32>
    %cst_115 = arith.constant 0.353553385 : f32
    %283 = vector.broadcast %cst_115 : f32 to vector<8x8xf32>
    %284 = arith.mulf %282, %283 : vector<8x8xf32>
    %cst_116 = arith.constant dense<0xFF800000> : vector<8xf32>
    %285 = vector.multi_reduction <maximumf>, %284, %cst_116 [1] : vector<8x8xf32> to vector<8xf32>
    %286 = vector.shape_cast %285 : vector<8xf32> to vector<8x1xf32>
    %287 = vector.broadcast %286 : vector<8x1xf32> to vector<8x8xf32>
    %288 = arith.subf %284, %287 : vector<8x8xf32>
    %289 = math.exp %288 : vector<8x8xf32>
    %cst_117 = arith.constant dense<0.000000e+00> : vector<8xf32>
    %290 = vector.multi_reduction <add>, %289, %cst_117 [1] : vector<8x8xf32> to vector<8xf32>
    %291 = vector.shape_cast %290 : vector<8xf32> to vector<8x1xf32>
    %292 = tpu.reciprocal %291 {approx = true} : vector<8x1xf32> -> vector<8x1xf32>
    %293 = vector.broadcast %292 : vector<8x1xf32> to vector<8x8xf32>
    %294 = arith.mulf %289, %293 : vector<8x8xf32>
    %295 = arith.truncf %294 : vector<8x8xf32> to vector<8x8xbf16>
    %cst_118 = arith.constant dense<0.000000e+00> : vector<8x8xf32>
    %296 = tpu.matmul %295, %281, %cst_118 {dimension_numbers = #tpu.dot_dimension_numbers<[1], [0], [0], [1], [0, 0, 1, 1], [], []>} : vector<8x8xbf16>, vector<8x8xbf16>, vector<8x8xf32> -> vector<8x8xf32>
    %297 = arith.truncf %296 : vector<8x8xf32> to vector<8x8xbf16>
    %298 = vector.extract_strided_slice %245 {offsets = [8, 0], sizes = [8, 32], strides = [1, 1]} : vector<32x32xbf16> to vector<8x32xbf16>
    %cst_119 = arith.constant dense<0.000000e+00> : vector<8x32xf32>
    %299 = tpu.matmul %297, %298, %cst_119 {dimension_numbers = #tpu.dot_dimension_numbers<[1], [0], [0], [1], [0, 0, 1, 1], [], []>} : vector<8x8xbf16>, vector<8x32xbf16>, vector<8x32xf32> -> vector<8x32xf32>
    %300 = arith.addf %275, %299 : vector<8x32xf32>
    %301 = vector.extract_strided_slice %243 {offsets = [0, 16], sizes = [8, 8], strides = [1, 1]} : vector<8x96xf32> to vector<8x8xf32>
    %302 = arith.truncf %301 : vector<8x8xf32> to vector<8x8xbf16>
    %303 = vector.extract_strided_slice %243 {offsets = [0, 48], sizes = [8, 8], strides = [1, 1]} : vector<8x96xf32> to vector<8x8xf32>
    %304 = arith.truncf %303 : vector<8x8xf32> to vector<8x8xbf16>
    %305 = vector.extract_strided_slice %243 {offsets = [0, 80], sizes = [8, 8], strides = [1, 1]} : vector<8x96xf32> to vector<8x8xf32>
    %306 = arith.truncf %305 : vector<8x8xf32> to vector<8x8xbf16>
    %cst_120 = arith.constant dense<0.000000e+00> : vector<8x8xf32>
    %307 = tpu.matmul %302, %304, %cst_120 {dimension_numbers = #tpu.dot_dimension_numbers<[1], [1], [0], [0], [0, 0, 1, 0], [], []>} : vector<8x8xbf16>, vector<8x8xbf16>, vector<8x8xf32> -> vector<8x8xf32>
    %cst_121 = arith.constant 0.353553385 : f32
    %308 = vector.broadcast %cst_121 : f32 to vector<8x8xf32>
    %309 = arith.mulf %307, %308 : vector<8x8xf32>
    %cst_122 = arith.constant dense<0xFF800000> : vector<8xf32>
    %310 = vector.multi_reduction <maximumf>, %309, %cst_122 [1] : vector<8x8xf32> to vector<8xf32>
    %311 = vector.shape_cast %310 : vector<8xf32> to vector<8x1xf32>
    %312 = vector.broadcast %311 : vector<8x1xf32> to vector<8x8xf32>
    %313 = arith.subf %309, %312 : vector<8x8xf32>
    %314 = math.exp %313 : vector<8x8xf32>
    %cst_123 = arith.constant dense<0.000000e+00> : vector<8xf32>
    %315 = vector.multi_reduction <add>, %314, %cst_123 [1] : vector<8x8xf32> to vector<8xf32>
    %316 = vector.shape_cast %315 : vector<8xf32> to vector<8x1xf32>
    %317 = tpu.reciprocal %316 {approx = true} : vector<8x1xf32> -> vector<8x1xf32>
    %318 = vector.broadcast %317 : vector<8x1xf32> to vector<8x8xf32>
    %319 = arith.mulf %314, %318 : vector<8x8xf32>
    %320 = arith.truncf %319 : vector<8x8xf32> to vector<8x8xbf16>
    %cst_124 = arith.constant dense<0.000000e+00> : vector<8x8xf32>
    %321 = tpu.matmul %320, %306, %cst_124 {dimension_numbers = #tpu.dot_dimension_numbers<[1], [0], [0], [1], [0, 0, 1, 1], [], []>} : vector<8x8xbf16>, vector<8x8xbf16>, vector<8x8xf32> -> vector<8x8xf32>
    %322 = arith.truncf %321 : vector<8x8xf32> to vector<8x8xbf16>
    %323 = vector.extract_strided_slice %245 {offsets = [16, 0], sizes = [8, 32], strides = [1, 1]} : vector<32x32xbf16> to vector<8x32xbf16>
    %cst_125 = arith.constant dense<0.000000e+00> : vector<8x32xf32>
    %324 = tpu.matmul %322, %323, %cst_125 {dimension_numbers = #tpu.dot_dimension_numbers<[1], [0], [0], [1], [0, 0, 1, 1], [], []>} : vector<8x8xbf16>, vector<8x32xbf16>, vector<8x32xf32> -> vector<8x32xf32>
    %325 = arith.addf %300, %324 : vector<8x32xf32>
    %326 = vector.extract_strided_slice %243 {offsets = [0, 24], sizes = [8, 8], strides = [1, 1]} : vector<8x96xf32> to vector<8x8xf32>
    %327 = arith.truncf %326 : vector<8x8xf32> to vector<8x8xbf16>
    %328 = vector.extract_strided_slice %243 {offsets = [0, 56], sizes = [8, 8], strides = [1, 1]} : vector<8x96xf32> to vector<8x8xf32>
    %329 = arith.truncf %328 : vector<8x8xf32> to vector<8x8xbf16>
    %330 = vector.extract_strided_slice %243 {offsets = [0, 88], sizes = [8, 8], strides = [1, 1]} : vector<8x96xf32> to vector<8x8xf32>
    %331 = arith.truncf %330 : vector<8x8xf32> to vector<8x8xbf16>
    %cst_126 = arith.constant dense<0.000000e+00> : vector<8x8xf32>
    %332 = tpu.matmul %327, %329, %cst_126 {dimension_numbers = #tpu.dot_dimension_numbers<[1], [1], [0], [0], [0, 0, 1, 0], [], []>} : vector<8x8xbf16>, vector<8x8xbf16>, vector<8x8xf32> -> vector<8x8xf32>
    %cst_127 = arith.constant 0.353553385 : f32
    %333 = vector.broadcast %cst_127 : f32 to vector<8x8xf32>
    %334 = arith.mulf %332, %333 : vector<8x8xf32>
    %cst_128 = arith.constant dense<0xFF800000> : vector<8xf32>
    %335 = vector.multi_reduction <maximumf>, %334, %cst_128 [1] : vector<8x8xf32> to vector<8xf32>
    %336 = vector.shape_cast %335 : vector<8xf32> to vector<8x1xf32>
    %337 = vector.broadcast %336 : vector<8x1xf32> to vector<8x8xf32>
    %338 = arith.subf %334, %337 : vector<8x8xf32>
    %339 = math.exp %338 : vector<8x8xf32>
    %cst_129 = arith.constant dense<0.000000e+00> : vector<8xf32>
    %340 = vector.multi_reduction <add>, %339, %cst_129 [1] : vector<8x8xf32> to vector<8xf32>
    %341 = vector.shape_cast %340 : vector<8xf32> to vector<8x1xf32>
    %342 = tpu.reciprocal %341 {approx = true} : vector<8x1xf32> -> vector<8x1xf32>
    %343 = vector.broadcast %342 : vector<8x1xf32> to vector<8x8xf32>
    %344 = arith.mulf %339, %343 : vector<8x8xf32>
    %345 = arith.truncf %344 : vector<8x8xf32> to vector<8x8xbf16>
    %cst_130 = arith.constant dense<0.000000e+00> : vector<8x8xf32>
    %346 = tpu.matmul %345, %331, %cst_130 {dimension_numbers = #tpu.dot_dimension_numbers<[1], [0], [0], [1], [0, 0, 1, 1], [], []>} : vector<8x8xbf16>, vector<8x8xbf16>, vector<8x8xf32> -> vector<8x8xf32>
    %347 = arith.truncf %346 : vector<8x8xf32> to vector<8x8xbf16>
    %348 = vector.extract_strided_slice %245 {offsets = [24, 0], sizes = [8, 32], strides = [1, 1]} : vector<32x32xbf16> to vector<8x32xbf16>
    %cst_131 = arith.constant dense<0.000000e+00> : vector<8x32xf32>
    %349 = tpu.matmul %347, %348, %cst_131 {dimension_numbers = #tpu.dot_dimension_numbers<[1], [0], [0], [1], [0, 0, 1, 1], [], []>} : vector<8x8xbf16>, vector<8x32xbf16>, vector<8x32xf32> -> vector<8x32xf32>
    %350 = arith.addf %325, %349 : vector<8x32xf32>
    %351 = arith.addf %235, %350 : vector<8x32xf32>
    %c1_132 = arith.constant 1 : index
    %c0_133 = arith.constant 0 : index
    %c0_134 = arith.constant 0 : index
    %352 = vector.load %arg11[%c1_132, %c0_133, %c0_134] : memref<2x1x32xf32, #tpu.memory_space<vmem>>, vector<1x1x32xf32>
    %353 = vector.shape_cast %352 : vector<1x1x32xf32> to vector<1x32xf32>
    %c1_135 = arith.constant 1 : index
    %c0_136 = arith.constant 0 : index
    %c0_137 = arith.constant 0 : index
    %354 = vector.load %arg12[%c1_135, %c0_136, %c0_137] : memref<2x1x32xf32, #tpu.memory_space<vmem>>, vector<1x1x32xf32>
    %355 = vector.shape_cast %354 : vector<1x1x32xf32> to vector<1x32xf32>
    %cst_138 = arith.constant dense<0.000000e+00> : vector<8xf32>
    %356 = vector.multi_reduction <add>, %351, %cst_138 [1] : vector<8x32xf32> to vector<8xf32>
    %357 = vector.shape_cast %356 : vector<8xf32> to vector<8x1xf32>
    %cst_139 = arith.constant 3.200000e+01 : f32
    %358 = vector.broadcast %cst_139 : f32 to vector<8x1xf32>
    %359 = arith.divf %357, %358 : vector<8x1xf32>
    %360 = vector.broadcast %359 : vector<8x1xf32> to vector<8x32xf32>
    %361 = arith.subf %351, %360 : vector<8x32xf32>
    %362 = arith.mulf %361, %361 : vector<8x32xf32>
    %cst_140 = arith.constant dense<0.000000e+00> : vector<8xf32>
    %363 = vector.multi_reduction <add>, %362, %cst_140 [1] : vector<8x32xf32> to vector<8xf32>
    %364 = vector.shape_cast %363 : vector<8xf32> to vector<8x1xf32>
    %cst_141 = arith.constant 3.200000e+01 : f32
    %365 = vector.broadcast %cst_141 : f32 to vector<8x1xf32>
    %366 = arith.divf %364, %365 : vector<8x1xf32>
    %367 = vector.broadcast %359 : vector<8x1xf32> to vector<8x32xf32>
    %368 = arith.subf %351, %367 : vector<8x32xf32>
    %cst_142 = arith.constant 9.99999996E-13 : f32
    %369 = vector.broadcast %cst_142 : f32 to vector<8x1xf32>
    %370 = arith.addf %366, %369 : vector<8x1xf32>
    %371 = math.rsqrt %370 : vector<8x1xf32>
    %372 = vector.broadcast %371 : vector<8x1xf32> to vector<8x32xf32>
    %373 = arith.mulf %368, %372 : vector<8x32xf32>
    %374 = vector.broadcast %353 : vector<1x32xf32> to vector<8x32xf32>
    %375 = arith.mulf %373, %374 : vector<8x32xf32>
    %376 = vector.broadcast %355 : vector<1x32xf32> to vector<8x32xf32>
    %377 = arith.addf %375, %376 : vector<8x32xf32>
    %378 = arith.truncf %377 : vector<8x32xf32> to vector<8x32xbf16>
    %c1_143 = arith.constant 1 : index
    %c0_144 = arith.constant 0 : index
    %c0_145 = arith.constant 0 : index
    %379 = vector.load %arg13[%c1_143, %c0_144, %c0_145] : memref<2x32x64xbf16, #tpu.memory_space<vmem>>, vector<1x32x64xbf16>
    %380 = vector.shape_cast %379 : vector<1x32x64xbf16> to vector<32x64xbf16>
    %cst_146 = arith.constant dense<0.000000e+00> : vector<8x64xf32>
    %381 = tpu.matmul %378, %380, %cst_146 {dimension_numbers = #tpu.dot_dimension_numbers<[1], [0], [0], [1], [0, 0, 1, 1], [], []>} : vector<8x32xbf16>, vector<32x64xbf16>, vector<8x64xf32> -> vector<8x64xf32>
    %c1_147 = arith.constant 1 : index
    %c0_148 = arith.constant 0 : index
    %c0_149 = arith.constant 0 : index
    %382 = vector.load %arg14[%c1_147, %c0_148, %c0_149] : memref<2x1x64xf32, #tpu.memory_space<vmem>>, vector<1x1x64xf32>
    %383 = vector.shape_cast %382 : vector<1x1x64xf32> to vector<1x64xf32>
    %384 = vector.broadcast %383 : vector<1x64xf32> to vector<8x64xf32>
    %385 = arith.addf %381, %384 : vector<8x64xf32>
    %386 = arith.mulf %385, %385 : vector<8x64xf32>
    %387 = arith.mulf %385, %386 : vector<8x64xf32>
    %cst_150 = arith.constant 4.471500e-02 : f32
    %388 = vector.broadcast %cst_150 : f32 to vector<8x64xf32>
    %389 = arith.mulf %388, %387 : vector<8x64xf32>
    %390 = arith.addf %385, %389 : vector<8x64xf32>
    %cst_151 = arith.constant 0.797884583 : f32
    %391 = vector.broadcast %cst_151 : f32 to vector<8x64xf32>
    %392 = arith.mulf %391, %390 : vector<8x64xf32>
    %393 = math.tanh %392 : vector<8x64xf32>
    %cst_152 = arith.constant 1.000000e+00 : f32
    %394 = vector.broadcast %cst_152 : f32 to vector<8x64xf32>
    %395 = arith.addf %394, %393 : vector<8x64xf32>
    %cst_153 = arith.constant 5.000000e-01 : f32
    %396 = vector.broadcast %cst_153 : f32 to vector<8x64xf32>
    %397 = arith.mulf %396, %395 : vector<8x64xf32>
    %398 = arith.mulf %385, %397 : vector<8x64xf32>
    %399 = arith.truncf %398 : vector<8x64xf32> to vector<8x64xbf16>
    %c1_154 = arith.constant 1 : index
    %c0_155 = arith.constant 0 : index
    %c0_156 = arith.constant 0 : index
    %400 = vector.load %arg15[%c1_154, %c0_155, %c0_156] : memref<2x64x32xbf16, #tpu.memory_space<vmem>>, vector<1x64x32xbf16>
    %401 = vector.shape_cast %400 : vector<1x64x32xbf16> to vector<64x32xbf16>
    %cst_157 = arith.constant dense<0.000000e+00> : vector<8x32xf32>
    %402 = tpu.matmul %399, %401, %cst_157 {dimension_numbers = #tpu.dot_dimension_numbers<[1], [0], [0], [1], [0, 0, 1, 1], [], []>} : vector<8x64xbf16>, vector<64x32xbf16>, vector<8x32xf32> -> vector<8x32xf32>
    %c1_158 = arith.constant 1 : index
    %c0_159 = arith.constant 0 : index
    %c0_160 = arith.constant 0 : index
    %403 = vector.load %arg16[%c1_158, %c0_159, %c0_160] : memref<2x1x32xf32, #tpu.memory_space<vmem>>, vector<1x1x32xf32>
    %404 = vector.shape_cast %403 : vector<1x1x32xf32> to vector<1x32xf32>
    %405 = vector.broadcast %404 : vector<1x32xf32> to vector<8x32xf32>
    %406 = arith.addf %402, %405 : vector<8x32xf32>
    %407 = arith.addf %377, %406 : vector<8x32xf32>
    %c1_161 = arith.constant 1 : index
    %c0_162 = arith.constant 0 : index
    %c0_163 = arith.constant 0 : index
    %408 = vector.load %arg17[%c1_161, %c0_162, %c0_163] : memref<2x1x32xf32, #tpu.memory_space<vmem>>, vector<1x1x32xf32>
    %409 = vector.shape_cast %408 : vector<1x1x32xf32> to vector<1x32xf32>
    %c1_164 = arith.constant 1 : index
    %c0_165 = arith.constant 0 : index
    %c0_166 = arith.constant 0 : index
    %410 = vector.load %arg18[%c1_164, %c0_165, %c0_166] : memref<2x1x32xf32, #tpu.memory_space<vmem>>, vector<1x1x32xf32>
    %411 = vector.shape_cast %410 : vector<1x1x32xf32> to vector<1x32xf32>
    %cst_167 = arith.constant dense<0.000000e+00> : vector<8xf32>
    %412 = vector.multi_reduction <add>, %407, %cst_167 [1] : vector<8x32xf32> to vector<8xf32>
    %413 = vector.shape_cast %412 : vector<8xf32> to vector<8x1xf32>
    %cst_168 = arith.constant 3.200000e+01 : f32
    %414 = vector.broadcast %cst_168 : f32 to vector<8x1xf32>
    %415 = arith.divf %413, %414 : vector<8x1xf32>
    %416 = vector.broadcast %415 : vector<8x1xf32> to vector<8x32xf32>
    %417 = arith.subf %407, %416 : vector<8x32xf32>
    %418 = arith.mulf %417, %417 : vector<8x32xf32>
    %cst_169 = arith.constant dense<0.000000e+00> : vector<8xf32>
    %419 = vector.multi_reduction <add>, %418, %cst_169 [1] : vector<8x32xf32> to vector<8xf32>
    %420 = vector.shape_cast %419 : vector<8xf32> to vector<8x1xf32>
    %cst_170 = arith.constant 3.200000e+01 : f32
    %421 = vector.broadcast %cst_170 : f32 to vector<8x1xf32>
    %422 = arith.divf %420, %421 : vector<8x1xf32>
    %423 = vector.broadcast %415 : vector<8x1xf32> to vector<8x32xf32>
    %424 = arith.subf %407, %423 : vector<8x32xf32>
    %cst_171 = arith.constant 9.99999996E-13 : f32
    %425 = vector.broadcast %cst_171 : f32 to vector<8x1xf32>
    %426 = arith.addf %422, %425 : vector<8x1xf32>
    %427 = math.rsqrt %426 : vector<8x1xf32>
    %428 = vector.broadcast %427 : vector<8x1xf32> to vector<8x32xf32>
    %429 = arith.mulf %424, %428 : vector<8x32xf32>
    %430 = vector.broadcast %409 : vector<1x32xf32> to vector<8x32xf32>
    %431 = arith.mulf %429, %430 : vector<8x32xf32>
    %432 = vector.broadcast %411 : vector<1x32xf32> to vector<8x32xf32>
    %433 = arith.addf %431, %432 : vector<8x32xf32>
    %434 = vector.extract_strided_slice %433 {offsets = [0, 0], sizes = [1, 32], strides = [1, 1]} : vector<8x32xf32> to vector<1x32xf32>
    %435 = arith.truncf %434 : vector<1x32xf32> to vector<1x32xbf16>
    %c0_172 = arith.constant 0 : index
    %c0_173 = arith.constant 0 : index
    %436 = vector.load %arg19[%c0_172, %c0_173] : memref<32x32xbf16, #tpu.memory_space<vmem>>, vector<32x32xbf16>
    %cst_174 = arith.constant dense<0.000000e+00> : vector<1x32xf32>
    %437 = tpu.matmul %435, %436, %cst_174 {dimension_numbers = #tpu.dot_dimension_numbers<[1], [0], [0], [1], [0, 0, 1, 1], [], []>} : vector<1x32xbf16>, vector<32x32xbf16>, vector<1x32xf32> -> vector<1x32xf32>
    %c0_175 = arith.constant 0 : index
    %c0_176 = arith.constant 0 : index
    %438 = vector.load %arg20[%c0_175, %c0_176] : memref<1x32xf32, #tpu.memory_space<vmem>>, vector<1x32xf32>
    %439 = arith.addf %437, %438 : vector<1x32xf32>
    %440 = vector.shape_cast %439 : vector<1x32xf32> to vector<1x1x32xf32>
    %c0_177 = arith.constant 0 : index
    %c0_178 = arith.constant 0 : index
    %c0_179 = arith.constant 0 : index
    %441 = vector.load %arg21[%c0_177, %c0_178, %c0_179] : memref<1x1x32xf32, #tpu.memory_space<vmem>>, vector<1x1x32xf32>
    tpu.vector_store %arg21[%c0_177, %c0_178, %c0_179], %440 {strides = array<i32>} : memref<1x1x32xf32, #tpu.memory_space<vmem>>, vector<1x1x32xf32>,
    return
  }
  func.func @transform_0(%arg0: i32) -> (i32, i32, i32) {
    %c0_i32 = arith.constant 0 : i32
    %c0_i32_0 = arith.constant 0 : i32
    %c0_i32_1 = arith.constant 0 : i32
    return %arg0, %c0_i32, %c0_i32_0 : i32, i32, i32
  }
  func.func @transform_1(%arg0: i32) -> (i32, i32) {
    %c0_i32 = arith.constant 0 : i32
    %c0_i32_0 = arith.constant 0 : i32
    %c0_i32_1 = arith.constant 0 : i32
    return %c0_i32, %c0_i32_0 : i32, i32
  }
  func.func @transform_2(%arg0: i32) -> (i32, i32) {
    %c0_i32 = arith.constant 0 : i32
    %c0_i32_0 = arith.constant 0 : i32
    %c0_i32_1 = arith.constant 0 : i32
    return %c0_i32, %c0_i32_0 : i32, i32
  }
  func.func @transform_3(%arg0: i32) -> (i32, i32) {
    %c0_i32 = arith.constant 0 : i32
    %c0_i32_0 = arith.constant 0 : i32
    %c0_i32_1 = arith.constant 0 : i32
    return %c0_i32, %c0_i32_0 : i32, i32
  }
  func.func @transform_4(%arg0: i32) -> (i32, i32) {
    %c0_i32 = arith.constant 0 : i32
    %c0_i32_0 = arith.constant 0 : i32
    %c0_i32_1 = arith.constant 0 : i32
    return %c0_i32, %c0_i32_0 : i32, i32
  }
  func.func @transform_5(%arg0: i32) -> (i32, i32) {
    %c0_i32 = arith.constant 0 : i32
    %c0_i32_0 = arith.constant 0 : i32
    %c0_i32_1 = arith.constant 0 : i32
    return %c0_i32, %c0_i32_0 : i32, i32
  }
  func.func @transform_6(%arg0: i32) -> (i32, i32, i32) {
    %c0_i32 = arith.constant 0 : i32
    %c0_i32_0 = arith.constant 0 : i32
    %c0_i32_1 = arith.constant 0 : i32
    %c0_i32_2 = arith.constant 0 : i32
    return %c0_i32, %c0_i32_0, %c0_i32_1 : i32, i32, i32
  }
  func.func @transform_7(%arg0: i32) -> (i32, i32, i32) {
    %c0_i32 = arith.constant 0 : i32
    %c0_i32_0 = arith.constant 0 : i32
    %c0_i32_1 = arith.constant 0 : i32
    %c0_i32_2 = arith.constant 0 : i32
    return %c0_i32, %c0_i32_0, %c0_i32_1 : i32, i32, i32
  }
  func.func @transform_8(%arg0: i32) -> (i32, i32, i32) {
    %c0_i32 = arith.constant 0 : i32
    %c0_i32_0 = arith.constant 0 : i32
    %c0_i32_1 = arith.constant 0 : i32
    %c0_i32_2 = arith.constant 0 : i32
    return %c0_i32, %c0_i32_0, %c0_i32_1 : i32, i32, i32
  }
  func.func @transform_9(%arg0: i32) -> (i32, i32, i32) {
    %c0_i32 = arith.constant 0 : i32
    %c0_i32_0 = arith.constant 0 : i32
    %c0_i32_1 = arith.constant 0 : i32
    %c0_i32_2 = arith.constant 0 : i32
    return %c0_i32, %c0_i32_0, %c0_i32_1 : i32, i32, i32
  }
  func.func @transform_10(%arg0: i32) -> (i32, i32, i32) {
    %c0_i32 = arith.constant 0 : i32
    %c0_i32_0 = arith.constant 0 : i32
    %c0_i32_1 = arith.constant 0 : i32
    %c0_i32_2 = arith.constant 0 : i32
    return %c0_i32, %c0_i32_0, %c0_i32_1 : i32, i32, i32
  }
  func.func @transform_11(%arg0: i32) -> (i32, i32, i32) {
    %c0_i32 = arith.constant 0 : i32
    %c0_i32_0 = arith.constant 0 : i32
    %c0_i32_1 = arith.constant 0 : i32
    %c0_i32_2 = arith.constant 0 : i32
    return %c0_i32, %c0_i32_0, %c0_i32_1 : i32, i32, i32
  }
  func.func @transform_12(%arg0: i32) -> (i32, i32, i32) {
    %c0_i32 = arith.constant 0 : i32
    %c0_i32_0 = arith.constant 0 : i32
    %c0_i32_1 = arith.constant 0 : i32
    %c0_i32_2 = arith.constant 0 : i32
    return %c0_i32, %c0_i32_0, %c0_i32_1 : i32, i32, i32
  }
  func.func @transform_13(%arg0: i32) -> (i32, i32, i32) {
    %c0_i32 = arith.constant 0 : i32
    %c0_i32_0 = arith.constant 0 : i32
    %c0_i32_1 = arith.constant 0 : i32
    %c0_i32_2 = arith.constant 0 : i32
    return %c0_i32, %c0_i32_0, %c0_i32_1 : i32, i32, i32
  }
  func.func @transform_14(%arg0: i32) -> (i32, i32, i32) {
    %c0_i32 = arith.constant 0 : i32
    %c0_i32_0 = arith.constant 0 : i32
    %c0_i32_1 = arith.constant 0 : i32
    %c0_i32_2 = arith.constant 0 : i32
    return %c0_i32, %c0_i32_0, %c0_i32_1 : i32, i32, i32
  }
  func.func @transform_15(%arg0: i32) -> (i32, i32, i32) {
    %c0_i32 = arith.constant 0 : i32
    %c0_i32_0 = arith.constant 0 : i32
    %c0_i32_1 = arith.constant 0 : i32
    %c0_i32_2 = arith.constant 0 : i32
    return %c0_i32, %c0_i32_0, %c0_i32_1 : i32, i32, i32
  }
  func.func @transform_16(%arg0: i32) -> (i32, i32, i32) {
    %c0_i32 = arith.constant 0 : i32
    %c0_i32_0 = arith.constant 0 : i32
    %c0_i32_1 = arith.constant 0 : i32
    %c0_i32_2 = arith.constant 0 : i32
    return %c0_i32, %c0_i32_0, %c0_i32_1 : i32, i32, i32
  }
  func.func @transform_17(%arg0: i32) -> (i32, i32, i32) {
    %c0_i32 = arith.constant 0 : i32
    %c0_i32_0 = arith.constant 0 : i32
    %c0_i32_1 = arith.constant 0 : i32
    %c0_i32_2 = arith.constant 0 : i32
    return %c0_i32, %c0_i32_0, %c0_i32_1 : i32, i32, i32
  }
  func.func @transform_18(%arg0: i32) -> (i32, i32) {
    %c0_i32 = arith.constant 0 : i32
    %c0_i32_0 = arith.constant 0 : i32
    %c0_i32_1 = arith.constant 0 : i32
    return %c0_i32, %c0_i32_0 : i32, i32
  }
  func.func @transform_19(%arg0: i32) -> (i32, i32) {
    %c0_i32 = arith.constant 0 : i32
    %c0_i32_0 = arith.constant 0 : i32
    %c0_i32_1 = arith.constant 0 : i32
    return %c0_i32, %c0_i32_0 : i32, i32
  }
  func.func @transform_20(%arg0: i32) -> (i32, i32, i32) {
    %c0_i32 = arith.constant 0 : i32
    %c0_i32_0 = arith.constant 0 : i32
    %c0_i32_1 = arith.constant 0 : i32
    return %arg0, %c0_i32, %c0_i32_0 : i32, i32, i32
  }
}

</mosaic_0001>

<llo_original>
// kernel: tpu_custom_call.1
$region0: #{tpu_custom_call.1}
  #allocation0 [shape = 'u32[]', space=smem, size = 0x4, offset = 0x4, fixed_abs, tag = 'smem constant byte address 0x4 - core index']
  #allocation1 [shape = 'u32[144,128]{1,0:T(1,128)}', space=vmem, size = 0x12000, scoped, tag = 'internal scratch']
  %s0 = inlined_call_operand.vmem [shape: s32[2,8,1], index: 0, kind: input, shape index: {}]
  %s1 = inlined_call_operand.vmem [shape: f32[128,32], index: 1, kind: input, shape index: {}]
  %s2 = inlined_call_operand.vmem [shape: f32[8,32], index: 2, kind: input, shape index: {}]
  %s3 = inlined_call_operand.vmem [shape: f32[1,32], index: 3, kind: input, shape index: {}]
  %s4 = inlined_call_operand.vmem [shape: f32[1,32], index: 4, kind: input, shape index: {}]
  %s5 = inlined_call_operand.vmem [shape: f32[1,32], index: 5, kind: input, shape index: {}]
  %s6 = inlined_call_operand.vmem [shape: bf16[2,32,96], index: 6, kind: input, shape index: {}]
  %s7 = inlined_call_operand.vmem [shape: f32[2,1,96], index: 7, kind: input, shape index: {}]
  %s8 = inlined_call_operand.vmem [shape: bf16[2,32,32], index: 8, kind: input, shape index: {}]
  %s9 = inlined_call_operand.vmem [shape: f32[2,1,32], index: 9, kind: input, shape index: {}]
  %s10 = inlined_call_operand.vmem [shape: f32[2,1,32], index: 10, kind: input, shape index: {}]
  %s11 = inlined_call_operand.vmem [shape: f32[2,1,32], index: 11, kind: input, shape index: {}]
  %s12 = inlined_call_operand.vmem [shape: bf16[2,32,64], index: 12, kind: input, shape index: {}]
  %s13 = inlined_call_operand.vmem [shape: f32[2,1,64], index: 13, kind: input, shape index: {}]
  %s14 = inlined_call_operand.vmem [shape: bf16[2,64,32], index: 14, kind: input, shape index: {}]
  %s15 = inlined_call_operand.vmem [shape: f32[2,1,32], index: 15, kind: input, shape index: {}]
  %s16 = inlined_call_operand.vmem [shape: f32[2,1,32], index: 16, kind: input, shape index: {}]
  %s17 = inlined_call_operand.vmem [shape: f32[2,1,32], index: 17, kind: input, shape index: {}]
  %s18 = inlined_call_operand.vmem [shape: bf16[32,32], index: 18, kind: input, shape index: {}]
  %s19 = inlined_call_operand.vmem [shape: f32[1,32], index: 19, kind: input, shape index: {}]
  %s20 = inlined_call_operand.hbm [shape: f32[2,1,32], index: 20, kind: output, shape index: {}]
  %s21 = sld [smem:[#allocation0]]
  $region113: #{tpu_custom_call.1} parent=0
    _
  %s23 = ssub.s32 1, %s21
  %s24 = scalar_select 0, %s23, %s21
  $region1: #{tpu_custom_call.1} parent=0
    #allocation2 [shape = 'u8[1024]{0}', space=vmem, size = 0x400, scoped, tag = 'output window, operand 0']
    #allocation3 [shape = 's32[2]{0}', space=sflag, size = 0x8, scoped, tag = 'scoped memory for tpu_custom_call.1']
    %25 = vsyncpa [#allocation3], 0
    %s26 = scalar_lea.sflag [#allocation3], 1
    %27 = vsyncpa %s26, 0
    loop: start=0, step=1, limit=4
    $region2: #{tpu_custom_call.1} parent=1 // loop_pre_header
      _
    $region3: #{tpu_custom_call.1} parent=1 // loop_header
      %s29 = sphi 0, %s33
      %p30 = scmp.ge.s32.totalorder %s29, 4
      %s39 = sphi 0, %s41
      %s42 = sphi 0, %s39
      %s43 = sphi 0, %s42
      %s59 = sphi 0, %s43
      %s63 = sphi 0, %s63
      %s65 = sphi 0, %s63
      %s66 = sphi 0, %s65
      %s80 = sphi 0, %s66
      %s84 = sphi 0, %s84
      %s86 = sphi 0, %s84
      %s87 = sphi 0, %s86
      %s101 = sphi 0, %s87
      %s105 = sphi 0, %s105
      %s107 = sphi 0, %s105
      %s108 = sphi 0, %s107
      %s122 = sphi 0, %s108
      %s126 = sphi 0, %s126
      %s128 = sphi 0, %s126
      %s129 = sphi 0, %s128
      %s143 = sphi 0, %s129
      %s147 = sphi 0, %s147
      %s149 = sphi 0, %s147
      %s150 = sphi 0, %s149
      %s164 = sphi 0, %s150
      %s168 = sphi 0, %s168
      %s170 = sphi 0, %s168
      %s171 = sphi 0, %s170
      %s185 = sphi 0, %s171
      %s189 = sphi 0, %s189
      %s191 = sphi 0, %s189
      %s192 = sphi 0, %s191
      %s206 = sphi 0, %s192
      %s210 = sphi 0, %s210
      %s212 = sphi 0, %s210
      %s213 = sphi 0, %s212
      %s227 = sphi 0, %s213
      %s231 = sphi 0, %s231
      %s233 = sphi 0, %s231
      %s234 = sphi 0, %s233
      %s248 = sphi 0, %s234
      %s252 = sphi 0, %s252
      %s254 = sphi 0, %s252
      %s255 = sphi 0, %s254
      %s269 = sphi 0, %s255
      %s273 = sphi 0, %s273
      %s275 = sphi 0, %s273
      %s276 = sphi 0, %s275
      %s290 = sphi 0, %s276
      %s294 = sphi 0, %s294
      %s296 = sphi 0, %s294
      %s297 = sphi 0, %s296
      %s311 = sphi 0, %s297
      %s315 = sphi 0, %s315
      %s317 = sphi 0, %s315
      %s318 = sphi 0, %s317
      %s332 = sphi 0, %s318
      %s336 = sphi 0, %s336
      %s338 = sphi 0, %s336
      %s339 = sphi 0, %s338
      %s353 = sphi 0, %s339
      %s357 = sphi 0, %s357
      %s359 = sphi 0, %s357
      %s360 = sphi 0, %s359
      %s374 = sphi 0, %s360
      %s378 = sphi 0, %s378
      %s380 = sphi 0, %s378
      %s381 = sphi 0, %s380
      %s395 = sphi 0, %s381
      %s399 = sphi 0, %s399
      %s401 = sphi 0, %s399
      %s402 = sphi 0, %s401
      %s416 = sphi 0, %s402
      %s420 = sphi 0, %s420
      %s422 = sphi 0, %s420
      %s423 = sphi 0, %s422
      %s437 = sphi 0, %s423
      %s441 = sphi 0, %s441
      %s443 = sphi 0, %s441
      %s444 = sphi 0, %s443
      %s458 = sphi 0, %s444
      %s464 = sphi 0, %s466
      %s467 = sphi 0, %s464
      %s468 = sphi 0, %s467
      %s484 = sphi 0, %s468
    $region4: #{tpu_custom_call.1} parent=1 // loop_header_branch
      %32 = sbr.rel (%p30) target = $region8
    $region5: #{tpu_custom_call.1} parent=1 // loop_body
      %s34 = ssub.s32 %s29, 1
      %s35 = ssub.s32 %s29, 2
      %s36 = sadd.s32 %s29, 1
      %s37 = ssub.s32 %s29, %s36
      %p38 = scmp.eq.s32.totalorder %s37, 0
      %s40 = sadd.s32 %s39, 1
      %s41 = scalar_select %p38, %s39, %s40
      %p44 = pneg %p38
      %p45 = scmp.eq.s32.totalorder %s29, 1
      %p46 = por %p44, %p45
      %p47 = scmp.ne.s32.totalorder %s39, %s42
      %p48 = scmp.eq.s32.totalorder %s29, 0
      %p49 = por %p47, %p48
      %p50 = scmp.ne.s32.totalorder %s39, %s42
      %p51 = scmp.eq.s32.totalorder %s34, 1
      %p52 = por %p50, %p51
      %p53 = scmp.ne.s32.totalorder %s42, %s43
      %p54 = scmp.eq.s32.totalorder %s34, 0
      %p55 = por %p53, %p54
      %p56 = scmp.ne.s32.totalorder %s42, %s43
      %p57 = scmp.eq.s32.totalorder %s35, 1
      %p58 = por %p56, %p57
      %p60 = scmp.ne.s32.totalorder %s43, %s59
      %p61 = scmp.eq.s32.totalorder %s35, 0
      %p62 = por %p60, %p61
      %s64 = sadd.s32 %s63, 1
      %p67 = scmp.eq.s32.totalorder %s29, 1
      %p68 = scmp.ne.s32.totalorder %s63, %s65
      %p69 = scmp.eq.s32.totalorder %s29, 0
      %p70 = por %p68, %p69
      %p71 = scmp.ne.s32.totalorder %s63, %s65
      %p72 = scmp.eq.s32.totalorder %s34, 1
      %p73 = por %p71, %p72
      %p74 = scmp.ne.s32.totalorder %s65, %s66
      %p75 = scmp.eq.s32.totalorder %s34, 0
      %p76 = por %p74, %p75
      %p77 = scmp.ne.s32.totalorder %s65, %s66
      %p78 = scmp.eq.s32.totalorder %s35, 1
      %p79 = por %p77, %p78
      %p81 = scmp.ne.s32.totalorder %s66, %s80
      %p82 = scmp.eq.s32.totalorder %s35, 0
      %p83 = por %p81, %p82
      %s85 = sadd.s32 %s84, 1
      %p88 = scmp.eq.s32.totalorder %s29, 1
      %p89 = scmp.ne.s32.totalorder %s84, %s86
      %p90 = scmp.eq.s32.totalorder %s29, 0
      %p91 = por %p89, %p90
      %p92 = scmp.ne.s32.totalorder %s84, %s86
      %p93 = scmp.eq.s32.totalorder %s34, 1
      %p94 = por %p92, %p93
      %p95 = scmp.ne.s32.totalorder %s86, %s87
      %p96 = scmp.eq.s32.totalorder %s34, 0
      %p97 = por %p95, %p96
      %p98 = scmp.ne.s32.totalorder %s86, %s87
      %p99 = scmp.eq.s32.totalorder %s35, 1
      %p100 = por %p98, %p99
      %p102 = scmp.ne.s32.totalorder %s87, %s101
      %p103 = scmp.eq.s32.totalorder %s35, 0
      %p104 = por %p102, %p103
      %s106 = sadd.s32 %s105, 1
      %p109 = scmp.eq.s32.totalorder %s29, 1
      %p110 = scmp.ne.s32.totalorder %s105, %s107
      %p111 = scmp.eq.s32.totalorder %s29, 0
      %p112 = por %p110, %p111
      %p113 = scmp.ne.s32.totalorder %s105, %s107
      %p114 = scmp.eq.s32.totalorder %s34, 1
      %p115 = por %p113, %p114
      %p116 = scmp.ne.s32.totalorder %s107, %s108
      %p117 = scmp.eq.s32.totalorder %s34, 0
      %p118 = por %p116, %p117
      %p119 = scmp.ne.s32.totalorder %s107, %s108
      %p120 = scmp.eq.s32.totalorder %s35, 1
      %p121 = por %p119, %p120
      %p123 = scmp.ne.s32.totalorder %s108, %s122
      %p124 = scmp.eq.s32.totalorder %s35, 0
      %p125 = por %p123, %p124
      %s127 = sadd.s32 %s126, 1
      %p130 = scmp.eq.s32.totalorder %s29, 1
      %p131 = scmp.ne.s32.totalorder %s126, %s128
      %p132 = scmp.eq.s32.totalorder %s29, 0
      %p133 = por %p131, %p132
      %p134 = scmp.ne.s32.totalorder %s126, %s128
      %p135 = scmp.eq.s32.totalorder %s34, 1
      %p136 = por %p134, %p135
      %p137 = scmp.ne.s32.totalorder %s128, %s129
      %p138 = scmp.eq.s32.totalorder %s34, 0
      %p139 = por %p137, %p138
      %p140 = scmp.ne.s32.totalorder %s128, %s129
      %p141 = scmp.eq.s32.totalorder %s35, 1
      %p142 = por %p140, %p141
      %p144 = scmp.ne.s32.totalorder %s129, %s143
      %p145 = scmp.eq.s32.totalorder %s35, 0
      %p146 = por %p144, %p145
      %s148 = sadd.s32 %s147, 1
      %p151 = scmp.eq.s32.totalorder %s29, 1
      %p152 = scmp.ne.s32.totalorder %s147, %s149
      %p153 = scmp.eq.s32.totalorder %s29, 0
      %p154 = por %p152, %p153
      %p155 = scmp.ne.s32.totalorder %s147, %s149
      %p156 = scmp.eq.s32.totalorder %s34, 1
      %p157 = por %p155, %p156
      %p158 = scmp.ne.s32.totalorder %s149, %s150
      %p159 = scmp.eq.s32.totalorder %s34, 0
      %p160 = por %p158, %p159
      %p161 = scmp.ne.s32.totalorder %s149, %s150
      %p162 = scmp.eq.s32.totalorder %s35, 1
      %p163 = por %p161, %p162
      %p165 = scmp.ne.s32.totalorder %s150, %s164
      %p166 = scmp.eq.s32.totalorder %s35, 0
      %p167 = por %p165, %p166
      %s169 = sadd.s32 %s168, 1
      %p172 = scmp.eq.s32.totalorder %s29, 1
      %p173 = scmp.ne.s32.totalorder %s168, %s170
      %p174 = scmp.eq.s32.totalorder %s29, 0
      %p175 = por %p173, %p174
      %p176 = scmp.ne.s32.totalorder %s168, %s170
      %p177 = scmp.eq.s32.totalorder %s34, 1
      %p178 = por %p176, %p177
      %p179 = scmp.ne.s32.totalorder %s170, %s171
      %p180 = scmp.eq.s32.totalorder %s34, 0
      %p181 = por %p179, %p180
      %p182 = scmp.ne.s32.totalorder %s170, %s171
      %p183 = scmp.eq.s32.totalorder %s35, 1
      %p184 = por %p182, %p183
      %p186 = scmp.ne.s32.totalorder %s171, %s185
      %p187 = scmp.eq.s32.totalorder %s35, 0
      %p188 = por %p186, %p187
      %s190 = sadd.s32 %s189, 1
      %p193 = scmp.eq.s32.totalorder %s29, 1
      %p194 = scmp.ne.s32.totalorder %s189, %s191
      %p195 = scmp.eq.s32.totalorder %s29, 0
      %p196 = por %p194, %p195
      %p197 = scmp.ne.s32.totalorder %s189, %s191
      %p198 = scmp.eq.s32.totalorder %s34, 1
      %p199 = por %p197, %p198
      %p200 = scmp.ne.s32.totalorder %s191, %s192
      %p201 = scmp.eq.s32.totalorder %s34, 0
      %p202 = por %p200, %p201
      %p203 = scmp.ne.s32.totalorder %s191, %s192
      %p204 = scmp.eq.s32.totalorder %s35, 1
      %p205 = por %p203, %p204
      %p207 = scmp.ne.s32.totalorder %s192, %s206
      %p208 = scmp.eq.s32.totalorder %s35, 0
      %p209 = por %p207, %p208
      %s211 = sadd.s32 %s210, 1
      %p214 = scmp.eq.s32.totalorder %s29, 1
      %p215 = scmp.ne.s32.totalorder %s210, %s212
      %p216 = scmp.eq.s32.totalorder %s29, 0
      %p217 = por %p215, %p216
      %p218 = scmp.ne.s32.totalorder %s210, %s212
      %p219 = scmp.eq.s32.totalorder %s34, 1
      %p220 = por %p218, %p219
      %p221 = scmp.ne.s32.totalorder %s212, %s213
      %p222 = scmp.eq.s32.totalorder %s34, 0
      %p223 = por %p221, %p222
      %p224 = scmp.ne.s32.totalorder %s212, %s213
      %p225 = scmp.eq.s32.totalorder %s35, 1
      %p226 = por %p224, %p225
      %p228 = scmp.ne.s32.totalorder %s213, %s227
      %p229 = scmp.eq.s32.totalorder %s35, 0
      %p230 = por %p228, %p229
      %s232 = sadd.s32 %s231, 1
      %p235 = scmp.eq.s32.totalorder %s29, 1
      %p236 = scmp.ne.s32.totalorder %s231, %s233
      %p237 = scmp.eq.s32.totalorder %s29, 0
      %p238 = por %p236, %p237
      %p239 = scmp.ne.s32.totalorder %s231, %s233
      %p240 = scmp.eq.s32.totalorder %s34, 1
      %p241 = por %p239, %p240
      %p242 = scmp.ne.s32.totalorder %s233, %s234
      %p243 = scmp.eq.s32.totalorder %s34, 0
      %p244 = por %p242, %p243
      %p245 = scmp.ne.s32.totalorder %s233, %s234
      %p246 = scmp.eq.s32.totalorder %s35, 1
      %p247 = por %p245, %p246
      %p249 = scmp.ne.s32.totalorder %s234, %s248
      %p250 = scmp.eq.s32.totalorder %s35, 0
      %p251 = por %p249, %p250
      %s253 = sadd.s32 %s252, 1
      %p256 = scmp.eq.s32.totalorder %s29, 1
      %p257 = scmp.ne.s32.totalorder %s252, %s254
      %p258 = scmp.eq.s32.totalorder %s29, 0
      %p259 = por %p257, %p258
      %p260 = scmp.ne.s32.totalorder %s252, %s254
      %p261 = scmp.eq.s32.totalorder %s34, 1
      %p262 = por %p260, %p261
      %p263 = scmp.ne.s32.totalorder %s254, %s255
      %p264 = scmp.eq.s32.totalorder %s34, 0
      %p265 = por %p263, %p264
      %p266 = scmp.ne.s32.totalorder %s254, %s255
      %p267 = scmp.eq.s32.totalorder %s35, 1
      %p268 = por %p266, %p267
      %p270 = scmp.ne.s32.totalorder %s255, %s269
      %p271 = scmp.eq.s32.totalorder %s35, 0
      %p272 = por %p270, %p271
      %s274 = sadd.s32 %s273, 1
      %p277 = scmp.eq.s32.totalorder %s29, 1
      %p278 = scmp.ne.s32.totalorder %s273, %s275
      %p279 = scmp.eq.s32.totalorder %s29, 0
      %p280 = por %p278, %p279
      %p281 = scmp.ne.s32.totalorder %s273, %s275
      %p282 = scmp.eq.s32.totalorder %s34, 1
      %p283 = por %p281, %p282
      %p284 = scmp.ne.s32.totalorder %s275, %s276
      %p285 = scmp.eq.s32.totalorder %s34, 0
      %p286 = por %p284, %p285
      %p287 = scmp.ne.s32.totalorder %s275, %s276
      %p288 = scmp.eq.s32.totalorder %s35, 1
      %p289 = por %p287, %p288
      %p291 = scmp.ne.s32.totalorder %s276, %s290
      %p292 = scmp.eq.s32.totalorder %s35, 0
      %p293 = por %p291, %p292
      %s295 = sadd.s32 %s294, 1
      %p298 = scmp.eq.s32.totalorder %s29, 1
      %p299 = scmp.ne.s32.totalorder %s294, %s296
      %p300 = scmp.eq.s32.totalorder %s29, 0
      %p301 = por %p299, %p300
      %p302 = scmp.ne.s32.totalorder %s294, %s296
      %p303 = scmp.eq.s32.totalorder %s34, 1
      %p304 = por %p302, %p303
      %p305 = scmp.ne.s32.totalorder %s296, %s297
      %p306 = scmp.eq.s32.totalorder %s34, 0
      %p307 = por %p305, %p306
      %p308 = scmp.ne.s32.totalorder %s296, %s297
      %p309 = scmp.eq.s32.totalorder %s35, 1
      %p310 = por %p308, %p309
      %p312 = scmp.ne.s32.totalorder %s297, %s311
      %p313 = scmp.eq.s32.totalorder %s35, 0
      %p314 = por %p312, %p313
      %s316 = sadd.s32 %s315, 1
      %p319 = scmp.eq.s32.totalorder %s29, 1
      %p320 = scmp.ne.s32.totalorder %s315, %s317
      %p321 = scmp.eq.s32.totalorder %s29, 0
      %p322 = por %p320, %p321
      %p323 = scmp.ne.s32.totalorder %s315, %s317
      %p324 = scmp.eq.s32.totalorder %s34, 1
      %p325 = por %p323, %p324
      %p326 = scmp.ne.s32.totalorder %s317, %s318
      %p327 = scmp.eq.s32.totalorder %s34, 0
      %p328 = por %p326, %p327
      %p329 = scmp.ne.s32.totalorder %s317, %s318
      %p330 = scmp.eq.s32.totalorder %s35, 1
      %p331 = por %p329, %p330
      %p333 = scmp.ne.s32.totalorder %s318, %s332
      %p334 = scmp.eq.s32.totalorder %s35, 0
      %p335 = por %p333, %p334
      %s337 = sadd.s32 %s336, 1
      %p340 = scmp.eq.s32.totalorder %s29, 1
      %p341 = scmp.ne.s32.totalorder %s336, %s338
      %p342 = scmp.eq.s32.totalorder %s29, 0
      %p343 = por %p341, %p342
      %p344 = scmp.ne.s32.totalorder %s336, %s338
      %p345 = scmp.eq.s32.totalorder %s34, 1
      %p346 = por %p344, %p345
      %p347 = scmp.ne.s32.totalorder %s338, %s339
      %p348 = scmp.eq.s32.totalorder %s34, 0
      %p349 = por %p347, %p348
      %p350 = scmp.ne.s32.totalorder %s338, %s339
      %p351 = scmp.eq.s32.totalorder %s35, 1
      %p352 = por %p350, %p351
      %p354 = scmp.ne.s32.totalorder %s339, %s353
      %p355 = scmp.eq.s32.totalorder %s35, 0
      %p356 = por %p354, %p355
      %s358 = sadd.s32 %s357, 1
      %p361 = scmp.eq.s32.totalorder %s29, 1
      %p362 = scmp.ne.s32.totalorder %s357, %s359
      %p363 = scmp.eq.s32.totalorder %s29, 0
      %p364 = por %p362, %p363
      %p365 = scmp.ne.s32.totalorder %s357, %s359
      %p366 = scmp.eq.s32.totalorder %s34, 1
      %p367 = por %p365, %p366
      %p368 = scmp.ne.s32.totalorder %s359, %s360
      %p369 = scmp.eq.s32.totalorder %s34, 0
      %p370 = por %p368, %p369
      %p371 = scmp.ne.s32.totalorder %s359, %s360
      %p372 = scmp.eq.s32.totalorder %s35, 1
      %p373 = por %p371, %p372
      %p375 = scmp.ne.s32.totalorder %s360, %s374
      %p376 = scmp.eq.s32.totalorder %s35, 0
      %p377 = por %p375, %p376
      %s379 = sadd.s32 %s378, 1
      %p382 = scmp.eq.s32.totalorder %s29, 1
      %p383 = scmp.ne.s32.totalorder %s378, %s380
      %p384 = scmp.eq.s32.totalorder %s29, 0
      %p385 = por %p383, %p384
      %p386 = scmp.ne.s32.totalorder %s378, %s380
      %p387 = scmp.eq.s32.totalorder %s34, 1
      %p388 = por %p386, %p387
      %p389 = scmp.ne.s32.totalorder %s380, %s381
      %p390 = scmp.eq.s32.totalorder %s34, 0
      %p391 = por %p389, %p390
      %p392 = scmp.ne.s32.totalorder %s380, %s381
      %p393 = scmp.eq.s32.totalorder %s35, 1
      %p394 = por %p392, %p393
      %p396 = scmp.ne.s32.totalorder %s381, %s395
      %p397 = scmp.eq.s32.totalorder %s35, 0
      %p398 = por %p396, %p397
      %s400 = sadd.s32 %s399, 1
      %p403 = scmp.eq.s32.totalorder %s29, 1
      %p404 = scmp.ne.s32.totalorder %s399, %s401
      %p405 = scmp.eq.s32.totalorder %s29, 0
      %p406 = por %p404, %p405
      %p407 = scmp.ne.s32.totalorder %s399, %s401
      %p408 = scmp.eq.s32.totalorder %s34, 1
      %p409 = por %p407, %p408
      %p410 = scmp.ne.s32.totalorder %s401, %s402
      %p411 = scmp.eq.s32.totalorder %s34, 0
      %p412 = por %p410, %p411
      %p413 = scmp.ne.s32.totalorder %s401, %s402
      %p414 = scmp.eq.s32.totalorder %s35, 1
      %p415 = por %p413, %p414
      %p417 = scmp.ne.s32.totalorder %s402, %s416
      %p418 = scmp.eq.s32.totalorder %s35, 0
      %p419 = por %p417, %p418
      %s421 = sadd.s32 %s420, 1
      %p424 = scmp.eq.s32.totalorder %s29, 1
      %p425 = scmp.ne.s32.totalorder %s420, %s422
      %p426 = scmp.eq.s32.totalorder %s29, 0
      %p427 = por %p425, %p426
      %p428 = scmp.ne.s32.totalorder %s420, %s422
      %p429 = scmp.eq.s32.totalorder %s34, 1
      %p430 = por %p428, %p429
      %p431 = scmp.ne.s32.totalorder %s422, %s423
      %p432 = scmp.eq.s32.totalorder %s34, 0
      %p433 = por %p431, %p432
      %p434 = scmp.ne.s32.totalorder %s422, %s423
      %p435 = scmp.eq.s32.totalorder %s35, 1
      %p436 = por %p434, %p435
      %p438 = scmp.ne.s32.totalorder %s423, %s437
      %p439 = scmp.eq.s32.totalorder %s35, 0
      %p440 = por %p438, %p439
      %s442 = sadd.s32 %s441, 1
      %p445 = scmp.eq.s32.totalorder %s29, 1
      %p446 = scmp.ne.s32.totalorder %s441, %s443
      %p447 = scmp.eq.s32.totalorder %s29, 0
      %p448 = por %p446, %p447
      %p449 = scmp.ne.s32.totalorder %s441, %s443
      %p450 = scmp.eq.s32.totalorder %s34, 1
      %p451 = por %p449, %p450
      %p452 = scmp.ne.s32.totalorder %s443, %s444
      %p453 = scmp.eq.s32.totalorder %s34, 0
      %p454 = por %p452, %p453
      %p455 = scmp.ne.s32.totalorder %s443, %s444
      %p456 = scmp.eq.s32.totalorder %s35, 1
      %p457 = por %p455, %p456
      %p459 = scmp.ne.s32.totalorder %s444, %s458
      %p460 = scmp.eq.s32.totalorder %s35, 0
      %p461 = por %p459, %p460
      %s462 = ssub.s32 %s29, %s36
      %p463 = scmp.eq.s32.totalorder %s462, 0
      %s465 = sadd.s32 %s464, 1
      %s466 = scalar_select %p463, %s464, %s465
      %p469 = pneg %p463
      %p470 = scmp.eq.s32.totalorder %s29, 1
      %p471 = por %p469, %p470
      %p472 = scmp.ne.s32.totalorder %s464, %s467
      %p473 = scmp.eq.s32.totalorder %s29, 0
      %p474 = por %p472, %p473
      %p475 = scmp.ne.s32.totalorder %s464, %s467
      %p476 = scmp.eq.s32.totalorder %s34, 1
      %p477 = por %p475, %p476
      %p478 = scmp.ne.s32.totalorder %s467, %s468
      %p479 = scmp.eq.s32.totalorder %s34, 0
      %p480 = por %p478, %p479
      %p481 = scmp.ne.s32.totalorder %s467, %s468
      %p482 = scmp.eq.s32.totalorder %s35, 1
      %p483 = por %p481, %p482
      %p485 = scmp.ne.s32.totalorder %s468, %s484
      %p486 = scmp.eq.s32.totalorder %s35, 0
      %p487 = por %p485, %p486
      %p488 = scmp.le.s32.totalorder 1, %s29
      %p489 = scmp.lt.s32.totalorder %s29, 3
      %p490 = pnand %p488, %p489
      %p491 = pneg %p490
      // Predicated region
      $region9: #{tpu_custom_call.1} parent=5 // pred_check
        _
      $region10: #{tpu_custom_call.1} parent=5 // pred_check_branch
        %493 = sbr.rel (%p490) target = $region12
      $region11: #{tpu_custom_call.1} parent=5 // pred_region
        %s494 = ssub.s32 %s29, 1
        // Predicated region
        $region13: #{tpu_custom_call.1} parent=11 // pred_check
          %p495 = pneg %p76
        $region14: #{tpu_custom_call.1} parent=11 // pred_check_branch
          %497 = sbr.rel (%p495) target = $region16
        $region15: #{tpu_custom_call.1} parent=11 // pred_region
          _
        $region16: #{tpu_custom_call.1} parent=11 // pred_fallthru
          _
        // Predicated region
        $region17: #{tpu_custom_call.1} parent=11 // pred_check
          %p498 = pneg %p97
        $region18: #{tpu_custom_call.1} parent=11 // pred_check_branch
          %500 = sbr.rel (%p498) target = $region20
        $region19: #{tpu_custom_call.1} parent=11 // pred_region
          _
        $region20: #{tpu_custom_call.1} parent=11 // pred_fallthru
          _
        // Predicated region
        $region21: #{tpu_custom_call.1} parent=11 // pred_check
          %p501 = pneg %p118
        $region22: #{tpu_custom_call.1} parent=11 // pred_check_branch
          %503 = sbr.rel (%p501) target = $region24
        $region23: #{tpu_custom_call.1} parent=11 // pred_region
          _
        $region24: #{tpu_custom_call.1} parent=11 // pred_fallthru
          _
        // Predicated region
        $region25: #{tpu_custom_call.1} parent=11 // pred_check
          %p504 = pneg %p139
        $region26: #{tpu_custom_call.1} parent=11 // pred_check_branch
          %506 = sbr.rel (%p504) target = $region28
        $region27: #{tpu_custom_call.1} parent=11 // pred_region
          _
        $region28: #{tpu_custom_call.1} parent=11 // pred_fallthru
          _
        // Predicated region
        $region29: #{tpu_custom_call.1} parent=11 // pred_check
          %p507 = pneg %p160
        $region30: #{tpu_custom_call.1} parent=11 // pred_check_branch
          %509 = sbr.rel (%p507) target = $region32
        $region31: #{tpu_custom_call.1} parent=11 // pred_region
          _
        $region32: #{tpu_custom_call.1} parent=11 // pred_fallthru
          _
        // Predicated region
        $region33: #{tpu_custom_call.1} parent=11 // pred_check
          %p510 = pneg %p181
        $region34: #{tpu_custom_call.1} parent=11 // pred_check_branch
          %512 = sbr.rel (%p510) target = $region36
        $region35: #{tpu_custom_call.1} parent=11 // pred_region
          _
        $region36: #{tpu_custom_call.1} parent=11 // pred_fallthru
          _
        // Predicated region
        $region37: #{tpu_custom_call.1} parent=11 // pred_check
          %p513 = pneg %p202
        $region38: #{tpu_custom_call.1} parent=11 // pred_check_branch
          %515 = sbr.rel (%p513) target = $region40
        $region39: #{tpu_custom_call.1} parent=11 // pred_region
          _
        $region40: #{tpu_custom_call.1} parent=11 // pred_fallthru
          _
        // Predicated region
        $region41: #{tpu_custom_call.1} parent=11 // pred_check
          %p516 = pneg %p223
        $region42: #{tpu_custom_call.1} parent=11 // pred_check_branch
          %518 = sbr.rel (%p516) target = $region44
        $region43: #{tpu_custom_call.1} parent=11 // pred_region
          _
        $region44: #{tpu_custom_call.1} parent=11 // pred_fallthru
          _
        // Predicated region
        $region45: #{tpu_custom_call.1} parent=11 // pred_check
          %p519 = pneg %p244
        $region46: #{tpu_custom_call.1} parent=11 // pred_check_branch
          %521 = sbr.rel (%p519) target = $region48
        $region47: #{tpu_custom_call.1} parent=11 // pred_region
          _
        $region48: #{tpu_custom_call.1} parent=11 // pred_fallthru
          _
        // Predicated region
        $region49: #{tpu_custom_call.1} parent=11 // pred_check
          %p522 = pneg %p265
        $region50: #{tpu_custom_call.1} parent=11 // pred_check_branch
          %524 = sbr.rel (%p522) target = $region52
        $region51: #{tpu_custom_call.1} parent=11 // pred_region
          _
        $region52: #{tpu_custom_call.1} parent=11 // pred_fallthru
          _
        // Predicated region
        $region53: #{tpu_custom_call.1} parent=11 // pred_check
          %p525 = pneg %p286
        $region54: #{tpu_custom_call.1} parent=11 // pred_check_branch
          %527 = sbr.rel (%p525) target = $region56
        $region55: #{tpu_custom_call.1} parent=11 // pred_region
          _
        $region56: #{tpu_custom_call.1} parent=11 // pred_fallthru
          _
        // Predicated region
        $region57: #{tpu_custom_call.1} parent=11 // pred_check
          %p528 = pneg %p307
        $region58: #{tpu_custom_call.1} parent=11 // pred_check_branch
          %530 = sbr.rel (%p528) target = $region60
        $region59: #{tpu_custom_call.1} parent=11 // pred_region
          _
        $region60: #{tpu_custom_call.1} parent=11 // pred_fallthru
          _
        // Predicated region
        $region61: #{tpu_custom_call.1} parent=11 // pred_check
          %p531 = pneg %p328
        $region62: #{tpu_custom_call.1} parent=11 // pred_check_branch
          %533 = sbr.rel (%p531) target = $region64
        $region63: #{tpu_custom_call.1} parent=11 // pred_region
          _
        $region64: #{tpu_custom_call.1} parent=11 // pred_fallthru
          _
        // Predicated region
        $region65: #{tpu_custom_call.1} parent=11 // pred_check
          %p534 = pneg %p349
        $region66: #{tpu_custom_call.1} parent=11 // pred_check_branch
          %536 = sbr.rel (%p534) target = $region68
        $region67: #{tpu_custom_call.1} parent=11 // pred_region
          _
        $region68: #{tpu_custom_call.1} parent=11 // pred_fallthru
          _
        // Predicated region
        $region69: #{tpu_custom_call.1} parent=11 // pred_check
          %p537 = pneg %p370
        $region70: #{tpu_custom_call.1} parent=11 // pred_check_branch
          %539 = sbr.rel (%p537) target = $region72
        $region71: #{tpu_custom_call.1} parent=11 // pred_region
          _
        $region72: #{tpu_custom_call.1} parent=11 // pred_fallthru
          _
        // Predicated region
        $region73: #{tpu_custom_call.1} parent=11 // pred_check
          %p540 = pneg %p391
        $region74: #{tpu_custom_call.1} parent=11 // pred_check_branch
          %542 = sbr.rel (%p540) target = $region76
        $region75: #{tpu_custom_call.1} parent=11 // pred_region
          _
        $region76: #{tpu_custom_call.1} parent=11 // pred_fallthru
          _
        // Predicated region
        $region77: #{tpu_custom_call.1} parent=11 // pred_check
          %p543 = pneg %p412
        $region78: #{tpu_custom_call.1} parent=11 // pred_check_branch
          %545 = sbr.rel (%p543) target = $region80
        $region79: #{tpu_custom_call.1} parent=11 // pred_region
          _
        $region80: #{tpu_custom_call.1} parent=11 // pred_fallthru
          _
        // Predicated region
        $region81: #{tpu_custom_call.1} parent=11 // pred_check
          %p546 = pneg %p433
        $region82: #{tpu_custom_call.1} parent=11 // pred_check_branch
          %548 = sbr.rel (%p546) target = $region84
        $region83: #{tpu_custom_call.1} parent=11 // pred_region
          _
        $region84: #{tpu_custom_call.1} parent=11 // pred_fallthru
          _
        // Predicated region
        $region85: #{tpu_custom_call.1} parent=11 // pred_check
          %p549 = pneg %p454
        $region86: #{tpu_custom_call.1} parent=11 // pred_check_branch
          %551 = sbr.rel (%p549) target = $region88
        $region87: #{tpu_custom_call.1} parent=11 // pred_region
          _
        $region88: #{tpu_custom_call.1} parent=11 // pred_fallthru
          _
      $region12: #{tpu_custom_call.1} parent=5 // pred_fallthru
        _
      %p552 = scmp.lt.s32.totalorder %s29, 2
      // Predicated region
      $region89: #{tpu_custom_call.1} parent=5 // pred_check
        %p553 = pneg %p552
      $region90: #{tpu_custom_call.1} parent=5 // pred_check_branch
        %555 = sbr.rel (%p553) target = $region92
      $region91: #{tpu_custom_call.1} parent=5 // pred_region
        // Predicated region
        $region93: #{tpu_custom_call.1} parent=91 // pred_check
          %p556 = pneg %p49
        $region94: #{tpu_custom_call.1} parent=91 // pred_check_branch
          %558 = sbr.rel (%p556) target = $region96
        $region95: #{tpu_custom_call.1} parent=91 // pred_region
          %p559 = scmp.lt.s32.totalorder %s29, 1
          %s560 = scalar_select %p559, %s29, 1
          %s561 = smul.addr %s560, 8
          %s562 = scalar_lea.vmem %s0, %s561
        $region96: #{tpu_custom_call.1} parent=91 // pred_fallthru
          _
      $region92: #{tpu_custom_call.1} parent=5 // pred_fallthru
        _
      %p563 = scmp.le.s32.totalorder 1, %s29
      %p564 = scmp.lt.s32.totalorder %s29, 3
      %p565 = pnand %p563, %p564
      %p566 = pneg %p565
      // Predicated region
      $region97: #{tpu_custom_call.1} parent=5 // pred_check
        _
      $region98: #{tpu_custom_call.1} parent=5 // pred_check_branch
        %568 = sbr.rel (%p565) target = $region100
      $region99: #{tpu_custom_call.1} parent=5 // pred_region
        %s569 = ssub.s32 %s29, 1
        %p570 = scmp.lt.s32.totalorder %s34, 1
        %s571 = scalar_select %p570, %s34, 1
        %s572 = smul.addr %s571, 8
        %s573 = scalar_lea.vmem %s0, %s572
        %p574 = pneg %p55
        %p575 = pneg %p52
        %p576 = pneg %p76
        %p577 = pneg %p73
        %p578 = pneg %p97
        %p579 = pneg %p94
        %p580 = pneg %p118
        %p581 = pneg %p115
        %p582 = pneg %p139
        %p583 = pneg %p136
        %p584 = pneg %p160
        %p585 = pneg %p157
        %p586 = pneg %p181
        %p587 = pneg %p178
        %p588 = pneg %p202
        %p589 = pneg %p199
        %p590 = pneg %p223
        %p591 = pneg %p220
        %p592 = pneg %p244
        %p593 = pneg %p241
        %p594 = pneg %p265
        %p595 = pneg %p262
        %p596 = pneg %p286
        %p597 = pneg %p283
        %p598 = pneg %p307
        %p599 = pneg %p304
        %p600 = pneg %p328
        %p601 = pneg %p325
        %p602 = pneg %p349
        %p603 = pneg %p346
        %p604 = pneg %p370
        %p605 = pneg %p367
        %p606 = pneg %p391
        %p607 = pneg %p388
        %p608 = pneg %p412
        %p609 = pneg %p409
        %p610 = pneg %p433
        %p611 = pneg %p430
        %p612 = pneg %p454
        %p613 = pneg %p451
        %p614 = pneg %p480
        %p615 = pneg %p477
        %s616 = sand.u32 %s467, 1
        %s617 = scalar_lea.sflag [#allocation3], %s616
        %s618 = sand.u32 %s467, 1
        %s619 = scalar_lea.vmem [#allocation2], %s618
        %p620 = scmp.lt.s32.totalorder %s34, 1
        %s621 = scalar_select %p620, %s34, 1
        %s622 = smul.addr %s621, 8
        %s623 = scalar_lea.vmem %s0, %s622
        %v625 = vld [vmem:[%s623] sm:$0xff]
        %v626 = vlaneseq
        %v627 = vand.u32 %v626, 127
        %628 = vset.pattern.permute.xlu0 0
        %629 = vperm.xlu0 %628, %v625
        %v630 = vpop.permute.xlu0 %629
        %vm631 = vcmp.eq.s32.totalorder %v627, %v630
        %v632 = vsel %vm631, 1, 0
        %v633 = vcvt.s32.f32 %v632
        %v634 = vld [vmem:[%s1] sm:$0xff]
        %v635 = vld [vmem:[%s1 + $0x8] sm:$0xff]
        %v636 = vld [vmem:[%s1 + $0x10] sm:$0xff]
        %v637 = vld [vmem:[%s1 + $0x18] sm:$0xff]
        %v638 = vld [vmem:[%s1 + $0x20] sm:$0xff]
        %v639 = vld [vmem:[%s1 + $0x28] sm:$0xff]
        %v640 = vld [vmem:[%s1 + $0x30] sm:$0xff]
        %v641 = vld [vmem:[%s1 + $0x38] sm:$0xff]
        %v642 = vld [vmem:[%s1 + $0x40] sm:$0xff]
        %v643 = vld [vmem:[%s1 + $0x48] sm:$0xff]
        %v644 = vld [vmem:[%s1 + $0x50] sm:$0xff]
        %v645 = vld [vmem:[%s1 + $0x58] sm:$0xff]
        %v646 = vld [vmem:[%s1 + $0x60] sm:$0xff]
        %v647 = vld [vmem:[%s1 + $0x68] sm:$0xff]
        %v648 = vld [vmem:[%s1 + $0x70] sm:$0xff]
        %v649 = vld [vmem:[%s1 + $0x78] sm:$0xff]
        %v650 = vld [vmem:[%s2] sm:$0xff]
        %651 = vmatprep.subr.mxu0 0.0
        %652 = vmatpush1.msra.mxu0 %v649
        %653 = vmatprep.subr.mxu0 0.0
        %654 = vmatpush1.msra.mxu0 %v648
        %655 = vmatprep.subr.mxu0 0.0
        %656 = vmatpush1.msra.mxu0 %v647
        %657 = vmatprep.subr.mxu0 0.0
        %658 = vmatpush1.msra.mxu0 %v646
        %659 = vmatprep.subr.mxu0 0.0
        %660 = vmatpush1.msra.mxu0 %v645
        %661 = vmatprep.subr.mxu0 0.0
        %662 = vmatpush1.msra.mxu0 %v644
        %663 = vmatprep.subr.mxu0 0.0
        %664 = vmatpush1.msra.mxu0 %v643
        %665 = vmatprep.subr.mxu0 0.0
        %666 = vmatpush1.msra.mxu0 %v642
        %667 = vmatprep.subr.mxu0 0.0
        %668 = vmatpush1.msra.mxu0 %v641
        %669 = vmatprep.subr.mxu0 0.0
        %670 = vmatpush1.msra.mxu0 %v640
        %671 = vmatprep.subr.mxu0 0.0
        %672 = vmatpush1.msra.mxu0 %v639
        %673 = vmatprep.subr.mxu0 0.0
        %674 = vmatpush1.msra.mxu0 %v638
        %675 = vmatprep.subr.mxu0 0.0
        %676 = vmatpush1.msra.mxu0 %v637
        %677 = vmatprep.subr.mxu0 0.0
        %678 = vmatpush1.msra.mxu0 %v636
        %679 = vmatprep.subr.mxu0 0.0
        %680 = vmatpush1.msra.mxu0 %v635
        %681 = vmatprep.subr.mxu0 0.0
        %682 = vmatpush1.msra.mxu0 %v634
        %683 = vmatprep.subr.mxu0 0.0
        %684 = vmatpush2.msra.mxu0 0.0
        %685 = vmatprep.subr.mxu0 0.0
        %686 = vmatpush2.msra.mxu0 0.0
        %687 = vmatprep.subr.mxu0 0.0
        %688 = vmatpush2.msra.mxu0 0.0
        %689 = vmatprep.subr.mxu0 0.0
        %690 = vmatpush2.msra.mxu0 0.0
        %691 = vmatprep.subr.mxu0 0.0
        %692 = vmatpush2.msra.mxu0 0.0
        %693 = vmatprep.subr.mxu0 0.0
        %694 = vmatpush2.msra.mxu0 0.0
        %695 = vmatprep.subr.mxu0 0.0
        %696 = vmatpush2.msra.mxu0 0.0
        %697 = vmatprep.subr.mxu0 0.0
        %698 = vmatpush2.msra.mxu0 0.0
        %699 = vmatprep.subr.mxu0 0.0
        %700 = vmatpush2.msra.mxu0 0.0
        %701 = vmatprep.subr.mxu0 0.0
        %702 = vmatpush2.msra.mxu0 0.0
        %703 = vmatprep.subr.mxu0 0.0
        %704 = vmatpush2.msra.mxu0 0.0
        %705 = vmatprep.subr.mxu0 0.0
        %706 = vmatpush2.msra.mxu0 0.0
        %707 = vmatprep.subr.mxu0 0.0
        %708 = vmatpush2.msra.mxu0 0.0
        %709 = vmatprep.subr.mxu0 0.0
        %710 = vmatpush2.msra.mxu0 0.0
        %711 = vmatprep.subr.mxu0 0.0
        %712 = vmatpush2.msra.mxu0 0.0
        %713 = vmatprep.subr.mxu0 0.0
        %714 = vmatpush2.msra.mxu0 0.0
        %715 = vmatprep.mubr.f32.mxu0 0.0
        %716 = vmatmul.mubr.f32.gmra.mxu0 %v633
        %v717 = vpop.f32.mrf.mxu0
        %v718 = vadd.f32 %v650, %v717
        %v719 = vpop.f32.mrf.mxu0
        %720 = vdwg.mxu0
        %v721 = vld [vmem:[%s3] sm:$0x1]
        %v723 = vlaneseq
        %v724 = vshrl.u32 %v723, 7
        %v725 = vsub.s32 0, %v724
        %v726 = vrot.slane %v721, %v725
        %v728 = vadd.f32 %v718, %v726
        %v729 = vld [vmem:[%s4] sm:$0x1]
        %v730 = vld [vmem:[%s5] sm:$0x1]
        %vm731 = vcmask 261120
        %v732 = vsel %vm731, %v728, 0.0
        %733 = vadd.xlane.f32.xlu0 %v732
        %v734 = vpop.xlane.xlu0 %733
        %v735 = vrcp.pop 32.0
        %v736 = vmul.f32 %v734, %v735
        %v737 = vsub.f32 %v728, %v736
        %v738 = vmul.f32 %v737, %v737
        %v739 = vsel %vm731, %v738, 0.0
        %740 = vadd.xlane.f32.xlu0 %v739
        %v741 = vpop.xlane.xlu0 %740
        %v742 = vmul.f32 %v741, %v735
        %v743 = vadd.f32 %v742, 1e-12
        %v744 = vrsqrt.pop %v743
        %v745 = vmul.f32 %v737, %v744
        %v747 = vlaneseq
        %v748 = vshrl.u32 %v747, 7
        %v749 = vsub.s32 0, %v748
        %v750 = vrot.slane %v729, %v749
        %v752 = vmul.f32 %v745, %v750
        %v754 = vlaneseq
        %v755 = vshrl.u32 %v754, 7
        %v756 = vsub.s32 0, %v755
        %v757 = vrot.slane %v730, %v756
        %v759 = vadd.f32 %v752, %v757
        %v760 = vpack.c.bf16 %v759, %v759
        %v761 = vld [vmem:[%s6] sm:$0xf]
        %v762 = vld [vmem:[%s6 + $0x4] sm:$0xf]
        %v763 = vld [vmem:[%s6 + $0x8] sm:$0xf]
        %v764 = vld [vmem:[%s6 + $0xc] sm:$0xf]
        %v765 = vld [vmem:[%s7] sm:$0x1]
        %v767 = vlaneseq
        %v768 = vshrl.u32 %v767, 7
        %v769 = vsub.s32 0, %v768
        %v770 = vrot.slane %v765, %v769
        %v776 = vunpack.c.l.b16 %v761
        %v777 = vunpack.c.l.b16 %v762
        %v778 = vunpack.c.l.b16 %v763
        %v779 = vunpack.c.l.b16 %v764
        %v780 = vpack.c.b16 %v777, %v776
        %v781 = vpack.c.b16 %v779, %v778
        %v785 = vsel %vm731, %v760, 0
        %787 = vmatprep.subr.bf16.mxu0 0
        %788 = vmatpush1.bf16.msra.mxu0 0
        %789 = vmatprep.subr.bf16.mxu0 0
        %790 = vmatpush1.bf16.msra.mxu0 0
        %791 = vmatprep.subr.bf16.mxu0 0
        %792 = vmatpush1.bf16.msra.mxu0 0
        %793 = vmatprep.subr.bf16.mxu0 0
        %794 = vmatpush1.bf16.msra.mxu0 0
        %795 = vmatprep.subr.bf16.mxu0 0
        %796 = vmatpush1.bf16.msra.mxu0 0
        %797 = vmatprep.subr.bf16.mxu0 0
        %798 = vmatpush1.bf16.msra.mxu0 0
        %799 = vmatprep.subr.bf16.mxu0 0
        %800 = vmatpush1.bf16.msra.mxu0 %v781
        %801 = vmatprep.subr.bf16.mxu0 0
        %802 = vmatpush1.bf16.msra.mxu0 %v780
        %803 = vmatprep.subr.bf16.mxu0 0
        %804 = vmatpush2.bf16.msra.mxu0 0
        %805 = vmatprep.subr.bf16.mxu0 0
        %806 = vmatpush2.bf16.msra.mxu0 0
        %807 = vmatprep.subr.bf16.mxu0 0
        %808 = vmatpush2.bf16.msra.mxu0 0
        %809 = vmatprep.subr.bf16.mxu0 0
        %810 = vmatpush2.bf16.msra.mxu0 0
        %811 = vmatprep.subr.bf16.mxu0 0
        %812 = vmatpush2.bf16.msra.mxu0 0
        %813 = vmatprep.subr.bf16.mxu0 0
        %814 = vmatpush2.bf16.msra.mxu0 0
        %815 = vmatprep.subr.bf16.mxu0 0
        %816 = vmatpush2.bf16.msra.mxu0 0
        %817 = vmatprep.subr.bf16.mxu0 0
        %818 = vmatpush2.bf16.msra.mxu0 0
        %819 = vmatprep.mubr.bf16.mxu0 0
        %820 = vmatmul.mubr.bf16.gmra.mxu0 %v785
        %v821 = vpop.f32.mrf.mxu0
        %v822 = vadd.f32 %v770, %v821
        %v823 = vpop.f32.mrf.mxu0
        %v824 = vpop.f32.mrf.mxu0
        %v825 = vpop.f32.mrf.mxu0
        %826 = vdwg.mxu0
        %v827 = vld [vmem:[%s8] sm:$0xf]
        %v828 = vld [vmem:[%s8 + $0x4] sm:$0xf]
        %v829 = vld [vmem:[%s8 + $0x8] sm:$0xf]
        %v830 = vld [vmem:[%s8 + $0xc] sm:$0xf]
        %v831 = vld [vmem:[%s9] sm:$0x1]
        %v833 = vlaneseq
        %v834 = vshrl.u32 %v833, 7
        %v835 = vsub.s32 0, %v834
        %v836 = vrot.slane %v831, %v835
        %v838 = vadd.f32 %v836, 0.0
        %v839 = vpack.c.bf16 %v822, %v822
        %841 = vrot.lane.b32.xlu0 %v839, 96
        %v842 = vpop.permute.xlu0 %841
        %vm843 = vcmask 64512
        %v845 = vsel %vm843, %v839, 0
        %v848 = vsel %vm843, %v842, 0
        %850 = vmatprep.subr.bf16.mxu0 0
        %851 = vmatpush1.bf16.xpose.msra.mxu0 0
        %852 = vmatprep.subr.bf16.mxu0 0
        %853 = vmatpush1.bf16.xpose.msra.mxu0 0
        %854 = vmatprep.subr.bf16.mxu0 0
        %855 = vmatpush1.bf16.xpose.msra.mxu0 0
        %856 = vmatprep.subr.bf16.mxu0 0
        %857 = vmatpush1.bf16.xpose.msra.mxu0 0
        %858 = vmatprep.subr.bf16.mxu0 0
        %859 = vmatpush1.bf16.xpose.msra.mxu0 0
        %860 = vmatprep.subr.bf16.mxu0 0
        %861 = vmatpush1.bf16.xpose.msra.mxu0 0
        %862 = vmatprep.subr.bf16.mxu0 0
        %863 = vmatpush1.bf16.xpose.msra.mxu0 0
        %864 = vmatprep.subr.bf16.mxu0 0
        %865 = vmatpush1.bf16.xpose.msra.mxu0 %v848
        %866 = vmatprep.subr.bf16.mxu0 0
        %867 = vmatpush2.bf16.xpose.msra.mxu0 0
        %868 = vmatprep.subr.bf16.mxu0 0
        %869 = vmatpush2.bf16.xpose.msra.mxu0 0
        %870 = vmatprep.subr.bf16.mxu0 0
        %871 = vmatpush2.bf16.xpose.msra.mxu0 0
        %872 = vmatprep.subr.bf16.mxu0 0
        %873 = vmatpush2.bf16.xpose.msra.mxu0 0
        %874 = vmatprep.subr.bf16.mxu0 0
        %875 = vmatpush2.bf16.xpose.msra.mxu0 0
        %876 = vmatprep.subr.bf16.mxu0 0
        %877 = vmatpush2.bf16.xpose.msra.mxu0 0
        %878 = vmatprep.subr.bf16.mxu0 0
        %879 = vmatpush2.bf16.xpose.msra.mxu0 0
        %880 = vmatprep.subr.bf16.mxu0 0
        %881 = vmatpush2.bf16.xpose.msra.mxu0 0
        %882 = vmatprep.mubr.bf16.mxu0 0
        %883 = vmatmul.mubr.bf16.gmra.mxu0 %v845
        %v884 = vpop.f32.mrf.mxu0
        %v885 = vadd.f32 0.0, %v884
        %v886 = vpop.f32.mrf.mxu0
        %v887 = vpop.f32.mrf.mxu0
        %v888 = vpop.f32.mrf.mxu0
        %889 = vdwg.mxu0
        %v890 = vmul.f32 %v885, 0.35355338
        %v891 = vsel %vm843, %v890, -inf
        %892 = vmax.xlane.f32.xlu0 %v891
        %v893 = vpop.xlane.xlu0 %892
        %v894 = vsub.f32 %v890, %v893
        %v895 = vmul.f32 %v894, 1.442695
        %v896 = vpow.pop %v895
        %v897 = vsel %vm843, %v896, 0.0
        %898 = vadd.xlane.f32.xlu0 %v897
        %v899 = vpop.xlane.xlu0 %898
        %v900 = vrcp.pop %v899
        %v901 = vmul.f32 %v896, %v900
        %v902 = vpack.c.bf16 %v901, %v901
        %903 = vrot.lane.b32.xlu0 %v839, 64
        %v904 = vpop.permute.xlu0 %903
        %v906 = vsel %vm843, %v902, 0
        %vm908 = vcmask 1043456
        %v910 = vsel %vm908, %v904, 0
        %912 = vmatprep.subr.bf16.mxu0 0
        %913 = vmatpush1.bf16.msra.mxu0 0
        %914 = vmatprep.subr.bf16.mxu0 0
        %915 = vmatpush1.bf16.msra.mxu0 0
        %916 = vmatprep.subr.bf16.mxu0 0
        %917 = vmatpush1.bf16.msra.mxu0 0
        %918 = vmatprep.subr.bf16.mxu0 0
        %919 = vmatpush1.bf16.msra.mxu0 0
        %920 = vmatprep.subr.bf16.mxu0 0
        %921 = vmatpush1.bf16.msra.mxu0 0
        %922 = vmatprep.subr.bf16.mxu0 0
        %923 = vmatpush1.bf16.msra.mxu0 0
        %924 = vmatprep.subr.bf16.mxu0 0
        %925 = vmatpush1.bf16.msra.mxu0 0
        %926 = vmatprep.subr.bf16.mxu0 0
        %927 = vmatpush1.bf16.msra.mxu0 %v910
        %928 = vmatprep.subr.bf16.mxu0 0
        %929 = vmatpush2.bf16.msra.mxu0 0
        %930 = vmatprep.subr.bf16.mxu0 0
        %931 = vmatpush2.bf16.msra.mxu0 0
        %932 = vmatprep.subr.bf16.mxu0 0
        %933 = vmatpush2.bf16.msra.mxu0 0
        %934 = vmatprep.subr.bf16.mxu0 0
        %935 = vmatpush2.bf16.msra.mxu0 0
        %936 = vmatprep.subr.bf16.mxu0 0
        %937 = vmatpush2.bf16.msra.mxu0 0
        %938 = vmatprep.subr.bf16.mxu0 0
        %939 = vmatpush2.bf16.msra.mxu0 0
        %940 = vmatprep.subr.bf16.mxu0 0
        %941 = vmatpush2.bf16.msra.mxu0 0
        %942 = vmatprep.subr.bf16.mxu0 0
        %943 = vmatpush2.bf16.msra.mxu0 0
        %944 = vmatprep.mubr.bf16.mxu0 0
        %945 = vmatmul.mubr.bf16.gmra.mxu0 %v906
        %v946 = vpop.f32.mrf.mxu0
        %v947 = vadd.f32 0.0, %v946
        %v948 = vpop.f32.mrf.mxu0
        %v949 = vpop.f32.mrf.mxu0
        %v950 = vpop.f32.mrf.mxu0
        %951 = vdwg.mxu0
        %v952 = vpack.c.bf16 %v947, %v947
        %v954 = vsel %vm843, %v952, 0
        %v957 = vsel %vm908, %v827, 0
        %959 = vmatprep.subr.bf16.mxu0 0
        %960 = vmatpush1.bf16.msra.mxu0 0
        %961 = vmatprep.subr.bf16.mxu0 0
        %962 = vmatpush1.bf16.msra.mxu0 0
        %963 = vmatprep.subr.bf16.mxu0 0
        %964 = vmatpush1.bf16.msra.mxu0 0
        %965 = vmatprep.subr.bf16.mxu0 0
        %966 = vmatpush1.bf16.msra.mxu0 0
        %967 = vmatprep.subr.bf16.mxu0 0
        %968 = vmatpush1.bf16.msra.mxu0 0
        %969 = vmatprep.subr.bf16.mxu0 0
        %970 = vmatpush1.bf16.msra.mxu0 0
        %971 = vmatprep.subr.bf16.mxu0 0
        %972 = vmatpush1.bf16.msra.mxu0 0
        %973 = vmatprep.subr.bf16.mxu0 0
        %974 = vmatpush1.bf16.msra.mxu0 %v957
        %975 = vmatprep.subr.bf16.mxu0 0
        %976 = vmatpush2.bf16.msra.mxu0 0
        %977 = vmatprep.subr.bf16.mxu0 0
        %978 = vmatpush2.bf16.msra.mxu0 0
        %979 = vmatprep.subr.bf16.mxu0 0
        %980 = vmatpush2.bf16.msra.mxu0 0
        %981 = vmatprep.subr.bf16.mxu0 0
        %982 = vmatpush2.bf16.msra.mxu0 0
        %983 = vmatprep.subr.bf16.mxu0 0
        %984 = vmatpush2.bf16.msra.mxu0 0
        %985 = vmatprep.subr.bf16.mxu0 0
        %986 = vmatpush2.bf16.msra.mxu0 0
        %987 = vmatprep.subr.bf16.mxu0 0
        %988 = vmatpush2.bf16.msra.mxu0 0
        %989 = vmatprep.subr.bf16.mxu0 0
        %990 = vmatpush2.bf16.msra.mxu0 0
        %991 = vmatprep.mubr.bf16.mxu0 0
        %992 = vmatmul.mubr.bf16.gmra.mxu0 %v954
        %v993 = vpop.f32.mrf.mxu0
        %v994 = vadd.f32 0.0, %v993
        %v995 = vpop.f32.mrf.mxu0
        %v996 = vpop.f32.mrf.mxu0
        %v997 = vpop.f32.mrf.mxu0
        %998 = vdwg.mxu0
        %v999 = vadd.f32 %v838, %v994
        %1000 = vrot.lane.b32.xlu0 %v839, 120
        %v1001 = vpop.permute.xlu0 %1000
        %1002 = vrot.lane.b32.xlu0 %v839, 88
        %v1003 = vpop.permute.xlu0 %1002
        %v1005 = vsel %vm843, %v1001, 0
        %v1008 = vsel %vm843, %v1003, 0
        %1010 = vmatprep.subr.bf16.mxu0 0
        %1011 = vmatpush1.bf16.xpose.msra.mxu0 0
        %1012 = vmatprep.subr.bf16.mxu0 0
        %1013 = vmatpush1.bf16.xpose.msra.mxu0 0
        %1014 = vmatprep.subr.bf16.mxu0 0
        %1015 = vmatpush1.bf16.xpose.msra.mxu0 0
        %1016 = vmatprep.subr.bf16.mxu0 0
        %1017 = vmatpush1.bf16.xpose.msra.mxu0 0
        %1018 = vmatprep.subr.bf16.mxu0 0
        %1019 = vmatpush1.bf16.xpose.msra.mxu0 0
        %1020 = vmatprep.subr.bf16.mxu0 0
        %1021 = vmatpush1.bf16.xpose.msra.mxu0 0
        %1022 = vmatprep.subr.bf16.mxu0 0
        %1023 = vmatpush1.bf16.xpose.msra.mxu0 0
        %1024 = vmatprep.subr.bf16.mxu0 0
        %1025 = vmatpush1.bf16.xpose.msra.mxu0 %v1008
        %1026 = vmatprep.subr.bf16.mxu0 0
        %1027 = vmatpush2.bf16.xpose.msra.mxu0 0
        %1028 = vmatprep.subr.bf16.mxu0 0
        %1029 = vmatpush2.bf16.xpose.msra.mxu0 0
        %1030 = vmatprep.subr.bf16.mxu0 0
        %1031 = vmatpush2.bf16.xpose.msra.mxu0 0
        %1032 = vmatprep.subr.bf16.mxu0 0
        %1033 = vmatpush2.bf16.xpose.msra.mxu0 0
        %1034 = vmatprep.subr.bf16.mxu0 0
        %1035 = vmatpush2.bf16.xpose.msra.mxu0 0
        %1036 = vmatprep.subr.bf16.mxu0 0
        %1037 = vmatpush2.bf16.xpose.msra.mxu0 0
        %1038 = vmatprep.subr.bf16.mxu0 0
        %1039 = vmatpush2.bf16.xpose.msra.mxu0 0
        %1040 = vmatprep.subr.bf16.mxu0 0
        %1041 = vmatpush2.bf16.xpose.msra.mxu0 0
        %1042 = vmatprep.mubr.bf16.mxu0 0
        %1043 = vmatmul.mubr.bf16.gmra.mxu0 %v1005
        %v1044 = vpop.f32.mrf.mxu0
        %v1045 = vadd.f32 0.0, %v1044
        %v1046 = vpop.f32.mrf.mxu0
        %v1047 = vpop.f32.mrf.mxu0
        %v1048 = vpop.f32.mrf.mxu0
        %1049 = vdwg.mxu0
        %v1050 = vmul.f32 %v1045, 0.35355338
        %v1051 = vsel %vm843, %v1050, -inf
        %1052 = vmax.xlane.f32.xlu0 %v1051
        %v1053 = vpop.xlane.xlu0 %1052
        %v1054 = vsub.f32 %v1050, %v1053
        %v1055 = vmul.f32 %v1054, 1.442695
        %v1056 = vpow.pop %v1055
        %v1057 = vsel %vm843, %v1056, 0.0
        %1058 = vadd.xlane.f32.xlu0 %v1057
        %v1059 = vpop.xlane.xlu0 %1058
        %v1060 = vrcp.pop %v1059
        %v1061 = vmul.f32 %v1056, %v1060
        %v1062 = vpack.c.bf16 %v1061, %v1061
        %1063 = vrot.lane.b32.xlu0 %v839, 56
        %v1064 = vpop.permute.xlu0 %1063
        %v1066 = vsel %vm843, %v1062, 0
        %v1069 = vsel %vm908, %v1064, 0
        %1071 = vmatprep.subr.bf16.mxu0 0
        %1072 = vmatpush1.bf16.msra.mxu0 0
        %1073 = vmatprep.subr.bf16.mxu0 0
        %1074 = vmatpush1.bf16.msra.mxu0 0
        %1075 = vmatprep.subr.bf16.mxu0 0
        %1076 = vmatpush1.bf16.msra.mxu0 0
        %1077 = vmatprep.subr.bf16.mxu0 0
        %1078 = vmatpush1.bf16.msra.mxu0 0
        %1079 = vmatprep.subr.bf16.mxu0 0
        %1080 = vmatpush1.bf16.msra.mxu0 0
        %1081 = vmatprep.subr.bf16.mxu0 0
        %1082 = vmatpush1.bf16.msra.mxu0 0
        %1083 = vmatprep.subr.bf16.mxu0 0
        %1084 = vmatpush1.bf16.msra.mxu0 0
        %1085 = vmatprep.subr.bf16.mxu0 0
        %1086 = vmatpush1.bf16.msra.mxu0 %v1069
        %1087 = vmatprep.subr.bf16.mxu0 0
        %1088 = vmatpush2.bf16.msra.mxu0 0
        %1089 = vmatprep.subr.bf16.mxu0 0
        %1090 = vmatpush2.bf16.msra.mxu0 0
        %1091 = vmatprep.subr.bf16.mxu0 0
        %1092 = vmatpush2.bf16.msra.mxu0 0
        %1093 = vmatprep.subr.bf16.mxu0 0
        %1094 = vmatpush2.bf16.msra.mxu0 0
        %1095 = vmatprep.subr.bf16.mxu0 0
        %1096 = vmatpush2.bf16.msra.mxu0 0
        %1097 = vmatprep.subr.bf16.mxu0 0
        %1098 = vmatpush2.bf16.msra.mxu0 0
        %1099 = vmatprep.subr.bf16.mxu0 0
        %1100 = vmatpush2.bf16.msra.mxu0 0
        %1101 = vmatprep.subr.bf16.mxu0 0
        %1102 = vmatpush2.bf16.msra.mxu0 0
        %1103 = vmatprep.mubr.bf16.mxu0 0
        %1104 = vmatmul.mubr.bf16.gmra.mxu0 %v1066
        %v1105 = vpop.f32.mrf.mxu0
        %v1106 = vadd.f32 0.0, %v1105
        %v1107 = vpop.f32.mrf.mxu0
        %v1108 = vpop.f32.mrf.mxu0
        %v1109 = vpop.f32.mrf.mxu0
        %1110 = vdwg.mxu0
        %v1111 = vpack.c.bf16 %v1106, %v1106
        %v1113 = vsel %vm843, %v1111, 0
        %v1116 = vsel %vm908, %v828, 0
        %1118 = vmatprep.subr.bf16.mxu0 0
        %1119 = vmatpush1.bf16.msra.mxu0 0
        %1120 = vmatprep.subr.bf16.mxu0 0
        %1121 = vmatpush1.bf16.msra.mxu0 0
        %1122 = vmatprep.subr.bf16.mxu0 0
        %1123 = vmatpush1.bf16.msra.mxu0 0
        %1124 = vmatprep.subr.bf16.mxu0 0
        %1125 = vmatpush1.bf16.msra.mxu0 0
        %1126 = vmatprep.subr.bf16.mxu0 0
        %1127 = vmatpush1.bf16.msra.mxu0 0
        %1128 = vmatprep.subr.bf16.mxu0 0
        %1129 = vmatpush1.bf16.msra.mxu0 0
        %1130 = vmatprep.subr.bf16.mxu0 0
        %1131 = vmatpush1.bf16.msra.mxu0 0
        %1132 = vmatprep.subr.bf16.mxu0 0
        %1133 = vmatpush1.bf16.msra.mxu0 %v1116
        %1134 = vmatprep.subr.bf16.mxu0 0
        %1135 = vmatpush2.bf16.msra.mxu0 0
        %1136 = vmatprep.subr.bf16.mxu0 0
        %1137 = vmatpush2.bf16.msra.mxu0 0
        %1138 = vmatprep.subr.bf16.mxu0 0
        %1139 = vmatpush2.bf16.msra.mxu0 0
        %1140 = vmatprep.subr.bf16.mxu0 0
        %1141 = vmatpush2.bf16.msra.mxu0 0
        %1142 = vmatprep.subr.bf16.mxu0 0
        %1143 = vmatpush2.bf16.msra.mxu0 0
        %1144 = vmatprep.subr.bf16.mxu0 0
        %1145 = vmatpush2.bf16.msra.mxu0 0
        %1146 = vmatprep.subr.bf16.mxu0 0
        %1147 = vmatpush2.bf16.msra.mxu0 0
        %1148 = vmatprep.subr.bf16.mxu0 0
        %1149 = vmatpush2.bf16.msra.mxu0 0
        %1150 = vmatprep.mubr.bf16.mxu0 0
        %1151 = vmatmul.mubr.bf16.gmra.mxu0 %v1113
        %v1152 = vpop.f32.mrf.mxu0
        %v1153 = vadd.f32 0.0, %v1152
        %v1154 = vpop.f32.mrf.mxu0
        %v1155 = vpop.f32.mrf.mxu0
        %v1156 = vpop.f32.mrf.mxu0
        %1157 = vdwg.mxu0
        %v1158 = vadd.f32 %v999, %v1153
        %1159 = vrot.lane.b32.xlu0 %v839, 112
        %v1160 = vpop.permute.xlu0 %1159
        %1161 = vrot.lane.b32.xlu0 %v839, 80
        %v1162 = vpop.permute.xlu0 %1161
        %v1164 = vsel %vm843, %v1160, 0
        %v1167 = vsel %vm843, %v1162, 0
        %1169 = vmatprep.subr.bf16.mxu0 0
        %1170 = vmatpush1.bf16.xpose.msra.mxu0 0
        %1171 = vmatprep.subr.bf16.mxu0 0
        %1172 = vmatpush1.bf16.xpose.msra.mxu0 0
        %1173 = vmatprep.subr.bf16.mxu0 0
        %1174 = vmatpush1.bf16.xpose.msra.mxu0 0
        %1175 = vmatprep.subr.bf16.mxu0 0
        %1176 = vmatpush1.bf16.xpose.msra.mxu0 0
        %1177 = vmatprep.subr.bf16.mxu0 0
        %1178 = vmatpush1.bf16.xpose.msra.mxu0 0
        %1179 = vmatprep.subr.bf16.mxu0 0
        %1180 = vmatpush1.bf16.xpose.msra.mxu0 0
        %1181 = vmatprep.subr.bf16.mxu0 0
        %1182 = vmatpush1.bf16.xpose.msra.mxu0 0
        %1183 = vmatprep.subr.bf16.mxu0 0
        %1184 = vmatpush1.bf16.xpose.msra.mxu0 %v1167
        %1185 = vmatprep.subr.bf16.mxu0 0
        %1186 = vmatpush2.bf16.xpose.msra.mxu0 0
        %1187 = vmatprep.subr.bf16.mxu0 0
        %1188 = vmatpush2.bf16.xpose.msra.mxu0 0
        %1189 = vmatprep.subr.bf16.mxu0 0
        %1190 = vmatpush2.bf16.xpose.msra.mxu0 0
        %1191 = vmatprep.subr.bf16.mxu0 0
        %1192 = vmatpush2.bf16.xpose.msra.mxu0 0
        %1193 = vmatprep.subr.bf16.mxu0 0
        %1194 = vmatpush2.bf16.xpose.msra.mxu0 0
        %1195 = vmatprep.subr.bf16.mxu0 0
        %1196 = vmatpush2.bf16.xpose.msra.mxu0 0
        %1197 = vmatprep.subr.bf16.mxu0 0
        %1198 = vmatpush2.bf16.xpose.msra.mxu0 0
        %1199 = vmatprep.subr.bf16.mxu0 0
        %1200 = vmatpush2.bf16.xpose.msra.mxu0 0
        %1201 = vmatprep.mubr.bf16.mxu0 0
        %1202 = vmatmul.mubr.bf16.gmra.mxu0 %v1164
        %v1203 = vpop.f32.mrf.mxu0
        %v1204 = vadd.f32 0.0, %v1203
        %v1205 = vpop.f32.mrf.mxu0
        %v1206 = vpop.f32.mrf.mxu0
        %v1207 = vpop.f32.mrf.mxu0
        %1208 = vdwg.mxu0
        %v1209 = vmul.f32 %v1204, 0.35355338
        %v1210 = vsel %vm843, %v1209, -inf
        %1211 = vmax.xlane.f32.xlu0 %v1210
        %v1212 = vpop.xlane.xlu0 %1211
        %v1213 = vsub.f32 %v1209, %v1212
        %v1214 = vmul.f32 %v1213, 1.442695
        %v1215 = vpow.pop %v1214
        %v1216 = vsel %vm843, %v1215, 0.0
        %1217 = vadd.xlane.f32.xlu0 %v1216
        %v1218 = vpop.xlane.xlu0 %1217
        %v1219 = vrcp.pop %v1218
        %v1220 = vmul.f32 %v1215, %v1219
        %v1221 = vpack.c.bf16 %v1220, %v1220
        %1222 = vrot.lane.b32.xlu0 %v839, 48
        %v1223 = vpop.permute.xlu0 %1222
        %v1225 = vsel %vm843, %v1221, 0
        %v1228 = vsel %vm908, %v1223, 0
        %1230 = vmatprep.subr.bf16.mxu0 0
        %1231 = vmatpush1.bf16.msra.mxu0 0
        %1232 = vmatprep.subr.bf16.mxu0 0
        %1233 = vmatpush1.bf16.msra.mxu0 0
        %1234 = vmatprep.subr.bf16.mxu0 0
        %1235 = vmatpush1.bf16.msra.mxu0 0
        %1236 = vmatprep.subr.bf16.mxu0 0
        %1237 = vmatpush1.bf16.msra.mxu0 0
        %1238 = vmatprep.subr.bf16.mxu0 0
        %1239 = vmatpush1.bf16.msra.mxu0 0
        %1240 = vmatprep.subr.bf16.mxu0 0
        %1241 = vmatpush1.bf16.msra.mxu0 0
        %1242 = vmatprep.subr.bf16.mxu0 0
        %1243 = vmatpush1.bf16.msra.mxu0 0
        %1244 = vmatprep.subr.bf16.mxu0 0
        %1245 = vmatpush1.bf16.msra.mxu0 %v1228
        %1246 = vmatprep.subr.bf16.mxu0 0
        %1247 = vmatpush2.bf16.msra.mxu0 0
        %1248 = vmatprep.subr.bf16.mxu0 0
        %1249 = vmatpush2.bf16.msra.mxu0 0
        %1250 = vmatprep.subr.bf16.mxu0 0
        %1251 = vmatpush2.bf16.msra.mxu0 0
        %1252 = vmatprep.subr.bf16.mxu0 0
        %1253 = vmatpush2.bf16.msra.mxu0 0
        %1254 = vmatprep.subr.bf16.mxu0 0
        %1255 = vmatpush2.bf16.msra.mxu0 0
        %1256 = vmatprep.subr.bf16.mxu0 0
        %1257 = vmatpush2.bf16.msra.mxu0 0
        %1258 = vmatprep.subr.bf16.mxu0 0
        %1259 = vmatpush2.bf16.msra.mxu0 0
        %1260 = vmatprep.subr.bf16.mxu0 0
        %1261 = vmatpush2.bf16.msra.mxu0 0
        %1262 = vmatprep.mubr.bf16.mxu0 0
        %1263 = vmatmul.mubr.bf16.gmra.mxu0 %v1225
        %v1264 = vpop.f32.mrf.mxu0
        %v1265 = vadd.f32 0.0, %v1264
        %v1266 = vpop.f32.mrf.mxu0
        %v1267 = vpop.f32.mrf.mxu0
        %v1268 = vpop.f32.mrf.mxu0
        %1269 = vdwg.mxu0
        %v1270 = vpack.c.bf16 %v1265, %v1265
        %v1272 = vsel %vm843, %v1270, 0
        %v1275 = vsel %vm908, %v829, 0
        %1277 = vmatprep.subr.bf16.mxu0 0
        %1278 = vmatpush1.bf16.msra.mxu0 0
        %1279 = vmatprep.subr.bf16.mxu0 0
        %1280 = vmatpush1.bf16.msra.mxu0 0
        %1281 = vmatprep.subr.bf16.mxu0 0
        %1282 = vmatpush1.bf16.msra.mxu0 0
        %1283 = vmatprep.subr.bf16.mxu0 0
        %1284 = vmatpush1.bf16.msra.mxu0 0
        %1285 = vmatprep.subr.bf16.mxu0 0
        %1286 = vmatpush1.bf16.msra.mxu0 0
        %1287 = vmatprep.subr.bf16.mxu0 0
        %1288 = vmatpush1.bf16.msra.mxu0 0
        %1289 = vmatprep.subr.bf16.mxu0 0
        %1290 = vmatpush1.bf16.msra.mxu0 0
        %1291 = vmatprep.subr.bf16.mxu0 0
        %1292 = vmatpush1.bf16.msra.mxu0 %v1275
        %1293 = vmatprep.subr.bf16.mxu0 0
        %1294 = vmatpush2.bf16.msra.mxu0 0
        %1295 = vmatprep.subr.bf16.mxu0 0
        %1296 = vmatpush2.bf16.msra.mxu0 0
        %1297 = vmatprep.subr.bf16.mxu0 0
        %1298 = vmatpush2.bf16.msra.mxu0 0
        %1299 = vmatprep.subr.bf16.mxu0 0
        %1300 = vmatpush2.bf16.msra.mxu0 0
        %1301 = vmatprep.subr.bf16.mxu0 0
        %1302 = vmatpush2.bf16.msra.mxu0 0
        %1303 = vmatprep.subr.bf16.mxu0 0
        %1304 = vmatpush2.bf16.msra.mxu0 0
        %1305 = vmatprep.subr.bf16.mxu0 0
        %1306 = vmatpush2.bf16.msra.mxu0 0
        %1307 = vmatprep.subr.bf16.mxu0 0
        %1308 = vmatpush2.bf16.msra.mxu0 0
        %1309 = vmatprep.mubr.bf16.mxu0 0
        %1310 = vmatmul.mubr.bf16.gmra.mxu0 %v1272
        %v1311 = vpop.f32.mrf.mxu0
        %v1312 = vadd.f32 0.0, %v1311
        %v1313 = vpop.f32.mrf.mxu0
        %v1314 = vpop.f32.mrf.mxu0
        %v1315 = vpop.f32.mrf.mxu0
        %1316 = vdwg.mxu0
        %v1317 = vadd.f32 %v1158, %v1312
        %1318 = vrot.lane.b32.xlu0 %v839, 104
        %v1319 = vpop.permute.xlu0 %1318
        %1320 = vrot.lane.b32.xlu0 %v839, 72
        %v1321 = vpop.permute.xlu0 %1320
        %v1323 = vsel %vm843, %v1319, 0
        %v1326 = vsel %vm843, %v1321, 0
        %1328 = vmatprep.subr.bf16.mxu0 0
        %1329 = vmatpush1.bf16.xpose.msra.mxu0 0
        %1330 = vmatprep.subr.bf16.mxu0 0
        %1331 = vmatpush1.bf16.xpose.msra.mxu0 0
        %1332 = vmatprep.subr.bf16.mxu0 0
        %1333 = vmatpush1.bf16.xpose.msra.mxu0 0
        %1334 = vmatprep.subr.bf16.mxu0 0
        %1335 = vmatpush1.bf16.xpose.msra.mxu0 0
        %1336 = vmatprep.subr.bf16.mxu0 0
        %1337 = vmatpush1.bf16.xpose.msra.mxu0 0
        %1338 = vmatprep.subr.bf16.mxu0 0
        %1339 = vmatpush1.bf16.xpose.msra.mxu0 0
        %1340 = vmatprep.subr.bf16.mxu0 0
        %1341 = vmatpush1.bf16.xpose.msra.mxu0 0
        %1342 = vmatprep.subr.bf16.mxu0 0
        %1343 = vmatpush1.bf16.xpose.msra.mxu0 %v1326
        %1344 = vmatprep.subr.bf16.mxu0 0
        %1345 = vmatpush2.bf16.xpose.msra.mxu0 0
        %1346 = vmatprep.subr.bf16.mxu0 0
        %1347 = vmatpush2.bf16.xpose.msra.mxu0 0
        %1348 = vmatprep.subr.bf16.mxu0 0
        %1349 = vmatpush2.bf16.xpose.msra.mxu0 0
        %1350 = vmatprep.subr.bf16.mxu0 0
        %1351 = vmatpush2.bf16.xpose.msra.mxu0 0
        %1352 = vmatprep.subr.bf16.mxu0 0
        %1353 = vmatpush2.bf16.xpose.msra.mxu0 0
        %1354 = vmatprep.subr.bf16.mxu0 0
        %1355 = vmatpush2.bf16.xpose.msra.mxu0 0
        %1356 = vmatprep.subr.bf16.mxu0 0
        %1357 = vmatpush2.bf16.xpose.msra.mxu0 0
        %1358 = vmatprep.subr.bf16.mxu0 0
        %1359 = vmatpush2.bf16.xpose.msra.mxu0 0
        %1360 = vmatprep.mubr.bf16.mxu0 0
        %1361 = vmatmul.mubr.bf16.gmra.mxu0 %v1323
        %v1362 = vpop.f32.mrf.mxu0
        %v1363 = vadd.f32 0.0, %v1362
        %v1364 = vpop.f32.mrf.mxu0
        %v1365 = vpop.f32.mrf.mxu0
        %v1366 = vpop.f32.mrf.mxu0
        %1367 = vdwg.mxu0
        %v1368 = vmul.f32 %v1363, 0.35355338
        %v1369 = vsel %vm843, %v1368, -inf
        %1370 = vmax.xlane.f32.xlu0 %v1369
        %v1371 = vpop.xlane.xlu0 %1370
        %v1372 = vsub.f32 %v1368, %v1371
        %v1373 = vmul.f32 %v1372, 1.442695
        %v1374 = vpow.pop %v1373
        %v1375 = vsel %vm843, %v1374, 0.0
        %1376 = vadd.xlane.f32.xlu0 %v1375
        %v1377 = vpop.xlane.xlu0 %1376
        %v1378 = vrcp.pop %v1377
        %v1379 = vmul.f32 %v1374, %v1378
        %v1380 = vpack.c.bf16 %v1379, %v1379
        %1381 = vrot.lane.b32.xlu0 %v839, 40
        %v1382 = vpop.permute.xlu0 %1381
        %v1384 = vsel %vm843, %v1380, 0
        %v1387 = vsel %vm908, %v1382, 0
        %1389 = vmatprep.subr.bf16.mxu0 0
        %1390 = vmatpush1.bf16.msra.mxu0 0
        %1391 = vmatprep.subr.bf16.mxu0 0
        %1392 = vmatpush1.bf16.msra.mxu0 0
        %1393 = vmatprep.subr.bf16.mxu0 0
        %1394 = vmatpush1.bf16.msra.mxu0 0
        %1395 = vmatprep.subr.bf16.mxu0 0
        %1396 = vmatpush1.bf16.msra.mxu0 0
        %1397 = vmatprep.subr.bf16.mxu0 0
        %1398 = vmatpush1.bf16.msra.mxu0 0
        %1399 = vmatprep.subr.bf16.mxu0 0
        %1400 = vmatpush1.bf16.msra.mxu0 0
        %1401 = vmatprep.subr.bf16.mxu0 0
        %1402 = vmatpush1.bf16.msra.mxu0 0
        %1403 = vmatprep.subr.bf16.mxu0 0
        %1404 = vmatpush1.bf16.msra.mxu0 %v1387
        %1405 = vmatprep.subr.bf16.mxu0 0
        %1406 = vmatpush2.bf16.msra.mxu0 0
        %1407 = vmatprep.subr.bf16.mxu0 0
        %1408 = vmatpush2.bf16.msra.mxu0 0
        %1409 = vmatprep.subr.bf16.mxu0 0
        %1410 = vmatpush2.bf16.msra.mxu0 0
        %1411 = vmatprep.subr.bf16.mxu0 0
        %1412 = vmatpush2.bf16.msra.mxu0 0
        %1413 = vmatprep.subr.bf16.mxu0 0
        %1414 = vmatpush2.bf16.msra.mxu0 0
        %1415 = vmatprep.subr.bf16.mxu0 0
        %1416 = vmatpush2.bf16.msra.mxu0 0
        %1417 = vmatprep.subr.bf16.mxu0 0
        %1418 = vmatpush2.bf16.msra.mxu0 0
        %1419 = vmatprep.subr.bf16.mxu0 0
        %1420 = vmatpush2.bf16.msra.mxu0 0
        %1421 = vmatprep.mubr.bf16.mxu0 0
        %1422 = vmatmul.mubr.bf16.gmra.mxu0 %v1384
        %v1423 = vpop.f32.mrf.mxu0
        %v1424 = vadd.f32 0.0, %v1423
        %v1425 = vpop.f32.mrf.mxu0
        %v1426 = vpop.f32.mrf.mxu0
        %v1427 = vpop.f32.mrf.mxu0
        %1428 = vdwg.mxu0
        %v1429 = vpack.c.bf16 %v1424, %v1424
        %v1431 = vsel %vm843, %v1429, 0
        %v1434 = vsel %vm908, %v830, 0
        %1436 = vmatprep.subr.bf16.mxu0 0
        %1437 = vmatpush1.bf16.msra.mxu0 0
        %1438 = vmatprep.subr.bf16.mxu0 0
        %1439 = vmatpush1.bf16.msra.mxu0 0
        %1440 = vmatprep.subr.bf16.mxu0 0
        %1441 = vmatpush1.bf16.msra.mxu0 0
        %1442 = vmatprep.subr.bf16.mxu0 0
        %1443 = vmatpush1.bf16.msra.mxu0 0
        %1444 = vmatprep.subr.bf16.mxu0 0
        %1445 = vmatpush1.bf16.msra.mxu0 0
        %1446 = vmatprep.subr.bf16.mxu0 0
        %1447 = vmatpush1.bf16.msra.mxu0 0
        %1448 = vmatprep.subr.bf16.mxu0 0
        %1449 = vmatpush1.bf16.msra.mxu0 0
        %1450 = vmatprep.subr.bf16.mxu0 0
        %1451 = vmatpush1.bf16.msra.mxu0 %v1434
        %1452 = vmatprep.subr.bf16.mxu0 0
        %1453 = vmatpush2.bf16.msra.mxu0 0
        %1454 = vmatprep.subr.bf16.mxu0 0
        %1455 = vmatpush2.bf16.msra.mxu0 0
        %1456 = vmatprep.subr.bf16.mxu0 0
        %1457 = vmatpush2.bf16.msra.mxu0 0
        %1458 = vmatprep.subr.bf16.mxu0 0
        %1459 = vmatpush2.bf16.msra.mxu0 0
        %1460 = vmatprep.subr.bf16.mxu0 0
        %1461 = vmatpush2.bf16.msra.mxu0 0
        %1462 = vmatprep.subr.bf16.mxu0 0
        %1463 = vmatpush2.bf16.msra.mxu0 0
        %1464 = vmatprep.subr.bf16.mxu0 0
        %1465 = vmatpush2.bf16.msra.mxu0 0
        %1466 = vmatprep.subr.bf16.mxu0 0
        %1467 = vmatpush2.bf16.msra.mxu0 0
        %1468 = vmatprep.mubr.bf16.mxu0 0
        %1469 = vmatmul.mubr.bf16.gmra.mxu0 %v1431
        %v1470 = vpop.f32.mrf.mxu0
        %v1471 = vadd.f32 0.0, %v1470
        %v1472 = vpop.f32.mrf.mxu0
        %v1473 = vpop.f32.mrf.mxu0
        %v1474 = vpop.f32.mrf.mxu0
        %1475 = vdwg.mxu0
        %v1476 = vadd.f32 %v1317, %v1471
        %v1477 = vadd.f32 %v759, %v1476
        %v1478 = vld [vmem:[%s10] sm:$0x1]
        %v1479 = vld [vmem:[%s11] sm:$0x1]
        %v1480 = vsel %vm731, %v1477, 0.0
        %1481 = vadd.xlane.f32.xlu0 %v1480
        %v1482 = vpop.xlane.xlu0 %1481
        %v1483 = vmul.f32 %v1482, %v735
        %v1484 = vsub.f32 %v1477, %v1483
        %v1485 = vmul.f32 %v1484, %v1484
        %v1486 = vsel %vm731, %v1485, 0.0
        %1487 = vadd.xlane.f32.xlu0 %v1486
        %v1488 = vpop.xlane.xlu0 %1487
        %v1489 = vmul.f32 %v1488, %v735
        %v1490 = vadd.f32 %v1489, 1e-12
        %v1491 = vrsqrt.pop %v1490
        %v1492 = vmul.f32 %v1484, %v1491
        %v1494 = vlaneseq
        %v1495 = vshrl.u32 %v1494, 7
        %v1496 = vsub.s32 0, %v1495
        %v1497 = vrot.slane %v1478, %v1496
        %v1499 = vmul.f32 %v1492, %v1497
        %v1501 = vlaneseq
        %v1502 = vshrl.u32 %v1501, 7
        %v1503 = vsub.s32 0, %v1502
        %v1504 = vrot.slane %v1479, %v1503
        %v1506 = vadd.f32 %v1499, %v1504
        %v1507 = vpack.c.bf16 %v1506, %v1506
        %v1508 = vld [vmem:[%s12] sm:$0xf]
        %v1509 = vld [vmem:[%s12 + $0x4] sm:$0xf]
        %v1510 = vld [vmem:[%s12 + $0x8] sm:$0xf]
        %v1511 = vld [vmem:[%s12 + $0xc] sm:$0xf]
        %v1512 = vld [vmem:[%s13] sm:$0x1]
        %v1514 = vlaneseq
        %v1515 = vshrl.u32 %v1514, 7
        %v1516 = vsub.s32 0, %v1515
        %v1517 = vrot.slane %v1512, %v1516
        %v1523 = vunpack.c.l.b16 %v1508
        %v1524 = vunpack.c.l.b16 %v1509
        %v1525 = vunpack.c.l.b16 %v1510
        %v1526 = vunpack.c.l.b16 %v1511
        %v1527 = vpack.c.b16 %v1524, %v1523
        %v1528 = vpack.c.b16 %v1526, %v1525
        %v1532 = vsel %vm731, %v1507, 0
        %1534 = vmatprep.subr.bf16.mxu0 0
        %1535 = vmatpush1.bf16.msra.mxu0 0
        %1536 = vmatprep.subr.bf16.mxu0 0
        %1537 = vmatpush1.bf16.msra.mxu0 0
        %1538 = vmatprep.subr.bf16.mxu0 0
        %1539 = vmatpush1.bf16.msra.mxu0 0
        %1540 = vmatprep.subr.bf16.mxu0 0
        %1541 = vmatpush1.bf16.msra.mxu0 0
        %1542 = vmatprep.subr.bf16.mxu0 0
        %1543 = vmatpush1.bf16.msra.mxu0 0
        %1544 = vmatprep.subr.bf16.mxu0 0
        %1545 = vmatpush1.bf16.msra.mxu0 0
        %1546 = vmatprep.subr.bf16.mxu0 0
        %1547 = vmatpush1.bf16.msra.mxu0 %v1528
        %1548 = vmatprep.subr.bf16.mxu0 0
        %1549 = vmatpush1.bf16.msra.mxu0 %v1527
        %1550 = vmatprep.subr.bf16.mxu0 0
        %1551 = vmatpush2.bf16.msra.mxu0 0
        %1552 = vmatprep.subr.bf16.mxu0 0
        %1553 = vmatpush2.bf16.msra.mxu0 0
        %1554 = vmatprep.subr.bf16.mxu0 0
        %1555 = vmatpush2.bf16.msra.mxu0 0
        %1556 = vmatprep.subr.bf16.mxu0 0
        %1557 = vmatpush2.bf16.msra.mxu0 0
        %1558 = vmatprep.subr.bf16.mxu0 0
        %1559 = vmatpush2.bf16.msra.mxu0 0
        %1560 = vmatprep.subr.bf16.mxu0 0
        %1561 = vmatpush2.bf16.msra.mxu0 0
        %1562 = vmatprep.subr.bf16.mxu0 0
        %1563 = vmatpush2.bf16.msra.mxu0 0
        %1564 = vmatprep.subr.bf16.mxu0 0
        %1565 = vmatpush2.bf16.msra.mxu0 0
        %1566 = vmatprep.mubr.bf16.mxu0 0
        %1567 = vmatmul.mubr.bf16.gmra.mxu0 %v1532
        %v1568 = vpop.f32.mrf.mxu0
        %v1569 = vadd.f32 %v1517, %v1568
        %v1570 = vpop.f32.mrf.mxu0
        %v1571 = vpop.f32.mrf.mxu0
        %v1572 = vpop.f32.mrf.mxu0
        %1573 = vdwg.mxu0
        %v1574 = vmul.f32 %v1569, %v1569
        %v1575 = vmul.f32 %v1569, %v1574
        %v1576 = vmul.f32 %v1575, 0.044715
        %v1577 = vadd.f32 %v1569, %v1576
        %v1578 = vmul.f32 %v1577, 0.7978846
        %v1579 = vtanh.pop %v1578
        %v1580 = vadd.f32 %v1579, 1.0
        %v1581 = vmul.f32 %v1580, 0.5
        %v1582 = vmul.f32 %v1569, %v1581
        %v1583 = vpack.c.bf16 %v1582, %v1582
        %v1584 = vld [vmem:[%s14] sm:$0xf]
        %v1585 = vld [vmem:[%s14 + $0x4] sm:$0xf]
        %v1586 = vld [vmem:[%s14 + $0x8] sm:$0xf]
        %v1587 = vld [vmem:[%s14 + $0xc] sm:$0xf]
        %v1588 = vld [vmem:[%s14 + $0x10] sm:$0xf]
        %v1589 = vld [vmem:[%s14 + $0x14] sm:$0xf]
        %v1590 = vld [vmem:[%s14 + $0x18] sm:$0xf]
        %v1591 = vld [vmem:[%s14 + $0x1c] sm:$0xf]
        %v1592 = vld [vmem:[%s15] sm:$0x1]
        %v1594 = vlaneseq
        %v1595 = vshrl.u32 %v1594, 7
        %v1596 = vsub.s32 0, %v1595
        %v1597 = vrot.slane %v1592, %v1596
        %v1607 = vunpack.c.l.b16 %v1584
        %v1608 = vunpack.c.l.b16 %v1585
        %v1609 = vunpack.c.l.b16 %v1586
        %v1610 = vunpack.c.l.b16 %v1587
        %v1611 = vunpack.c.l.b16 %v1588
        %v1612 = vunpack.c.l.b16 %v1589
        %v1613 = vunpack.c.l.b16 %v1590
        %v1614 = vunpack.c.l.b16 %v1591
        %v1615 = vpack.c.b16 %v1608, %v1607
        %v1616 = vpack.c.b16 %v1610, %v1609
        %v1617 = vpack.c.b16 %v1612, %v1611
        %v1618 = vpack.c.b16 %v1614, %v1613
        %vm1623 = vcmask 523264
        %v1625 = vsel %vm1623, %v1583, 0
        %1627 = vmatprep.subr.bf16.mxu0 0
        %1628 = vmatpush1.bf16.msra.mxu0 0
        %1629 = vmatprep.subr.bf16.mxu0 0
        %1630 = vmatpush1.bf16.msra.mxu0 0
        %1631 = vmatprep.subr.bf16.mxu0 0
        %1632 = vmatpush1.bf16.msra.mxu0 0
        %1633 = vmatprep.subr.bf16.mxu0 0
        %1634 = vmatpush1.bf16.msra.mxu0 0
        %1635 = vmatprep.subr.bf16.mxu0 0
        %1636 = vmatpush1.bf16.msra.mxu0 %v1618
        %1637 = vmatprep.subr.bf16.mxu0 0
        %1638 = vmatpush1.bf16.msra.mxu0 %v1617
        %1639 = vmatprep.subr.bf16.mxu0 0
        %1640 = vmatpush1.bf16.msra.mxu0 %v1616
        %1641 = vmatprep.subr.bf16.mxu0 0
        %1642 = vmatpush1.bf16.msra.mxu0 %v1615
        %1643 = vmatprep.subr.bf16.mxu0 0
        %1644 = vmatpush2.bf16.msra.mxu0 0
        %1645 = vmatprep.subr.bf16.mxu0 0
        %1646 = vmatpush2.bf16.msra.mxu0 0
        %1647 = vmatprep.subr.bf16.mxu0 0
        %1648 = vmatpush2.bf16.msra.mxu0 0
        %1649 = vmatprep.subr.bf16.mxu0 0
        %1650 = vmatpush2.bf16.msra.mxu0 0
        %1651 = vmatprep.subr.bf16.mxu0 0
        %1652 = vmatpush2.bf16.msra.mxu0 0
        %1653 = vmatprep.subr.bf16.mxu0 0
        %1654 = vmatpush2.bf16.msra.mxu0 0
        %1655 = vmatprep.subr.bf16.mxu0 0
        %1656 = vmatpush2.bf16.msra.mxu0 0
        %1657 = vmatprep.subr.bf16.mxu0 0
        %1658 = vmatpush2.bf16.msra.mxu0 0
        %1659 = vmatprep.mubr.bf16.mxu0 0
        %1660 = vmatmul.mubr.bf16.gmra.mxu0 %v1625
        %v1661 = vpop.f32.mrf.mxu0
        %v1662 = vadd.f32 %v1597, %v1661
        %v1663 = vpop.f32.mrf.mxu0
        %v1664 = vpop.f32.mrf.mxu0
        %v1665 = vpop.f32.mrf.mxu0
        %1666 = vdwg.mxu0
        %v1667 = vadd.f32 %v1506, %v1662
        %v1668 = vld [vmem:[%s16] sm:$0x1]
        %v1669 = vld [vmem:[%s17] sm:$0x1]
        %v1670 = vsel %vm731, %v1667, 0.0
        %1671 = vadd.xlane.f32.xlu0 %v1670
        %v1672 = vpop.xlane.xlu0 %1671
        %v1673 = vmul.f32 %v1672, %v735
        %v1674 = vsub.f32 %v1667, %v1673
        %v1675 = vmul.f32 %v1674, %v1674
        %v1676 = vsel %vm731, %v1675, 0.0
        %1677 = vadd.xlane.f32.xlu0 %v1676
        %v1678 = vpop.xlane.xlu0 %1677
        %v1679 = vmul.f32 %v1678, %v735
        %v1680 = vadd.f32 %v1679, 1e-12
        %v1681 = vrsqrt.pop %v1680
        %v1682 = vmul.f32 %v1674, %v1681
        %v1684 = vlaneseq
        %v1685 = vshrl.u32 %v1684, 7
        %v1686 = vsub.s32 0, %v1685
        %v1687 = vrot.slane %v1668, %v1686
        %v1689 = vmul.f32 %v1682, %v1687
        %v1691 = vlaneseq
        %v1692 = vshrl.u32 %v1691, 7
        %v1693 = vsub.s32 0, %v1692
        %v1694 = vrot.slane %v1669, %v1693
        %v1696 = vadd.f32 %v1689, %v1694
        %v1697 = vpack.c.bf16 %v1696, %v1696
        %s1698 = scalar_lea.vmem %s6, 16
        %v1699 = vld [vmem:[%s1698] sm:$0xf]
        %v1700 = vld [vmem:[%s1698 + $0x4] sm:$0xf]
        %v1701 = vld [vmem:[%s1698 + $0x8] sm:$0xf]
        %v1702 = vld [vmem:[%s1698 + $0xc] sm:$0xf]
        %s1703 = scalar_lea.vmem %s7, 1
        %v1704 = vld [vmem:[%s1703] sm:$0x1]
        %v1706 = vlaneseq
        %v1707 = vshrl.u32 %v1706, 7
        %v1708 = vsub.s32 0, %v1707
        %v1709 = vrot.slane %v1704, %v1708
        %v1715 = vunpack.c.l.b16 %v1699
        %v1716 = vunpack.c.l.b16 %v1700
        %v1717 = vunpack.c.l.b16 %v1701
        %v1718 = vunpack.c.l.b16 %v1702
        %v1719 = vpack.c.b16 %v1716, %v1715
        %v1720 = vpack.c.b16 %v1718, %v1717
        %v1724 = vsel %vm731, %v1697, 0
        %1726 = vmatprep.subr.bf16.mxu0 0
        %1727 = vmatpush1.bf16.msra.mxu0 0
        %1728 = vmatprep.subr.bf16.mxu0 0
        %1729 = vmatpush1.bf16.msra.mxu0 0
        %1730 = vmatprep.subr.bf16.mxu0 0
        %1731 = vmatpush1.bf16.msra.mxu0 0
        %1732 = vmatprep.subr.bf16.mxu0 0
        %1733 = vmatpush1.bf16.msra.mxu0 0
        %1734 = vmatprep.subr.bf16.mxu0 0
        %1735 = vmatpush1.bf16.msra.mxu0 0
        %1736 = vmatprep.subr.bf16.mxu0 0
        %1737 = vmatpush1.bf16.msra.mxu0 0
        %1738 = vmatprep.subr.bf16.mxu0 0
        %1739 = vmatpush1.bf16.msra.mxu0 %v1720
        %1740 = vmatprep.subr.bf16.mxu0 0
        %1741 = vmatpush1.bf16.msra.mxu0 %v1719
        %1742 = vmatprep.subr.bf16.mxu0 0
        %1743 = vmatpush2.bf16.msra.mxu0 0
        %1744 = vmatprep.subr.bf16.mxu0 0
        %1745 = vmatpush2.bf16.msra.mxu0 0
        %1746 = vmatprep.subr.bf16.mxu0 0
        %1747 = vmatpush2.bf16.msra.mxu0 0
        %1748 = vmatprep.subr.bf16.mxu0 0
        %1749 = vmatpush2.bf16.msra.mxu0 0
        %1750 = vmatprep.subr.bf16.mxu0 0
        %1751 = vmatpush2.bf16.msra.mxu0 0
        %1752 = vmatprep.subr.bf16.mxu0 0
        %1753 = vmatpush2.bf16.msra.mxu0 0
        %1754 = vmatprep.subr.bf16.mxu0 0
        %1755 = vmatpush2.bf16.msra.mxu0 0
        %1756 = vmatprep.subr.bf16.mxu0 0
        %1757 = vmatpush2.bf16.msra.mxu0 0
        %1758 = vmatprep.mubr.bf16.mxu0 0
        %1759 = vmatmul.mubr.bf16.gmra.mxu0 %v1724
        %v1760 = vpop.f32.mrf.mxu0
        %v1761 = vadd.f32 %v1709, %v1760
        %v1762 = vpop.f32.mrf.mxu0
        %v1763 = vpop.f32.mrf.mxu0
        %v1764 = vpop.f32.mrf.mxu0
        %1765 = vdwg.mxu0
        %s1766 = scalar_lea.vmem %s8, 16
        %v1767 = vld [vmem:[%s1766] sm:$0xf]
        %v1768 = vld [vmem:[%s1766 + $0x4] sm:$0xf]
        %v1769 = vld [vmem:[%s1766 + $0x8] sm:$0xf]
        %v1770 = vld [vmem:[%s1766 + $0xc] sm:$0xf]
        %s1771 = scalar_lea.vmem %s9, 1
        %v1772 = vld [vmem:[%s1771] sm:$0x1]
        %v1774 = vlaneseq
        %v1775 = vshrl.u32 %v1774, 7
        %v1776 = vsub.s32 0, %v1775
        %v1777 = vrot.slane %v1772, %v1776
        %v1779 = vadd.f32 %v1777, 0.0
        %v1780 = vpack.c.bf16 %v1761, %v1761
        %1782 = vrot.lane.b32.xlu0 %v1780, 96
        %v1783 = vpop.permute.xlu0 %1782
        %v1785 = vsel %vm843, %v1780, 0
        %v1788 = vsel %vm843, %v1783, 0
        %1790 = vmatprep.subr.bf16.mxu0 0
        %1791 = vmatpush1.bf16.xpose.msra.mxu0 0
        %1792 = vmatprep.subr.bf16.mxu0 0
        %1793 = vmatpush1.bf16.xpose.msra.mxu0 0
        %1794 = vmatprep.subr.bf16.mxu0 0
        %1795 = vmatpush1.bf16.xpose.msra.mxu0 0
        %1796 = vmatprep.subr.bf16.mxu0 0
        %1797 = vmatpush1.bf16.xpose.msra.mxu0 0
        %1798 = vmatprep.subr.bf16.mxu0 0
        %1799 = vmatpush1.bf16.xpose.msra.mxu0 0
        %1800 = vmatprep.subr.bf16.mxu0 0
        %1801 = vmatpush1.bf16.xpose.msra.mxu0 0
        %1802 = vmatprep.subr.bf16.mxu0 0
        %1803 = vmatpush1.bf16.xpose.msra.mxu0 0
        %1804 = vmatprep.subr.bf16.mxu0 0
        %1805 = vmatpush1.bf16.xpose.msra.mxu0 %v1788
        %1806 = vmatprep.subr.bf16.mxu0 0
        %1807 = vmatpush2.bf16.xpose.msra.mxu0 0
        %1808 = vmatprep.subr.bf16.mxu0 0
        %1809 = vmatpush2.bf16.xpose.msra.mxu0 0
        %1810 = vmatprep.subr.bf16.mxu0 0
        %1811 = vmatpush2.bf16.xpose.msra.mxu0 0
        %1812 = vmatprep.subr.bf16.mxu0 0
        %1813 = vmatpush2.bf16.xpose.msra.mxu0 0
        %1814 = vmatprep.subr.bf16.mxu0 0
        %1815 = vmatpush2.bf16.xpose.msra.mxu0 0
        %1816 = vmatprep.subr.bf16.mxu0 0
        %1817 = vmatpush2.bf16.xpose.msra.mxu0 0
        %1818 = vmatprep.subr.bf16.mxu0 0
        %1819 = vmatpush2.bf16.xpose.msra.mxu0 0
        %1820 = vmatprep.subr.bf16.mxu0 0
        %1821 = vmatpush2.bf16.xpose.msra.mxu0 0
        %1822 = vmatprep.mubr.bf16.mxu0 0
        %1823 = vmatmul.mubr.bf16.gmra.mxu0 %v1785
        %v1824 = vpop.f32.mrf.mxu0
        %v1825 = vadd.f32 0.0, %v1824
        %v1826 = vpop.f32.mrf.mxu0
        %v1827 = vpop.f32.mrf.mxu0
        %v1828 = vpop.f32.mrf.mxu0
        %1829 = vdwg.mxu0
        %v1830 = vmul.f32 %v1825, 0.35355338
        %v1831 = vsel %vm843, %v1830, -inf
        %1832 = vmax.xlane.f32.xlu0 %v1831
        %v1833 = vpop.xlane.xlu0 %1832
        %v1834 = vsub.f32 %v1830, %v1833
        %v1835 = vmul.f32 %v1834, 1.442695
        %v1836 = vpow.pop %v1835
        %v1837 = vsel %vm843, %v1836, 0.0
        %1838 = vadd.xlane.f32.xlu0 %v1837
        %v1839 = vpop.xlane.xlu0 %1838
        %v1840 = vrcp.pop %v1839
        %v1841 = vmul.f32 %v1836, %v1840
        %v1842 = vpack.c.bf16 %v1841, %v1841
        %1843 = vrot.lane.b32.xlu0 %v1780, 64
        %v1844 = vpop.permute.xlu0 %1843
        %v1846 = vsel %vm843, %v1842, 0
        %v1849 = vsel %vm908, %v1844, 0
        %1851 = vmatprep.subr.bf16.mxu0 0
        %1852 = vmatpush1.bf16.msra.mxu0 0
        %1853 = vmatprep.subr.bf16.mxu0 0
        %1854 = vmatpush1.bf16.msra.mxu0 0
        %1855 = vmatprep.subr.bf16.mxu0 0
        %1856 = vmatpush1.bf16.msra.mxu0 0
        %1857 = vmatprep.subr.bf16.mxu0 0
        %1858 = vmatpush1.bf16.msra.mxu0 0
        %1859 = vmatprep.subr.bf16.mxu0 0
        %1860 = vmatpush1.bf16.msra.mxu0 0
        %1861 = vmatprep.subr.bf16.mxu0 0
        %1862 = vmatpush1.bf16.msra.mxu0 0
        %1863 = vmatprep.subr.bf16.mxu0 0
        %1864 = vmatpush1.bf16.msra.mxu0 0
        %1865 = vmatprep.subr.bf16.mxu0 0
        %1866 = vmatpush1.bf16.msra.mxu0 %v1849
        %1867 = vmatprep.subr.bf16.mxu0 0
        %1868 = vmatpush2.bf16.msra.mxu0 0
        %1869 = vmatprep.subr.bf16.mxu0 0
        %1870 = vmatpush2.bf16.msra.mxu0 0
        %1871 = vmatprep.subr.bf16.mxu0 0
        %1872 = vmatpush2.bf16.msra.mxu0 0
        %1873 = vmatprep.subr.bf16.mxu0 0
        %1874 = vmatpush2.bf16.msra.mxu0 0
        %1875 = vmatprep.subr.bf16.mxu0 0
        %1876 = vmatpush2.bf16.msra.mxu0 0
        %1877 = vmatprep.subr.bf16.mxu0 0
        %1878 = vmatpush2.bf16.msra.mxu0 0
        %1879 = vmatprep.subr.bf16.mxu0 0
        %1880 = vmatpush2.bf16.msra.mxu0 0
        %1881 = vmatprep.subr.bf16.mxu0 0
        %1882 = vmatpush2.bf16.msra.mxu0 0
        %1883 = vmatprep.mubr.bf16.mxu0 0
        %1884 = vmatmul.mubr.bf16.gmra.mxu0 %v1846
        %v1885 = vpop.f32.mrf.mxu0
        %v1886 = vadd.f32 0.0, %v1885
        %v1887 = vpop.f32.mrf.mxu0
        %v1888 = vpop.f32.mrf.mxu0
        %v1889 = vpop.f32.mrf.mxu0
        %1890 = vdwg.mxu0
        %v1891 = vpack.c.bf16 %v1886, %v1886
        %v1893 = vsel %vm843, %v1891, 0
        %v1896 = vsel %vm908, %v1767, 0
        %1898 = vmatprep.subr.bf16.mxu0 0
        %1899 = vmatpush1.bf16.msra.mxu0 0
        %1900 = vmatprep.subr.bf16.mxu0 0
        %1901 = vmatpush1.bf16.msra.mxu0 0
        %1902 = vmatprep.subr.bf16.mxu0 0
        %1903 = vmatpush1.bf16.msra.mxu0 0
        %1904 = vmatprep.subr.bf16.mxu0 0
        %1905 = vmatpush1.bf16.msra.mxu0 0
        %1906 = vmatprep.subr.bf16.mxu0 0
        %1907 = vmatpush1.bf16.msra.mxu0 0
        %1908 = vmatprep.subr.bf16.mxu0 0
        %1909 = vmatpush1.bf16.msra.mxu0 0
        %1910 = vmatprep.subr.bf16.mxu0 0
        %1911 = vmatpush1.bf16.msra.mxu0 0
        %1912 = vmatprep.subr.bf16.mxu0 0
        %1913 = vmatpush1.bf16.msra.mxu0 %v1896
        %1914 = vmatprep.subr.bf16.mxu0 0
        %1915 = vmatpush2.bf16.msra.mxu0 0
        %1916 = vmatprep.subr.bf16.mxu0 0
        %1917 = vmatpush2.bf16.msra.mxu0 0
        %1918 = vmatprep.subr.bf16.mxu0 0
        %1919 = vmatpush2.bf16.msra.mxu0 0
        %1920 = vmatprep.subr.bf16.mxu0 0
        %1921 = vmatpush2.bf16.msra.mxu0 0
        %1922 = vmatprep.subr.bf16.mxu0 0
        %1923 = vmatpush2.bf16.msra.mxu0 0
        %1924 = vmatprep.subr.bf16.mxu0 0
        %1925 = vmatpush2.bf16.msra.mxu0 0
        %1926 = vmatprep.subr.bf16.mxu0 0
        %1927 = vmatpush2.bf16.msra.mxu0 0
        %1928 = vmatprep.subr.bf16.mxu0 0
        %1929 = vmatpush2.bf16.msra.mxu0 0
        %1930 = vmatprep.mubr.bf16.mxu0 0
        %1931 = vmatmul.mubr.bf16.gmra.mxu0 %v1893
        %v1932 = vpop.f32.mrf.mxu0
        %v1933 = vadd.f32 0.0, %v1932
        %v1934 = vpop.f32.mrf.mxu0
        %v1935 = vpop.f32.mrf.mxu0
        %v1936 = vpop.f32.mrf.mxu0
        %1937 = vdwg.mxu0
        %v1938 = vadd.f32 %v1779, %v1933
        %1939 = vrot.lane.b32.xlu0 %v1780, 120
        %v1940 = vpop.permute.xlu0 %1939
        %1941 = vrot.lane.b32.xlu0 %v1780, 88
        %v1942 = vpop.permute.xlu0 %1941
        %v1944 = vsel %vm843, %v1940, 0
        %v1947 = vsel %vm843, %v1942, 0
        %1949 = vmatprep.subr.bf16.mxu0 0
        %1950 = vmatpush1.bf16.xpose.msra.mxu0 0
        %1951 = vmatprep.subr.bf16.mxu0 0
        %1952 = vmatpush1.bf16.xpose.msra.mxu0 0
        %1953 = vmatprep.subr.bf16.mxu0 0
        %1954 = vmatpush1.bf16.xpose.msra.mxu0 0
        %1955 = vmatprep.subr.bf16.mxu0 0
        %1956 = vmatpush1.bf16.xpose.msra.mxu0 0
        %1957 = vmatprep.subr.bf16.mxu0 0
        %1958 = vmatpush1.bf16.xpose.msra.mxu0 0
        %1959 = vmatprep.subr.bf16.mxu0 0
        %1960 = vmatpush1.bf16.xpose.msra.mxu0 0
        %1961 = vmatprep.subr.bf16.mxu0 0
        %1962 = vmatpush1.bf16.xpose.msra.mxu0 0
        %1963 = vmatprep.subr.bf16.mxu0 0
        %1964 = vmatpush1.bf16.xpose.msra.mxu0 %v1947
        %1965 = vmatprep.subr.bf16.mxu0 0
        %1966 = vmatpush2.bf16.xpose.msra.mxu0 0
        %1967 = vmatprep.subr.bf16.mxu0 0
        %1968 = vmatpush2.bf16.xpose.msra.mxu0 0
        %1969 = vmatprep.subr.bf16.mxu0 0
        %1970 = vmatpush2.bf16.xpose.msra.mxu0 0
        %1971 = vmatprep.subr.bf16.mxu0 0
        %1972 = vmatpush2.bf16.xpose.msra.mxu0 0
        %1973 = vmatprep.subr.bf16.mxu0 0
        %1974 = vmatpush2.bf16.xpose.msra.mxu0 0
        %1975 = vmatprep.subr.bf16.mxu0 0
        %1976 = vmatpush2.bf16.xpose.msra.mxu0 0
        %1977 = vmatprep.subr.bf16.mxu0 0
        %1978 = vmatpush2.bf16.xpose.msra.mxu0 0
        %1979 = vmatprep.subr.bf16.mxu0 0
        %1980 = vmatpush2.bf16.xpose.msra.mxu0 0
        %1981 = vmatprep.mubr.bf16.mxu0 0
        %1982 = vmatmul.mubr.bf16.gmra.mxu0 %v1944
        %v1983 = vpop.f32.mrf.mxu0
        %v1984 = vadd.f32 0.0, %v1983
        %v1985 = vpop.f32.mrf.mxu0
        %v1986 = vpop.f32.mrf.mxu0
        %v1987 = vpop.f32.mrf.mxu0
        %1988 = vdwg.mxu0
        %v1989 = vmul.f32 %v1984, 0.35355338
        %v1990 = vsel %vm843, %v1989, -inf
        %1991 = vmax.xlane.f32.xlu0 %v1990
        %v1992 = vpop.xlane.xlu0 %1991
        %v1993 = vsub.f32 %v1989, %v1992
        %v1994 = vmul.f32 %v1993, 1.442695
        %v1995 = vpow.pop %v1994
        %v1996 = vsel %vm843, %v1995, 0.0
        %1997 = vadd.xlane.f32.xlu0 %v1996
        %v1998 = vpop.xlane.xlu0 %1997
        %v1999 = vrcp.pop %v1998
        %v2000 = vmul.f32 %v1995, %v1999
        %v2001 = vpack.c.bf16 %v2000, %v2000
        %2002 = vrot.lane.b32.xlu0 %v1780, 56
        %v2003 = vpop.permute.xlu0 %2002
        %v2005 = vsel %vm843, %v2001, 0
        %v2008 = vsel %vm908, %v2003, 0
        %2010 = vmatprep.subr.bf16.mxu0 0
        %2011 = vmatpush1.bf16.msra.mxu0 0
        %2012 = vmatprep.subr.bf16.mxu0 0
        %2013 = vmatpush1.bf16.msra.mxu0 0
        %2014 = vmatprep.subr.bf16.mxu0 0
        %2015 = vmatpush1.bf16.msra.mxu0 0
        %2016 = vmatprep.subr.bf16.mxu0 0
        %2017 = vmatpush1.bf16.msra.mxu0 0
        %2018 = vmatprep.subr.bf16.mxu0 0
        %2019 = vmatpush1.bf16.msra.mxu0 0
        %2020 = vmatprep.subr.bf16.mxu0 0
        %2021 = vmatpush1.bf16.msra.mxu0 0
        %2022 = vmatprep.subr.bf16.mxu0 0
        %2023 = vmatpush1.bf16.msra.mxu0 0
        %2024 = vmatprep.subr.bf16.mxu0 0
        %2025 = vmatpush1.bf16.msra.mxu0 %v2008
        %2026 = vmatprep.subr.bf16.mxu0 0
        %2027 = vmatpush2.bf16.msra.mxu0 0
        %2028 = vmatprep.subr.bf16.mxu0 0
        %2029 = vmatpush2.bf16.msra.mxu0 0
        %2030 = vmatprep.subr.bf16.mxu0 0
        %2031 = vmatpush2.bf16.msra.mxu0 0
        %2032 = vmatprep.subr.bf16.mxu0 0
        %2033 = vmatpush2.bf16.msra.mxu0 0
        %2034 = vmatprep.subr.bf16.mxu0 0
        %2035 = vmatpush2.bf16.msra.mxu0 0
        %2036 = vmatprep.subr.bf16.mxu0 0
        %2037 = vmatpush2.bf16.msra.mxu0 0
        %2038 = vmatprep.subr.bf16.mxu0 0
        %2039 = vmatpush2.bf16.msra.mxu0 0
        %2040 = vmatprep.subr.bf16.mxu0 0
        %2041 = vmatpush2.bf16.msra.mxu0 0
        %2042 = vmatprep.mubr.bf16.mxu0 0
        %2043 = vmatmul.mubr.bf16.gmra.mxu0 %v2005
        %v2044 = vpop.f32.mrf.mxu0
        %v2045 = vadd.f32 0.0, %v2044
        %v2046 = vpop.f32.mrf.mxu0
        %v2047 = vpop.f32.mrf.mxu0
        %v2048 = vpop.f32.mrf.mxu0
        %2049 = vdwg.mxu0
        %v2050 = vpack.c.bf16 %v2045, %v2045
        %v2052 = vsel %vm843, %v2050, 0
        %v2055 = vsel %vm908, %v1768, 0
        %2057 = vmatprep.subr.bf16.mxu0 0
        %2058 = vmatpush1.bf16.msra.mxu0 0
        %2059 = vmatprep.subr.bf16.mxu0 0
        %2060 = vmatpush1.bf16.msra.mxu0 0
        %2061 = vmatprep.subr.bf16.mxu0 0
        %2062 = vmatpush1.bf16.msra.mxu0 0
        %2063 = vmatprep.subr.bf16.mxu0 0
        %2064 = vmatpush1.bf16.msra.mxu0 0
        %2065 = vmatprep.subr.bf16.mxu0 0
        %2066 = vmatpush1.bf16.msra.mxu0 0
        %2067 = vmatprep.subr.bf16.mxu0 0
        %2068 = vmatpush1.bf16.msra.mxu0 0
        %2069 = vmatprep.subr.bf16.mxu0 0
        %2070 = vmatpush1.bf16.msra.mxu0 0
        %2071 = vmatprep.subr.bf16.mxu0 0
        %2072 = vmatpush1.bf16.msra.mxu0 %v2055
        %2073 = vmatprep.subr.bf16.mxu0 0
        %2074 = vmatpush2.bf16.msra.mxu0 0
        %2075 = vmatprep.subr.bf16.mxu0 0
        %2076 = vmatpush2.bf16.msra.mxu0 0
        %2077 = vmatprep.subr.bf16.mxu0 0
        %2078 = vmatpush2.bf16.msra.mxu0 0
        %2079 = vmatprep.subr.bf16.mxu0 0
        %2080 = vmatpush2.bf16.msra.mxu0 0
        %2081 = vmatprep.subr.bf16.mxu0 0
        %2082 = vmatpush2.bf16.msra.mxu0 0
        %2083 = vmatprep.subr.bf16.mxu0 0
        %2084 = vmatpush2.bf16.msra.mxu0 0
        %2085 = vmatprep.subr.bf16.mxu0 0
        %2086 = vmatpush2.bf16.msra.mxu0 0
        %2087 = vmatprep.subr.bf16.mxu0 0
        %2088 = vmatpush2.bf16.msra.mxu0 0
        %2089 = vmatprep.mubr.bf16.mxu0 0
        %2090 = vmatmul.mubr.bf16.gmra.mxu0 %v2052
        %v2091 = vpop.f32.mrf.mxu0
        %v2092 = vadd.f32 0.0, %v2091
        %v2093 = vpop.f32.mrf.mxu0
        %v2094 = vpop.f32.mrf.mxu0
        %v2095 = vpop.f32.mrf.mxu0
        %2096 = vdwg.mxu0
        %v2097 = vadd.f32 %v1938, %v2092
        %2098 = vrot.lane.b32.xlu0 %v1780, 112
        %v2099 = vpop.permute.xlu0 %2098
        %2100 = vrot.lane.b32.xlu0 %v1780, 80
        %v2101 = vpop.permute.xlu0 %2100
        %v2103 = vsel %vm843, %v2099, 0
        %v2106 = vsel %vm843, %v2101, 0
        %2108 = vmatprep.subr.bf16.mxu0 0
        %2109 = vmatpush1.bf16.xpose.msra.mxu0 0
        %2110 = vmatprep.subr.bf16.mxu0 0
        %2111 = vmatpush1.bf16.xpose.msra.mxu0 0
        %2112 = vmatprep.subr.bf16.mxu0 0
        %2113 = vmatpush1.bf16.xpose.msra.mxu0 0
        %2114 = vmatprep.subr.bf16.mxu0 0
        %2115 = vmatpush1.bf16.xpose.msra.mxu0 0
        %2116 = vmatprep.subr.bf16.mxu0 0
        %2117 = vmatpush1.bf16.xpose.msra.mxu0 0
        %2118 = vmatprep.subr.bf16.mxu0 0
        %2119 = vmatpush1.bf16.xpose.msra.mxu0 0
        %2120 = vmatprep.subr.bf16.mxu0 0
        %2121 = vmatpush1.bf16.xpose.msra.mxu0 0
        %2122 = vmatprep.subr.bf16.mxu0 0
        %2123 = vmatpush1.bf16.xpose.msra.mxu0 %v2106
        %2124 = vmatprep.subr.bf16.mxu0 0
        %2125 = vmatpush2.bf16.xpose.msra.mxu0 0
        %2126 = vmatprep.subr.bf16.mxu0 0
        %2127 = vmatpush2.bf16.xpose.msra.mxu0 0
        %2128 = vmatprep.subr.bf16.mxu0 0
        %2129 = vmatpush2.bf16.xpose.msra.mxu0 0
        %2130 = vmatprep.subr.bf16.mxu0 0
        %2131 = vmatpush2.bf16.xpose.msra.mxu0 0
        %2132 = vmatprep.subr.bf16.mxu0 0
        %2133 = vmatpush2.bf16.xpose.msra.mxu0 0
        %2134 = vmatprep.subr.bf16.mxu0 0
        %2135 = vmatpush2.bf16.xpose.msra.mxu0 0
        %2136 = vmatprep.subr.bf16.mxu0 0
        %2137 = vmatpush2.bf16.xpose.msra.mxu0 0
        %2138 = vmatprep.subr.bf16.mxu0 0
        %2139 = vmatpush2.bf16.xpose.msra.mxu0 0
        %2140 = vmatprep.mubr.bf16.mxu0 0
        %2141 = vmatmul.mubr.bf16.gmra.mxu0 %v2103
        %v2142 = vpop.f32.mrf.mxu0
        %v2143 = vadd.f32 0.0, %v2142
        %v2144 = vpop.f32.mrf.mxu0
        %v2145 = vpop.f32.mrf.mxu0
        %v2146 = vpop.f32.mrf.mxu0
        %2147 = vdwg.mxu0
        %v2148 = vmul.f32 %v2143, 0.35355338
        %v2149 = vsel %vm843, %v2148, -inf
        %2150 = vmax.xlane.f32.xlu0 %v2149
        %v2151 = vpop.xlane.xlu0 %2150
        %v2152 = vsub.f32 %v2148, %v2151
        %v2153 = vmul.f32 %v2152, 1.442695
        %v2154 = vpow.pop %v2153
        %v2155 = vsel %vm843, %v2154, 0.0
        %2156 = vadd.xlane.f32.xlu0 %v2155
        %v2157 = vpop.xlane.xlu0 %2156
        %v2158 = vrcp.pop %v2157
        %v2159 = vmul.f32 %v2154, %v2158
        %v2160 = vpack.c.bf16 %v2159, %v2159
        %2161 = vrot.lane.b32.xlu0 %v1780, 48
        %v2162 = vpop.permute.xlu0 %2161
        %v2164 = vsel %vm843, %v2160, 0
        %v2167 = vsel %vm908, %v2162, 0
        %2169 = vmatprep.subr.bf16.mxu0 0
        %2170 = vmatpush1.bf16.msra.mxu0 0
        %2171 = vmatprep.subr.bf16.mxu0 0
        %2172 = vmatpush1.bf16.msra.mxu0 0
        %2173 = vmatprep.subr.bf16.mxu0 0
        %2174 = vmatpush1.bf16.msra.mxu0 0
        %2175 = vmatprep.subr.bf16.mxu0 0
        %2176 = vmatpush1.bf16.msra.mxu0 0
        %2177 = vmatprep.subr.bf16.mxu0 0
        %2178 = vmatpush1.bf16.msra.mxu0 0
        %2179 = vmatprep.subr.bf16.mxu0 0
        %2180 = vmatpush1.bf16.msra.mxu0 0
        %2181 = vmatprep.subr.bf16.mxu0 0
        %2182 = vmatpush1.bf16.msra.mxu0 0
        %2183 = vmatprep.subr.bf16.mxu0 0
        %2184 = vmatpush1.bf16.msra.mxu0 %v2167
        %2185 = vmatprep.subr.bf16.mxu0 0
        %2186 = vmatpush2.bf16.msra.mxu0 0
        %2187 = vmatprep.subr.bf16.mxu0 0
        %2188 = vmatpush2.bf16.msra.mxu0 0
        %2189 = vmatprep.subr.bf16.mxu0 0
        %2190 = vmatpush2.bf16.msra.mxu0 0
        %2191 = vmatprep.subr.bf16.mxu0 0
        %2192 = vmatpush2.bf16.msra.mxu0 0
        %2193 = vmatprep.subr.bf16.mxu0 0
        %2194 = vmatpush2.bf16.msra.mxu0 0
        %2195 = vmatprep.subr.bf16.mxu0 0
        %2196 = vmatpush2.bf16.msra.mxu0 0
        %2197 = vmatprep.subr.bf16.mxu0 0
        %2198 = vmatpush2.bf16.msra.mxu0 0
        %2199 = vmatprep.subr.bf16.mxu0 0
        %2200 = vmatpush2.bf16.msra.mxu0 0
        %2201 = vmatprep.mubr.bf16.mxu0 0
        %2202 = vmatmul.mubr.bf16.gmra.mxu0 %v2164
        %v2203 = vpop.f32.mrf.mxu0
        %v2204 = vadd.f32 0.0, %v2203
        %v2205 = vpop.f32.mrf.mxu0
        %v2206 = vpop.f32.mrf.mxu0
        %v2207 = vpop.f32.mrf.mxu0
        %2208 = vdwg.mxu0
        %v2209 = vpack.c.bf16 %v2204, %v2204
        %v2211 = vsel %vm843, %v2209, 0
        %v2214 = vsel %vm908, %v1769, 0
        %2216 = vmatprep.subr.bf16.mxu0 0
        %2217 = vmatpush1.bf16.msra.mxu0 0
        %2218 = vmatprep.subr.bf16.mxu0 0
        %2219 = vmatpush1.bf16.msra.mxu0 0
        %2220 = vmatprep.subr.bf16.mxu0 0
        %2221 = vmatpush1.bf16.msra.mxu0 0
        %2222 = vmatprep.subr.bf16.mxu0 0
        %2223 = vmatpush1.bf16.msra.mxu0 0
        %2224 = vmatprep.subr.bf16.mxu0 0
        %2225 = vmatpush1.bf16.msra.mxu0 0
        %2226 = vmatprep.subr.bf16.mxu0 0
        %2227 = vmatpush1.bf16.msra.mxu0 0
        %2228 = vmatprep.subr.bf16.mxu0 0
        %2229 = vmatpush1.bf16.msra.mxu0 0
        %2230 = vmatprep.subr.bf16.mxu0 0
        %2231 = vmatpush1.bf16.msra.mxu0 %v2214
        %2232 = vmatprep.subr.bf16.mxu0 0
        %2233 = vmatpush2.bf16.msra.mxu0 0
        %2234 = vmatprep.subr.bf16.mxu0 0
        %2235 = vmatpush2.bf16.msra.mxu0 0
        %2236 = vmatprep.subr.bf16.mxu0 0
        %2237 = vmatpush2.bf16.msra.mxu0 0
        %2238 = vmatprep.subr.bf16.mxu0 0
        %2239 = vmatpush2.bf16.msra.mxu0 0
        %2240 = vmatprep.subr.bf16.mxu0 0
        %2241 = vmatpush2.bf16.msra.mxu0 0
        %2242 = vmatprep.subr.bf16.mxu0 0
        %2243 = vmatpush2.bf16.msra.mxu0 0
        %2244 = vmatprep.subr.bf16.mxu0 0
        %2245 = vmatpush2.bf16.msra.mxu0 0
        %2246 = vmatprep.subr.bf16.mxu0 0
        %2247 = vmatpush2.bf16.msra.mxu0 0
        %2248 = vmatprep.mubr.bf16.mxu0 0
        %2249 = vmatmul.mubr.bf16.gmra.mxu0 %v2211
        %v2250 = vpop.f32.mrf.mxu0
        %v2251 = vadd.f32 0.0, %v2250
        %v2252 = vpop.f32.mrf.mxu0
        %v2253 = vpop.f32.mrf.mxu0
        %v2254 = vpop.f32.mrf.mxu0
        %2255 = vdwg.mxu0
        %v2256 = vadd.f32 %v2097, %v2251
        %2257 = vrot.lane.b32.xlu0 %v1780, 104
        %v2258 = vpop.permute.xlu0 %2257
        %2259 = vrot.lane.b32.xlu0 %v1780, 72
        %v2260 = vpop.permute.xlu0 %2259
        %v2262 = vsel %vm843, %v2258, 0
        %v2265 = vsel %vm843, %v2260, 0
        %2267 = vmatprep.subr.bf16.mxu0 0
        %2268 = vmatpush1.bf16.xpose.msra.mxu0 0
        %2269 = vmatprep.subr.bf16.mxu0 0
        %2270 = vmatpush1.bf16.xpose.msra.mxu0 0
        %2271 = vmatprep.subr.bf16.mxu0 0
        %2272 = vmatpush1.bf16.xpose.msra.mxu0 0
        %2273 = vmatprep.subr.bf16.mxu0 0
        %2274 = vmatpush1.bf16.xpose.msra.mxu0 0
        %2275 = vmatprep.subr.bf16.mxu0 0
        %2276 = vmatpush1.bf16.xpose.msra.mxu0 0
        %2277 = vmatprep.subr.bf16.mxu0 0
        %2278 = vmatpush1.bf16.xpose.msra.mxu0 0
        %2279 = vmatprep.subr.bf16.mxu0 0
        %2280 = vmatpush1.bf16.xpose.msra.mxu0 0
        %2281 = vmatprep.subr.bf16.mxu0 0
        %2282 = vmatpush1.bf16.xpose.msra.mxu0 %v2265
        %2283 = vmatprep.subr.bf16.mxu0 0
        %2284 = vmatpush2.bf16.xpose.msra.mxu0 0
        %2285 = vmatprep.subr.bf16.mxu0 0
        %2286 = vmatpush2.bf16.xpose.msra.mxu0 0
        %2287 = vmatprep.subr.bf16.mxu0 0
        %2288 = vmatpush2.bf16.xpose.msra.mxu0 0
        %2289 = vmatprep.subr.bf16.mxu0 0
        %2290 = vmatpush2.bf16.xpose.msra.mxu0 0
        %2291 = vmatprep.subr.bf16.mxu0 0
        %2292 = vmatpush2.bf16.xpose.msra.mxu0 0
        %2293 = vmatprep.subr.bf16.mxu0 0
        %2294 = vmatpush2.bf16.xpose.msra.mxu0 0
        %2295 = vmatprep.subr.bf16.mxu0 0
        %2296 = vmatpush2.bf16.xpose.msra.mxu0 0
        %2297 = vmatprep.subr.bf16.mxu0 0
        %2298 = vmatpush2.bf16.xpose.msra.mxu0 0
        %2299 = vmatprep.mubr.bf16.mxu0 0
        %2300 = vmatmul.mubr.bf16.gmra.mxu0 %v2262
        %v2301 = vpop.f32.mrf.mxu0
        %v2302 = vadd.f32 0.0, %v2301
        %v2303 = vpop.f32.mrf.mxu0
        %v2304 = vpop.f32.mrf.mxu0
        %v2305 = vpop.f32.mrf.mxu0
        %2306 = vdwg.mxu0
        %v2307 = vmul.f32 %v2302, 0.35355338
        %v2308 = vsel %vm843, %v2307, -inf
        %2309 = vmax.xlane.f32.xlu0 %v2308
        %v2310 = vpop.xlane.xlu0 %2309
        %v2311 = vsub.f32 %v2307, %v2310
        %v2312 = vmul.f32 %v2311, 1.442695
        %v2313 = vpow.pop %v2312
        %v2314 = vsel %vm843, %v2313, 0.0
        %2315 = vadd.xlane.f32.xlu0 %v2314
        %v2316 = vpop.xlane.xlu0 %2315
        %v2317 = vrcp.pop %v2316
        %v2318 = vmul.f32 %v2313, %v2317
        %v2319 = vpack.c.bf16 %v2318, %v2318
        %2320 = vrot.lane.b32.xlu0 %v1780, 40
        %v2321 = vpop.permute.xlu0 %2320
        %v2323 = vsel %vm843, %v2319, 0
        %v2326 = vsel %vm908, %v2321, 0
        %2328 = vmatprep.subr.bf16.mxu0 0
        %2329 = vmatpush1.bf16.msra.mxu0 0
        %2330 = vmatprep.subr.bf16.mxu0 0
        %2331 = vmatpush1.bf16.msra.mxu0 0
        %2332 = vmatprep.subr.bf16.mxu0 0
        %2333 = vmatpush1.bf16.msra.mxu0 0
        %2334 = vmatprep.subr.bf16.mxu0 0
        %2335 = vmatpush1.bf16.msra.mxu0 0
        %2336 = vmatprep.subr.bf16.mxu0 0
        %2337 = vmatpush1.bf16.msra.mxu0 0
        %2338 = vmatprep.subr.bf16.mxu0 0
        %2339 = vmatpush1.bf16.msra.mxu0 0
        %2340 = vmatprep.subr.bf16.mxu0 0
        %2341 = vmatpush1.bf16.msra.mxu0 0
        %2342 = vmatprep.subr.bf16.mxu0 0
        %2343 = vmatpush1.bf16.msra.mxu0 %v2326
        %2344 = vmatprep.subr.bf16.mxu0 0
        %2345 = vmatpush2.bf16.msra.mxu0 0
        %2346 = vmatprep.subr.bf16.mxu0 0
        %2347 = vmatpush2.bf16.msra.mxu0 0
        %2348 = vmatprep.subr.bf16.mxu0 0
        %2349 = vmatpush2.bf16.msra.mxu0 0
        %2350 = vmatprep.subr.bf16.mxu0 0
        %2351 = vmatpush2.bf16.msra.mxu0 0
        %2352 = vmatprep.subr.bf16.mxu0 0
        %2353 = vmatpush2.bf16.msra.mxu0 0
        %2354 = vmatprep.subr.bf16.mxu0 0
        %2355 = vmatpush2.bf16.msra.mxu0 0
        %2356 = vmatprep.subr.bf16.mxu0 0
        %2357 = vmatpush2.bf16.msra.mxu0 0
        %2358 = vmatprep.subr.bf16.mxu0 0
        %2359 = vmatpush2.bf16.msra.mxu0 0
        %2360 = vmatprep.mubr.bf16.mxu0 0
        %2361 = vmatmul.mubr.bf16.gmra.mxu0 %v2323
        %v2362 = vpop.f32.mrf.mxu0
        %v2363 = vadd.f32 0.0, %v2362
        %v2364 = vpop.f32.mrf.mxu0
        %v2365 = vpop.f32.mrf.mxu0
        %v2366 = vpop.f32.mrf.mxu0
        %2367 = vdwg.mxu0
        %v2368 = vpack.c.bf16 %v2363, %v2363
        %v2370 = vsel %vm843, %v2368, 0
        %v2373 = vsel %vm908, %v1770, 0
        %2375 = vmatprep.subr.bf16.mxu0 0
        %2376 = vmatpush1.bf16.msra.mxu0 0
        %2377 = vmatprep.subr.bf16.mxu0 0
        %2378 = vmatpush1.bf16.msra.mxu0 0
        %2379 = vmatprep.subr.bf16.mxu0 0
        %2380 = vmatpush1.bf16.msra.mxu0 0
        %2381 = vmatprep.subr.bf16.mxu0 0
        %2382 = vmatpush1.bf16.msra.mxu0 0
        %2383 = vmatprep.subr.bf16.mxu0 0
        %2384 = vmatpush1.bf16.msra.mxu0 0
        %2385 = vmatprep.subr.bf16.mxu0 0
        %2386 = vmatpush1.bf16.msra.mxu0 0
        %2387 = vmatprep.subr.bf16.mxu0 0
        %2388 = vmatpush1.bf16.msra.mxu0 0
        %2389 = vmatprep.subr.bf16.mxu0 0
        %2390 = vmatpush1.bf16.msra.mxu0 %v2373
        %2391 = vmatprep.subr.bf16.mxu0 0
        %2392 = vmatpush2.bf16.msra.mxu0 0
        %2393 = vmatprep.subr.bf16.mxu0 0
        %2394 = vmatpush2.bf16.msra.mxu0 0
        %2395 = vmatprep.subr.bf16.mxu0 0
        %2396 = vmatpush2.bf16.msra.mxu0 0
        %2397 = vmatprep.subr.bf16.mxu0 0
        %2398 = vmatpush2.bf16.msra.mxu0 0
        %2399 = vmatprep.subr.bf16.mxu0 0
        %2400 = vmatpush2.bf16.msra.mxu0 0
        %2401 = vmatprep.subr.bf16.mxu0 0
        %2402 = vmatpush2.bf16.msra.mxu0 0
        %2403 = vmatprep.subr.bf16.mxu0 0
        %2404 = vmatpush2.bf16.msra.mxu0 0
        %2405 = vmatprep.subr.bf16.mxu0 0
        %2406 = vmatpush2.bf16.msra.mxu0 0
        %2407 = vmatprep.mubr.bf16.mxu0 0
        %2408 = vmatmul.mubr.bf16.gmra.mxu0 %v2370
        %v2409 = vpop.f32.mrf.mxu0
        %v2410 = vadd.f32 0.0, %v2409
        %v2411 = vpop.f32.mrf.mxu0
        %v2412 = vpop.f32.mrf.mxu0
        %v2413 = vpop.f32.mrf.mxu0
        %2414 = vdwg.mxu0
        %v2415 = vadd.f32 %v2256, %v2410
        %v2416 = vadd.f32 %v1696, %v2415
        %s2417 = scalar_lea.vmem %s10, 1
        %v2418 = vld [vmem:[%s2417] sm:$0x1]
        %s2419 = scalar_lea.vmem %s11, 1
        %v2420 = vld [vmem:[%s2419] sm:$0x1]
        %v2421 = vsel %vm731, %v2416, 0.0
        %2422 = vadd.xlane.f32.xlu0 %v2421
        %v2423 = vpop.xlane.xlu0 %2422
        %v2424 = vmul.f32 %v2423, %v735
        %v2425 = vsub.f32 %v2416, %v2424
        %v2426 = vmul.f32 %v2425, %v2425
        %v2427 = vsel %vm731, %v2426, 0.0
        %2428 = vadd.xlane.f32.xlu0 %v2427
        %v2429 = vpop.xlane.xlu0 %2428
        %v2430 = vmul.f32 %v2429, %v735
        %v2431 = vadd.f32 %v2430, 1e-12
        %v2432 = vrsqrt.pop %v2431
        %v2433 = vmul.f32 %v2425, %v2432
        %v2435 = vlaneseq
        %v2436 = vshrl.u32 %v2435, 7
        %v2437 = vsub.s32 0, %v2436
        %v2438 = vrot.slane %v2418, %v2437
        %v2440 = vmul.f32 %v2433, %v2438
        %v2442 = vlaneseq
        %v2443 = vshrl.u32 %v2442, 7
        %v2444 = vsub.s32 0, %v2443
        %v2445 = vrot.slane %v2420, %v2444
        %v2447 = vadd.f32 %v2440, %v2445
        %v2448 = vpack.c.bf16 %v2447, %v2447
        %s2449 = scalar_lea.vmem %s12, 16
        %v2450 = vld [vmem:[%s2449] sm:$0xf]
        %v2451 = vld [vmem:[%s2449 + $0x4] sm:$0xf]
        %v2452 = vld [vmem:[%s2449 + $0x8] sm:$0xf]
        %v2453 = vld [vmem:[%s2449 + $0xc] sm:$0xf]
        %s2454 = scalar_lea.vmem %s13, 1
        %v2455 = vld [vmem:[%s2454] sm:$0x1]
        %v2457 = vlaneseq
        %v2458 = vshrl.u32 %v2457, 7
        %v2459 = vsub.s32 0, %v2458
        %v2460 = vrot.slane %v2455, %v2459
        %v2466 = vunpack.c.l.b16 %v2450
        %v2467 = vunpack.c.l.b16 %v2451
        %v2468 = vunpack.c.l.b16 %v2452
        %v2469 = vunpack.c.l.b16 %v2453
        %v2470 = vpack.c.b16 %v2467, %v2466
        %v2471 = vpack.c.b16 %v2469, %v2468
        %v2475 = vsel %vm731, %v2448, 0
        %2477 = vmatprep.subr.bf16.mxu0 0
        %2478 = vmatpush1.bf16.msra.mxu0 0
        %2479 = vmatprep.subr.bf16.mxu0 0
        %2480 = vmatpush1.bf16.msra.mxu0 0
        %2481 = vmatprep.subr.bf16.mxu0 0
        %2482 = vmatpush1.bf16.msra.mxu0 0
        %2483 = vmatprep.subr.bf16.mxu0 0
        %2484 = vmatpush1.bf16.msra.mxu0 0
        %2485 = vmatprep.subr.bf16.mxu0 0
        %2486 = vmatpush1.bf16.msra.mxu0 0
        %2487 = vmatprep.subr.bf16.mxu0 0
        %2488 = vmatpush1.bf16.msra.mxu0 0
        %2489 = vmatprep.subr.bf16.mxu0 0
        %2490 = vmatpush1.bf16.msra.mxu0 %v2471
        %2491 = vmatprep.subr.bf16.mxu0 0
        %2492 = vmatpush1.bf16.msra.mxu0 %v2470
        %2493 = vmatprep.subr.bf16.mxu0 0
        %2494 = vmatpush2.bf16.msra.mxu0 0
        %2495 = vmatprep.subr.bf16.mxu0 0
        %2496 = vmatpush2.bf16.msra.mxu0 0
        %2497 = vmatprep.subr.bf16.mxu0 0
        %2498 = vmatpush2.bf16.msra.mxu0 0
        %2499 = vmatprep.subr.bf16.mxu0 0
        %2500 = vmatpush2.bf16.msra.mxu0 0
        %2501 = vmatprep.subr.bf16.mxu0 0
        %2502 = vmatpush2.bf16.msra.mxu0 0
        %2503 = vmatprep.subr.bf16.mxu0 0
        %2504 = vmatpush2.bf16.msra.mxu0 0
        %2505 = vmatprep.subr.bf16.mxu0 0
        %2506 = vmatpush2.bf16.msra.mxu0 0
        %2507 = vmatprep.subr.bf16.mxu0 0
        %2508 = vmatpush2.bf16.msra.mxu0 0
        %2509 = vmatprep.mubr.bf16.mxu0 0
        %2510 = vmatmul.mubr.bf16.gmra.mxu0 %v2475
        %v2511 = vpop.f32.mrf.mxu0
        %v2512 = vadd.f32 %v2460, %v2511
        %v2513 = vpop.f32.mrf.mxu0
        %v2514 = vpop.f32.mrf.mxu0
        %v2515 = vpop.f32.mrf.mxu0
        %2516 = vdwg.mxu0
        %v2517 = vmul.f32 %v2512, %v2512
        %v2518 = vmul.f32 %v2512, %v2517
        %v2519 = vmul.f32 %v2518, 0.044715
        %v2520 = vadd.f32 %v2512, %v2519
        %v2521 = vmul.f32 %v2520, 0.7978846
        %v2522 = vtanh.pop %v2521
        %v2523 = vadd.f32 %v2522, 1.0
        %v2524 = vmul.f32 %v2523, 0.5
        %v2525 = vmul.f32 %v2512, %v2524
        %v2526 = vpack.c.bf16 %v2525, %v2525
        %s2527 = scalar_lea.vmem %s14, 32
        %v2528 = vld [vmem:[%s2527] sm:$0xf]
        %v2529 = vld [vmem:[%s2527 + $0x4] sm:$0xf]
        %v2530 = vld [vmem:[%s2527 + $0x8] sm:$0xf]
        %v2531 = vld [vmem:[%s2527 + $0xc] sm:$0xf]
        %v2532 = vld [vmem:[%s2527 + $0x10] sm:$0xf]
        %v2533 = vld [vmem:[%s2527 + $0x14] sm:$0xf]
        %v2534 = vld [vmem:[%s2527 + $0x18] sm:$0xf]
        %v2535 = vld [vmem:[%s2527 + $0x1c] sm:$0xf]
        %s2536 = scalar_lea.vmem %s15, 1
        %v2537 = vld [vmem:[%s2536] sm:$0x1]
        %v2539 = vlaneseq
        %v2540 = vshrl.u32 %v2539, 7
        %v2541 = vsub.s32 0, %v2540
        %v2542 = vrot.slane %v2537, %v2541
        %v2552 = vunpack.c.l.b16 %v2528
        %v2553 = vunpack.c.l.b16 %v2529
        %v2554 = vunpack.c.l.b16 %v2530
        %v2555 = vunpack.c.l.b16 %v2531
        %v2556 = vunpack.c.l.b16 %v2532
        %v2557 = vunpack.c.l.b16 %v2533
        %v2558 = vunpack.c.l.b16 %v2534
        %v2559 = vunpack.c.l.b16 %v2535
        %v2560 = vpack.c.b16 %v2553, %v2552
        %v2561 = vpack.c.b16 %v2555, %v2554
        %v2562 = vpack.c.b16 %v2557, %v2556
        %v2563 = vpack.c.b16 %v2559, %v2558
        %v2569 = vsel %vm1623, %v2526, 0
        %2571 = vmatprep.subr.bf16.mxu0 0
        %2572 = vmatpush1.bf16.msra.mxu0 0
        %2573 = vmatprep.subr.bf16.mxu0 0
        %2574 = vmatpush1.bf16.msra.mxu0 0
        %2575 = vmatprep.subr.bf16.mxu0 0
        %2576 = vmatpush1.bf16.msra.mxu0 0
        %2577 = vmatprep.subr.bf16.mxu0 0
        %2578 = vmatpush1.bf16.msra.mxu0 0
        %2579 = vmatprep.subr.bf16.mxu0 0
        %2580 = vmatpush1.bf16.msra.mxu0 %v2563
        %2581 = vmatprep.subr.bf16.mxu0 0
        %2582 = vmatpush1.bf16.msra.mxu0 %v2562
        %2583 = vmatprep.subr.bf16.mxu0 0
        %2584 = vmatpush1.bf16.msra.mxu0 %v2561
        %2585 = vmatprep.subr.bf16.mxu0 0
        %2586 = vmatpush1.bf16.msra.mxu0 %v2560
        %2587 = vmatprep.subr.bf16.mxu0 0
        %2588 = vmatpush2.bf16.msra.mxu0 0
        %2589 = vmatprep.subr.bf16.mxu0 0
        %2590 = vmatpush2.bf16.msra.mxu0 0
        %2591 = vmatprep.subr.bf16.mxu0 0
        %2592 = vmatpush2.bf16.msra.mxu0 0
        %2593 = vmatprep.subr.bf16.mxu0 0
        %2594 = vmatpush2.bf16.msra.mxu0 0
        %2595 = vmatprep.subr.bf16.mxu0 0
        %2596 = vmatpush2.bf16.msra.mxu0 0
        %2597 = vmatprep.subr.bf16.mxu0 0
        %2598 = vmatpush2.bf16.msra.mxu0 0
        %2599 = vmatprep.subr.bf16.mxu0 0
        %2600 = vmatpush2.bf16.msra.mxu0 0
        %2601 = vmatprep.subr.bf16.mxu0 0
        %2602 = vmatpush2.bf16.msra.mxu0 0
        %2603 = vmatprep.mubr.bf16.mxu0 0
        %2604 = vmatmul.mubr.bf16.gmra.mxu0 %v2569
        %v2605 = vpop.f32.mrf.mxu0
        %v2606 = vadd.f32 %v2542, %v2605
        %v2607 = vpop.f32.mrf.mxu0
        %v2608 = vpop.f32.mrf.mxu0
        %v2609 = vpop.f32.mrf.mxu0
        %2610 = vdwg.mxu0
        %v2611 = vadd.f32 %v2447, %v2606
        %s2612 = scalar_lea.vmem %s16, 1
        %v2613 = vld [vmem:[%s2612] sm:$0x1]
        %s2614 = scalar_lea.vmem %s17, 1
        %v2615 = vld [vmem:[%s2614] sm:$0x1]
        %v2616 = vsel %vm731, %v2611, 0.0
        %2617 = vadd.xlane.f32.xlu0 %v2616
        %v2618 = vpop.xlane.xlu0 %2617
        %v2619 = vmul.f32 %v2618, %v735
        %v2620 = vsub.f32 %v2611, %v2619
        %v2621 = vmul.f32 %v2620, %v2620
        %v2622 = vsel %vm731, %v2621, 0.0
        %2623 = vadd.xlane.f32.xlu0 %v2622
        %v2624 = vpop.xlane.xlu0 %2623
        %v2625 = vmul.f32 %v2624, %v735
        %v2626 = vadd.f32 %v2625, 1e-12
        %v2627 = vrsqrt.pop %v2626
        %v2628 = vmul.f32 %v2620, %v2627
        %v2630 = vlaneseq
        %v2631 = vshrl.u32 %v2630, 7
        %v2632 = vsub.s32 0, %v2631
        %v2633 = vrot.slane %v2613, %v2632
        %v2635 = vmul.f32 %v2628, %v2633
        %v2637 = vlaneseq
        %v2638 = vshrl.u32 %v2637, 7
        %v2639 = vsub.s32 0, %v2638
        %v2640 = vrot.slane %v2615, %v2639
        %v2642 = vadd.f32 %v2635, %v2640
        %v2643 = vpack.c.bf16 %v2642, %v2642
        %v2644 = vld [vmem:[%s18] sm:$0xf]
        %v2645 = vld [vmem:[%s18 + $0x4] sm:$0xf]
        %v2646 = vld [vmem:[%s18 + $0x8] sm:$0xf]
        %v2647 = vld [vmem:[%s18 + $0xc] sm:$0xf]
        %v2648 = vld [vmem:[%s19] sm:$0x1]
        %v2653 = vunpack.c.l.b16 %v2644
        %v2654 = vunpack.c.l.b16 %v2645
        %v2655 = vunpack.c.l.b16 %v2646
        %v2656 = vunpack.c.l.b16 %v2647
        %v2657 = vpack.c.b16 %v2654, %v2653
        %v2658 = vpack.c.b16 %v2656, %v2655
        %v2662 = vsel %vm731, %v2643, 0
        %2664 = vmatprep.subr.bf16.mxu0 0
        %2665 = vmatpush1.bf16.msra.mxu0 0
        %2666 = vmatprep.subr.bf16.mxu0 0
        %2667 = vmatpush1.bf16.msra.mxu0 0
        %2668 = vmatprep.subr.bf16.mxu0 0
        %2669 = vmatpush1.bf16.msra.mxu0 0
        %2670 = vmatprep.subr.bf16.mxu0 0
        %2671 = vmatpush1.bf16.msra.mxu0 0
        %2672 = vmatprep.subr.bf16.mxu0 0
        %2673 = vmatpush1.bf16.msra.mxu0 0
        %2674 = vmatprep.subr.bf16.mxu0 0
        %2675 = vmatpush1.bf16.msra.mxu0 0
        %2676 = vmatprep.subr.bf16.mxu0 0
        %2677 = vmatpush1.bf16.msra.mxu0 %v2658
        %2678 = vmatprep.subr.bf16.mxu0 0
        %2679 = vmatpush1.bf16.msra.mxu0 %v2657
        %2680 = vmatprep.subr.bf16.mxu0 0
        %2681 = vmatpush2.bf16.msra.mxu0 0
        %2682 = vmatprep.subr.bf16.mxu0 0
        %2683 = vmatpush2.bf16.msra.mxu0 0
        %2684 = vmatprep.subr.bf16.mxu0 0
        %2685 = vmatpush2.bf16.msra.mxu0 0
        %2686 = vmatprep.subr.bf16.mxu0 0
        %2687 = vmatpush2.bf16.msra.mxu0 0
        %2688 = vmatprep.subr.bf16.mxu0 0
        %2689 = vmatpush2.bf16.msra.mxu0 0
        %2690 = vmatprep.subr.bf16.mxu0 0
        %2691 = vmatpush2.bf16.msra.mxu0 0
        %2692 = vmatprep.subr.bf16.mxu0 0
        %2693 = vmatpush2.bf16.msra.mxu0 0
        %2694 = vmatprep.subr.bf16.mxu0 0
        %2695 = vmatpush2.bf16.msra.mxu0 0
        %2696 = vmatprep.mubr.bf16.mxu0 0
        %2697 = vmatmul.mubr.bf16.gmra.mxu0 %v2662
        %v2698 = vpop.f32.mrf.mxu0
        %v2699 = vadd.f32 %v2648, %v2698
        %v2700 = vpop.f32.mrf.mxu0
        %v2701 = vpop.f32.mrf.mxu0
        %v2702 = vpop.f32.mrf.mxu0
        %2703 = vdwg.mxu0
        %vm2704 = vcmask 253952
        %2705 = vst.msk [vmem:[%s619] sm:$0x1] %vm2704, %v2699
        %s2706 = sand.u32 %s467, 1
        %s2707 = scalar_lea.sflag [#allocation3], %s2706
        %s2708 = sand.u32 %s467, 1
        %s2709 = scalar_lea.vmem [#allocation2], %s2708
        // Predicated region
        $region101: #{tpu_custom_call.1} parent=99 // pred_check
          %p2710 = pneg %p477
        $region102: #{tpu_custom_call.1} parent=99 // pred_check_branch
          %2712 = sbr.rel (%p2710) target = $region104
        $region103: #{tpu_custom_call.1} parent=99 // pred_region
          %s2714 = ssub.s32 16, 16
          %2715 = vsyncadd %s2707, %s2714
          %s2716 = smul.addr %s34, 16
          %s2717 = scalar_lea.hbm %s20, %s2716
          %s2719 = sshll.u32 %s2709, 4
          %s2720 = int_to_ptr.vmem [resolvable:$true] %s2719
          %2722 = dma.vmem_to_hbm [thread:$0]  %s2720, 16, %s2717, %s2707
        $region104: #{tpu_custom_call.1} parent=99 // pred_fallthru
          _
      $region100: #{tpu_custom_call.1} parent=5 // pred_fallthru
        _
      %p2723 = scmp.le.s32.totalorder 2, %s29
      // Predicated region
      $region105: #{tpu_custom_call.1} parent=5 // pred_check
        %p2724 = pneg %p2723
      $region106: #{tpu_custom_call.1} parent=5 // pred_check_branch
        %2726 = sbr.rel (%p2724) target = $region108
      $region107: #{tpu_custom_call.1} parent=5 // pred_region
        %s2727 = ssub.s32 %s29, 2
        // Predicated region
        $region109: #{tpu_custom_call.1} parent=107 // pred_check
          %p2728 = pneg %p483
        $region110: #{tpu_custom_call.1} parent=107 // pred_check_branch
          %2730 = sbr.rel (%p2728) target = $region112
        $region111: #{tpu_custom_call.1} parent=107 // pred_region
          %s2731 = sand.u32 %s468, 1
          %s2732 = scalar_lea.sflag [#allocation3], %s2731
          %s2733 = sand.u32 %s468, 1
          %s2734 = scalar_lea.vmem [#allocation2], %s2733
          %2735 = dma.done %s2732, 16
        $region112: #{tpu_custom_call.1} parent=107 // pred_fallthru
          _
      $region108: #{tpu_custom_call.1} parent=5 // pred_fallthru
        _
    $region6: #{tpu_custom_call.1} parent=1 // loop_footer
      %s33 = sadd.s32 1, %s29
    $region7: #{tpu_custom_call.1} parent=1 // loop_footer_branch
      %28 = sbr.rel target = $region3
    $region8: #{tpu_custom_call.1} parent=1 // loop_exit
      _
    %2736 = vsyncpa [#allocation3], 1
    %s2737 = scalar_lea.sflag [#allocation3], 1
    %2738 = vsyncpa %s2737, 1

</llo_original>
